<compile_context>
chip_gen: v6e
topology: v6e:2x2x1
jax: 0.10.0
libtpu: 0.0.40
codegen_flags: <defaults>
</compile_context>

<pallas_src>
import functools

import jax
import jax.numpy as jnp
from jax import lax
from jax.experimental import pallas as pl
from jax.experimental.pallas import tpu as pltpu

EPS = 1e-5  # nn.LayerNorm default eps


def _layer_norm(r, gamma, beta):
    # f32 elementwise math (safe on v5e: no bf16 VPU/EUP path needed).
    mu = jnp.mean(r, axis=-1, keepdims=True)
    var = jnp.mean((r - mu) ** 2, axis=-1, keepdims=True)
    return (r - mu) * lax.rsqrt(var + EPS) * gamma + beta


# --------------------------------------------------------------------------
# Fused forward kernel:
#   fcs[0] + LN + ReLU  ->  num_layers x (GAT attention + residual + LN)  ->  fc
# --------------------------------------------------------------------------
def _sgformer_kernel(x_ref,
                     fc0_w_ref, fc0_b_ref, ln0_g_ref, ln0_b_ref,
                     wv_out_ref, bv_out_ref,
                     wq_ref, bq_ref, wk_ref, bk_ref,
                     wv_attn_ref, bv_attn_ref,
                     ln_g_ref, ln_b_ref,
                     fc_w_ref, fc_b_ref,
                     o_ref,
                     s_ref,
                     *, num_layers, num_heads, dk, hidden, alpha):
    f32 = jnp.float32
    bf16 = jnp.bfloat16
    inv_sqrt_dk = 1.0 / (float(dk) ** 0.5)
    inv_heads = 1.0 / float(num_heads)

    # ---- fcs[0] + bns[0] (LayerNorm) + ReLU (dropout = identity in eval) ----
    xb = x_ref[...].astype(bf16)
    h = jnp.dot(xb, fc0_w_ref[...], preferred_element_type=f32) + fc0_b_ref[...]
    h = _layer_norm(h, ln0_g_ref[...], ln0_b_ref[...])
    x = jnp.maximum(h, 0.0)

    # ---- TransConv layers (static unrolled loop, activations stay in VMEM) ----
    for li in range(num_layers):
        xb = x.astype(bf16)

        # TransConvLayerGAT.Wv (outer value projection): v_in = x @ Wv + b
        v_in = jnp.dot(xb, wv_out_ref[li], preferred_element_type=f32) + bv_out_ref[li]
        v_in_b = v_in.astype(bf16)

        # Per-head attention scores -> single stacked VMEM scratch [H, N, N].
        for hh in range(num_heads):
            idx = li * num_heads + hh
            qh = jnp.dot(xb, wq_ref[idx], preferred_element_type=f32) + bq_ref[idx]
            qh = qh * inv_sqrt_dk                       # pre-scale q, not the NxN scores
            kh = jnp.dot(xb, wk_ref[idx], preferred_element_type=f32) + bk_ref[idx]
            # q @ k^T without materializing the transpose of k.
            s_ref[hh] = lax.dot_general(
                qh.astype(bf16), kh.astype(bf16),
                dimension_numbers=(((1,), (1,)), ((), ())),
                preferred_element_type=f32)

        # Softmax over the HEAD axis (PyTorch Softmax(dim=-1) on [N, L, H]).
        s = s_ref[...]                                  # [H, N, N] f32
        m = jnp.max(s, axis=0, keepdims=True)
        e = jnp.exp(s - m)
        inv_denom = pl.reciprocal(jnp.sum(e, axis=0, keepdims=True), approx=True)
        w = e * inv_denom                               # [H, N, N]

        # output[n,h,:] = sum_l w[h,n,l] * v_h[l,:]; mean over heads.
        acc = jnp.zeros((x.shape[0], hidden), dtype=f32)
        for hh in range(num_heads):
            idx = li * num_heads + hh
            vh = (jnp.dot(v_in_b, wv_attn_ref[idx], preferred_element_type=f32)
                  + bv_attn_ref[idx])                   # [N, hidden]
            acc = acc + jnp.dot(w[hh].astype(bf16), vh.astype(bf16),
                                preferred_element_type=f32)
        attn = acc * inv_heads

        # residual (layer_[li] is exactly this layer's input x) + bns[li+1] LN.
        r = alpha * attn + (1.0 - alpha) * x
        x = _layer_norm(r, ln_g_ref[li], ln_b_ref[li])

    # ---- final fc (columns zero-padded to a lane-dense width) ----
    o_ref[...] = (jnp.dot(x.astype(bf16), fc_w_ref[...],
                          preferred_element_type=f32) + fc_b_ref[...])


# --------------------------------------------------------------------------
# Wrapper
# --------------------------------------------------------------------------
# TODO(synk): TransConvLayer's own Wq/Wk/Wv projections are dead compute in the
#             PyTorch forward (their `value` is never consumed) -> omitted.
# TODO(synk): gnn / use_graph branch omitted (gnn=None in this config).
# TODO(synk): for large graphs, attention is global so the fused-all-layers
#             form needs the whole activation resident; past ~VMEM limits split
#             into per-layer pallas_calls with a (query-tile, key-tile) grid
#             ("parallel", "arbitrary") and an accumulator scratch.
def sgformer_gat_forward(params, x, *, num_layers, num_heads, dk, hidden,
                         out_ch, out_pad, alpha):
    n = x.shape[0]
    kern = functools.partial(_sgformer_kernel, num_layers=num_layers,
                             num_heads=num_heads, dk=dk, hidden=hidden,
                             alpha=alpha)
    vmem = pl.BlockSpec(memory_space=pltpu.MemorySpace.VMEM)
    out_padded = pl.pallas_call(
        kern,
        out_shape=jax.ShapeDtypeStruct((n, out_pad), jnp.float32),
        in_specs=[vmem] * 17,
        out_specs=vmem,
        scratch_shapes=[pltpu.VMEM((num_heads, n, n), jnp.float32)],
        compiler_params=pltpu.CompilerParams(vmem_limit_bytes=32 * 1024 * 1024),
    )(x,
      params["fc0_w"], params["fc0_b"], params["ln0_g"], params["ln0_b"],
      params["wv_out"], params["bv_out"],
      params["wq"], params["bq"], params["wk"], params["bk"],
      params["wv_attn"], params["bv_attn"],
      params["ln_g"], params["ln_b"],
      params["fc_w"], params["fc_b"])
    return out_padded[:, :out_ch]


# --------------------------------------------------------------------------
# Parameter construction (deterministic, PyTorch-Linear-style uniform init).
# Weights stored bf16 (MXU inputs), biases / LN params f32.
# --------------------------------------------------------------------------
def _linear_params(key, fan_in, fan_out):
    kw, kb = jax.random.split(key)
    bound = 1.0 / (fan_in ** 0.5)
    w_t = jax.random.uniform(kw, (fan_in, fan_out), jnp.float32, -bound, bound)
    b = jax.random.uniform(kb, (1, fan_out), jnp.float32, -bound, bound)
    return w_t, b


def init_sgformer_gat(key, in_ch, hidden, out_ch, out_pad, num_layers, num_heads):
    dk = hidden // num_heads
    bf16 = jnp.bfloat16
    keys = jax.random.split(key, 2 + 4 * num_layers)
    p = {}

    w, b = _linear_params(keys[0], in_ch, hidden)                    # fcs[0]
    p["fc0_w"], p["fc0_b"] = w.astype(bf16), b
    p["ln0_g"] = jnp.ones((1, hidden), jnp.float32)                  # bns[0]
    p["ln0_b"] = jnp.zeros((1, hidden), jnp.float32)

    wv_out, bv_out, wq, bq, wk, bk, wva, bva = ([] for _ in range(8))
    for i in range(num_layers):
        k0, k1, k2, k3 = keys[2 + 4 * i: 6 + 4 * i]
        w, b = _linear_params(k0, hidden, hidden)                    # TransConvLayerGAT.Wv
        wv_out.append(w)
        bv_out.append(b.reshape(1, 1, hidden))
        w, b = _linear_params(k1, hidden, num_heads * dk)            # GATAttention.Wq
        wq.append(w.reshape(hidden, num_heads, dk).transpose(1, 0, 2))
        bq.append(b.reshape(num_heads, 1, dk))
        w, b = _linear_params(k2, hidden, num_heads * dk)            # GATAttention.Wk
        wk.append(w.reshape(hidden, num_heads, dk).transpose(1, 0, 2))
        bk.append(b.reshape(num_heads, 1, dk))
        w, b = _linear_params(k3, hidden, num_heads * hidden)        # GATAttention.Wv
        wva.append(w.reshape(hidden, num_heads, hidden).transpose(1, 0, 2))
        bva.append(b.reshape(num_heads, 1, hidden))

    p["wv_out"] = jnp.stack(wv_out, axis=0).astype(bf16)             # [L, D, D]
    p["bv_out"] = jnp.concatenate(bv_out, axis=0)                    # [L, 1, D]
    p["wq"] = jnp.concatenate(wq, axis=0).astype(bf16)               # [L*H, D, dk]
    p["bq"] = jnp.concatenate(bq, axis=0)                            # [L*H, 1, dk]
    p["wk"] = jnp.concatenate(wk, axis=0).astype(bf16)               # [L*H, D, dk]
    p["bk"] = jnp.concatenate(bk, axis=0)                            # [L*H, 1, dk]
    p["wv_attn"] = jnp.concatenate(wva, axis=0).astype(bf16)         # [L*H, D, D]
    p["bv_attn"] = jnp.concatenate(bva, axis=0)                      # [L*H, 1, D]
    p["ln_g"] = jnp.ones((num_layers, 1, hidden), jnp.float32)       # bns[1..L]
    p["ln_b"] = jnp.zeros((num_layers, 1, hidden), jnp.float32)

    w, b = _linear_params(keys[1], hidden, out_ch)                   # final fc
    wp = jnp.zeros((hidden, out_pad), jnp.float32).at[:, :out_ch].set(w)
    bp = jnp.zeros((1, out_pad), jnp.float32).at[:, :out_ch].set(b)
    p["fc_w"], p["fc_b"] = wp.astype(bf16), bp                       # lane-dense padded
    return p, dk


if __name__ == "__main__":
    N, IN_CH, HIDDEN, OUT_CH = 16, 16, 32, 8
    NUM_LAYERS, NUM_HEADS, ALPHA = 2, 4, 0.5
    OUT_PAD = 128  # lane-dense final store; sliced back to OUT_CH outside

    key = jax.random.PRNGKey(0)
    k_params, k_x = jax.random.split(key)
    params, dk = init_sgformer_gat(k_params, IN_CH, HIDDEN, OUT_CH, OUT_PAD,
                                   NUM_LAYERS, NUM_HEADS)
    x = jax.random.normal(k_x, (N, IN_CH), jnp.float32)  # data.graph['node_feat']

    fwd = jax.jit(functools.partial(
        sgformer_gat_forward, num_layers=NUM_LAYERS, num_heads=NUM_HEADS,
        dk=dk, hidden=HIDDEN, out_ch=OUT_CH, out_pad=OUT_PAD, alpha=ALPHA))

    out = fwd(params, x)
    jax.block_until_ready(out)
    assert out.shape == (N, OUT_CH)
    assert bool(jnp.isfinite(out).all())
    print("KERNEL_OK")
</pallas_src>

<mosaic_0001>
module attributes {stable_mosaic.version = 11 : i64} {
  func.func @_sgformer_kernel(%arg0: memref<16x16xf32, #tpu.memory_space<vmem>>, %arg1: memref<16x32xbf16, #tpu.memory_space<vmem>>, %arg2: memref<1x32xf32, #tpu.memory_space<vmem>>, %arg3: memref<1x32xf32, #tpu.memory_space<vmem>>, %arg4: memref<1x32xf32, #tpu.memory_space<vmem>>, %arg5: memref<2x32x32xbf16, #tpu.memory_space<vmem>>, %arg6: memref<2x1x32xf32, #tpu.memory_space<vmem>>, %arg7: memref<8x32x8xbf16, #tpu.memory_space<vmem>>, %arg8: memref<8x1x8xf32, #tpu.memory_space<vmem>>, %arg9: memref<8x32x8xbf16, #tpu.memory_space<vmem>>, %arg10: memref<8x1x8xf32, #tpu.memory_space<vmem>>, %arg11: memref<8x32x32xbf16, #tpu.memory_space<vmem>>, %arg12: memref<8x1x32xf32, #tpu.memory_space<vmem>>, %arg13: memref<2x1x32xf32, #tpu.memory_space<vmem>>, %arg14: memref<2x1x32xf32, #tpu.memory_space<vmem>>, %arg15: memref<32x128xbf16, #tpu.memory_space<vmem>>, %arg16: memref<1x128xf32, #tpu.memory_space<vmem>>, %arg17: memref<16x128xf32, #tpu.memory_space<vmem>>, %arg18: memref<4x16x16xf32, #tpu.memory_space<vmem>>) attributes {dimension_semantics = [], scalar_prefetch = 0 : i64, scratch_operands = 1 : i64, tpu.core_type = #tpu.core_type<tc>} {
    %c0 = arith.constant 0 : index
    %c0_0 = arith.constant 0 : index
    %0 = vector.load %arg0[%c0, %c0_0] : memref<16x16xf32, #tpu.memory_space<vmem>>, vector<16x16xf32>
    %1 = arith.truncf %0 : vector<16x16xf32> to vector<16x16xbf16>
    %c0_1 = arith.constant 0 : index
    %c0_2 = arith.constant 0 : index
    %2 = vector.load %arg1[%c0_1, %c0_2] : memref<16x32xbf16, #tpu.memory_space<vmem>>, vector<16x32xbf16>
    %cst = arith.constant dense<0.000000e+00> : vector<16x32xf32>
    %3 = tpu.matmul %1, %2, %cst {dimension_numbers = #tpu.dot_dimension_numbers<[1], [0], [0], [1], [0, 0, 1, 1], [], []>} : vector<16x16xbf16>, vector<16x32xbf16>, vector<16x32xf32> -> vector<16x32xf32>
    %c0_3 = arith.constant 0 : index
    %c0_4 = arith.constant 0 : index
    %4 = vector.load %arg2[%c0_3, %c0_4] : memref<1x32xf32, #tpu.memory_space<vmem>>, vector<1x32xf32>
    %5 = vector.broadcast %4 : vector<1x32xf32> to vector<16x32xf32>
    %6 = arith.addf %3, %5 : vector<16x32xf32>
    %c0_5 = arith.constant 0 : index
    %c0_6 = arith.constant 0 : index
    %7 = vector.load %arg3[%c0_5, %c0_6] : memref<1x32xf32, #tpu.memory_space<vmem>>, vector<1x32xf32>
    %c0_7 = arith.constant 0 : index
    %c0_8 = arith.constant 0 : index
    %8 = vector.load %arg4[%c0_7, %c0_8] : memref<1x32xf32, #tpu.memory_space<vmem>>, vector<1x32xf32>
    %cst_9 = arith.constant dense<0.000000e+00> : vector<16xf32>
    %9 = vector.multi_reduction <add>, %6, %cst_9 [1] : vector<16x32xf32> to vector<16xf32>
    %10 = vector.shape_cast %9 : vector<16xf32> to vector<16x1xf32>
    %cst_10 = arith.constant 3.200000e+01 : f32
    %11 = vector.broadcast %cst_10 : f32 to vector<16x1xf32>
    %12 = arith.divf %10, %11 : vector<16x1xf32>
    %13 = vector.broadcast %12 : vector<16x1xf32> to vector<16x32xf32>
    %14 = arith.subf %6, %13 : vector<16x32xf32>
    %15 = arith.mulf %14, %14 : vector<16x32xf32>
    %cst_11 = arith.constant dense<0.000000e+00> : vector<16xf32>
    %16 = vector.multi_reduction <add>, %15, %cst_11 [1] : vector<16x32xf32> to vector<16xf32>
    %17 = vector.shape_cast %16 : vector<16xf32> to vector<16x1xf32>
    %cst_12 = arith.constant 3.200000e+01 : f32
    %18 = vector.broadcast %cst_12 : f32 to vector<16x1xf32>
    %19 = arith.divf %17, %18 : vector<16x1xf32>
    %20 = vector.broadcast %12 : vector<16x1xf32> to vector<16x32xf32>
    %21 = arith.subf %6, %20 : vector<16x32xf32>
    %cst_13 = arith.constant 9.99999974E-6 : f32
    %22 = vector.broadcast %cst_13 : f32 to vector<16x1xf32>
    %23 = arith.addf %19, %22 : vector<16x1xf32>
    %24 = math.rsqrt %23 : vector<16x1xf32>
    %25 = vector.broadcast %24 : vector<16x1xf32> to vector<16x32xf32>
    %26 = arith.mulf %21, %25 : vector<16x32xf32>
    %27 = vector.broadcast %7 : vector<1x32xf32> to vector<16x32xf32>
    %28 = arith.mulf %26, %27 : vector<16x32xf32>
    %29 = vector.broadcast %8 : vector<1x32xf32> to vector<16x32xf32>
    %30 = arith.addf %28, %29 : vector<16x32xf32>
    %cst_14 = arith.constant 0.000000e+00 : f32
    %31 = vector.broadcast %cst_14 : f32 to vector<16x32xf32>
    %32 = arith.maximumf %30, %31 : vector<16x32xf32>
    %33 = arith.truncf %32 : vector<16x32xf32> to vector<16x32xbf16>
    %c0_15 = arith.constant 0 : index
    %c0_16 = arith.constant 0 : index
    %c0_17 = arith.constant 0 : index
    %34 = vector.load %arg5[%c0_15, %c0_16, %c0_17] : memref<2x32x32xbf16, #tpu.memory_space<vmem>>, vector<1x32x32xbf16>
    %35 = vector.shape_cast %34 : vector<1x32x32xbf16> to vector<32x32xbf16>
    %cst_18 = arith.constant dense<0.000000e+00> : vector<16x32xf32>
    %36 = tpu.matmul %33, %35, %cst_18 {dimension_numbers = #tpu.dot_dimension_numbers<[1], [0], [0], [1], [0, 0, 1, 1], [], []>} : vector<16x32xbf16>, vector<32x32xbf16>, vector<16x32xf32> -> vector<16x32xf32>
    %c0_19 = arith.constant 0 : index
    %c0_20 = arith.constant 0 : index
    %c0_21 = arith.constant 0 : index
    %37 = vector.load %arg6[%c0_19, %c0_20, %c0_21] : memref<2x1x32xf32, #tpu.memory_space<vmem>>, vector<1x1x32xf32>
    %38 = vector.shape_cast %37 : vector<1x1x32xf32> to vector<1x32xf32>
    %39 = vector.broadcast %38 : vector<1x32xf32> to vector<16x32xf32>
    %40 = arith.addf %36, %39 : vector<16x32xf32>
    %41 = arith.truncf %40 : vector<16x32xf32> to vector<16x32xbf16>
    %c0_22 = arith.constant 0 : index
    %c0_23 = arith.constant 0 : index
    %c0_24 = arith.constant 0 : index
    %42 = vector.load %arg7[%c0_22, %c0_23, %c0_24] : memref<8x32x8xbf16, #tpu.memory_space<vmem>>, vector<1x32x8xbf16>
    %43 = vector.shape_cast %42 : vector<1x32x8xbf16> to vector<32x8xbf16>
    %cst_25 = arith.constant dense<0.000000e+00> : vector<16x8xf32>
    %44 = tpu.matmul %33, %43, %cst_25 {dimension_numbers = #tpu.dot_dimension_numbers<[1], [0], [0], [1], [0, 0, 1, 1], [], []>} : vector<16x32xbf16>, vector<32x8xbf16>, vector<16x8xf32> -> vector<16x8xf32>
    %c0_26 = arith.constant 0 : index
    %c0_27 = arith.constant 0 : index
    %c0_28 = arith.constant 0 : index
    %45 = vector.load %arg8[%c0_26, %c0_27, %c0_28] : memref<8x1x8xf32, #tpu.memory_space<vmem>>, vector<1x1x8xf32>
    %46 = vector.shape_cast %45 : vector<1x1x8xf32> to vector<1x8xf32>
    %47 = vector.broadcast %46 : vector<1x8xf32> to vector<16x8xf32>
    %48 = arith.addf %44, %47 : vector<16x8xf32>
    %cst_29 = arith.constant 0.353553385 : f32
    %49 = vector.broadcast %cst_29 : f32 to vector<16x8xf32>
    %50 = arith.mulf %48, %49 : vector<16x8xf32>
    %c0_30 = arith.constant 0 : index
    %c0_31 = arith.constant 0 : index
    %c0_32 = arith.constant 0 : index
    %51 = vector.load %arg9[%c0_30, %c0_31, %c0_32] : memref<8x32x8xbf16, #tpu.memory_space<vmem>>, vector<1x32x8xbf16>
    %52 = vector.shape_cast %51 : vector<1x32x8xbf16> to vector<32x8xbf16>
    %cst_33 = arith.constant dense<0.000000e+00> : vector<16x8xf32>
    %53 = tpu.matmul %33, %52, %cst_33 {dimension_numbers = #tpu.dot_dimension_numbers<[1], [0], [0], [1], [0, 0, 1, 1], [], []>} : vector<16x32xbf16>, vector<32x8xbf16>, vector<16x8xf32> -> vector<16x8xf32>
    %c0_34 = arith.constant 0 : index
    %c0_35 = arith.constant 0 : index
    %c0_36 = arith.constant 0 : index
    %54 = vector.load %arg10[%c0_34, %c0_35, %c0_36] : memref<8x1x8xf32, #tpu.memory_space<vmem>>, vector<1x1x8xf32>
    %55 = vector.shape_cast %54 : vector<1x1x8xf32> to vector<1x8xf32>
    %56 = vector.broadcast %55 : vector<1x8xf32> to vector<16x8xf32>
    %57 = arith.addf %53, %56 : vector<16x8xf32>
    %58 = arith.truncf %50 : vector<16x8xf32> to vector<16x8xbf16>
    %59 = arith.truncf %57 : vector<16x8xf32> to vector<16x8xbf16>
    %cst_37 = arith.constant dense<0.000000e+00> : vector<16x16xf32>
    %60 = tpu.matmul %58, %59, %cst_37 {dimension_numbers = #tpu.dot_dimension_numbers<[1], [1], [0], [0], [0, 0, 1, 0], [], []>} : vector<16x8xbf16>, vector<16x8xbf16>, vector<16x16xf32> -> vector<16x16xf32>
    %c0_38 = arith.constant 0 : index
    %c0_39 = arith.constant 0 : index
    %c0_40 = arith.constant 0 : index
    %61 = vector.load %arg18[%c0_38, %c0_39, %c0_40] : memref<4x16x16xf32, #tpu.memory_space<vmem>>, vector<1x16x16xf32>
    %62 = vector.shape_cast %61 : vector<1x16x16xf32> to vector<16x16xf32>
    %63 = vector.shape_cast %60 : vector<16x16xf32> to vector<1x16x16xf32>
    tpu.vector_store %arg18[%c0_38, %c0_39, %c0_40], %63 {strides = array<i32>} : memref<4x16x16xf32, #tpu.memory_space<vmem>>, vector<1x16x16xf32>,
    %c1 = arith.constant 1 : index
    %c0_41 = arith.constant 0 : index
    %c0_42 = arith.constant 0 : index
    %64 = vector.load %arg7[%c1, %c0_41, %c0_42] : memref<8x32x8xbf16, #tpu.memory_space<vmem>>, vector<1x32x8xbf16>
    %65 = vector.shape_cast %64 : vector<1x32x8xbf16> to vector<32x8xbf16>
    %cst_43 = arith.constant dense<0.000000e+00> : vector<16x8xf32>
    %66 = tpu.matmul %33, %65, %cst_43 {dimension_numbers = #tpu.dot_dimension_numbers<[1], [0], [0], [1], [0, 0, 1, 1], [], []>} : vector<16x32xbf16>, vector<32x8xbf16>, vector<16x8xf32> -> vector<16x8xf32>
    %c1_44 = arith.constant 1 : index
    %c0_45 = arith.constant 0 : index
    %c0_46 = arith.constant 0 : index
    %67 = vector.load %arg8[%c1_44, %c0_45, %c0_46] : memref<8x1x8xf32, #tpu.memory_space<vmem>>, vector<1x1x8xf32>
    %68 = vector.shape_cast %67 : vector<1x1x8xf32> to vector<1x8xf32>
    %69 = vector.broadcast %68 : vector<1x8xf32> to vector<16x8xf32>
    %70 = arith.addf %66, %69 : vector<16x8xf32>
    %cst_47 = arith.constant 0.353553385 : f32
    %71 = vector.broadcast %cst_47 : f32 to vector<16x8xf32>
    %72 = arith.mulf %70, %71 : vector<16x8xf32>
    %c1_48 = arith.constant 1 : index
    %c0_49 = arith.constant 0 : index
    %c0_50 = arith.constant 0 : index
    %73 = vector.load %arg9[%c1_48, %c0_49, %c0_50] : memref<8x32x8xbf16, #tpu.memory_space<vmem>>, vector<1x32x8xbf16>
    %74 = vector.shape_cast %73 : vector<1x32x8xbf16> to vector<32x8xbf16>
    %cst_51 = arith.constant dense<0.000000e+00> : vector<16x8xf32>
    %75 = tpu.matmul %33, %74, %cst_51 {dimension_numbers = #tpu.dot_dimension_numbers<[1], [0], [0], [1], [0, 0, 1, 1], [], []>} : vector<16x32xbf16>, vector<32x8xbf16>, vector<16x8xf32> -> vector<16x8xf32>
    %c1_52 = arith.constant 1 : index
    %c0_53 = arith.constant 0 : index
    %c0_54 = arith.constant 0 : index
    %76 = vector.load %arg10[%c1_52, %c0_53, %c0_54] : memref<8x1x8xf32, #tpu.memory_space<vmem>>, vector<1x1x8xf32>
    %77 = vector.shape_cast %76 : vector<1x1x8xf32> to vector<1x8xf32>
    %78 = vector.broadcast %77 : vector<1x8xf32> to vector<16x8xf32>
    %79 = arith.addf %75, %78 : vector<16x8xf32>
    %80 = arith.truncf %72 : vector<16x8xf32> to vector<16x8xbf16>
    %81 = arith.truncf %79 : vector<16x8xf32> to vector<16x8xbf16>
    %cst_55 = arith.constant dense<0.000000e+00> : vector<16x16xf32>
    %82 = tpu.matmul %80, %81, %cst_55 {dimension_numbers = #tpu.dot_dimension_numbers<[1], [1], [0], [0], [0, 0, 1, 0], [], []>} : vector<16x8xbf16>, vector<16x8xbf16>, vector<16x16xf32> -> vector<16x16xf32>
    %c1_56 = arith.constant 1 : index
    %c0_57 = arith.constant 0 : index
    %c0_58 = arith.constant 0 : index
    %83 = vector.load %arg18[%c1_56, %c0_57, %c0_58] : memref<4x16x16xf32, #tpu.memory_space<vmem>>, vector<1x16x16xf32>
    %84 = vector.shape_cast %83 : vector<1x16x16xf32> to vector<16x16xf32>
    %85 = vector.shape_cast %82 : vector<16x16xf32> to vector<1x16x16xf32>
    tpu.vector_store %arg18[%c1_56, %c0_57, %c0_58], %85 {strides = array<i32>} : memref<4x16x16xf32, #tpu.memory_space<vmem>>, vector<1x16x16xf32>,
    %c2 = arith.constant 2 : index
    %c0_59 = arith.constant 0 : index
    %c0_60 = arith.constant 0 : index
    %86 = vector.load %arg7[%c2, %c0_59, %c0_60] : memref<8x32x8xbf16, #tpu.memory_space<vmem>>, vector<1x32x8xbf16>
    %87 = vector.shape_cast %86 : vector<1x32x8xbf16> to vector<32x8xbf16>
    %cst_61 = arith.constant dense<0.000000e+00> : vector<16x8xf32>
    %88 = tpu.matmul %33, %87, %cst_61 {dimension_numbers = #tpu.dot_dimension_numbers<[1], [0], [0], [1], [0, 0, 1, 1], [], []>} : vector<16x32xbf16>, vector<32x8xbf16>, vector<16x8xf32> -> vector<16x8xf32>
    %c2_62 = arith.constant 2 : index
    %c0_63 = arith.constant 0 : index
    %c0_64 = arith.constant 0 : index
    %89 = vector.load %arg8[%c2_62, %c0_63, %c0_64] : memref<8x1x8xf32, #tpu.memory_space<vmem>>, vector<1x1x8xf32>
    %90 = vector.shape_cast %89 : vector<1x1x8xf32> to vector<1x8xf32>
    %91 = vector.broadcast %90 : vector<1x8xf32> to vector<16x8xf32>
    %92 = arith.addf %88, %91 : vector<16x8xf32>
    %cst_65 = arith.constant 0.353553385 : f32
    %93 = vector.broadcast %cst_65 : f32 to vector<16x8xf32>
    %94 = arith.mulf %92, %93 : vector<16x8xf32>
    %c2_66 = arith.constant 2 : index
    %c0_67 = arith.constant 0 : index
    %c0_68 = arith.constant 0 : index
    %95 = vector.load %arg9[%c2_66, %c0_67, %c0_68] : memref<8x32x8xbf16, #tpu.memory_space<vmem>>, vector<1x32x8xbf16>
    %96 = vector.shape_cast %95 : vector<1x32x8xbf16> to vector<32x8xbf16>
    %cst_69 = arith.constant dense<0.000000e+00> : vector<16x8xf32>
    %97 = tpu.matmul %33, %96, %cst_69 {dimension_numbers = #tpu.dot_dimension_numbers<[1], [0], [0], [1], [0, 0, 1, 1], [], []>} : vector<16x32xbf16>, vector<32x8xbf16>, vector<16x8xf32> -> vector<16x8xf32>
    %c2_70 = arith.constant 2 : index
    %c0_71 = arith.constant 0 : index
    %c0_72 = arith.constant 0 : index
    %98 = vector.load %arg10[%c2_70, %c0_71, %c0_72] : memref<8x1x8xf32, #tpu.memory_space<vmem>>, vector<1x1x8xf32>
    %99 = vector.shape_cast %98 : vector<1x1x8xf32> to vector<1x8xf32>
    %100 = vector.broadcast %99 : vector<1x8xf32> to vector<16x8xf32>
    %101 = arith.addf %97, %100 : vector<16x8xf32>
    %102 = arith.truncf %94 : vector<16x8xf32> to vector<16x8xbf16>
    %103 = arith.truncf %101 : vector<16x8xf32> to vector<16x8xbf16>
    %cst_73 = arith.constant dense<0.000000e+00> : vector<16x16xf32>
    %104 = tpu.matmul %102, %103, %cst_73 {dimension_numbers = #tpu.dot_dimension_numbers<[1], [1], [0], [0], [0, 0, 1, 0], [], []>} : vector<16x8xbf16>, vector<16x8xbf16>, vector<16x16xf32> -> vector<16x16xf32>
    %c2_74 = arith.constant 2 : index
    %c0_75 = arith.constant 0 : index
    %c0_76 = arith.constant 0 : index
    %105 = vector.load %arg18[%c2_74, %c0_75, %c0_76] : memref<4x16x16xf32, #tpu.memory_space<vmem>>, vector<1x16x16xf32>
    %106 = vector.shape_cast %105 : vector<1x16x16xf32> to vector<16x16xf32>
    %107 = vector.shape_cast %104 : vector<16x16xf32> to vector<1x16x16xf32>
    tpu.vector_store %arg18[%c2_74, %c0_75, %c0_76], %107 {strides = array<i32>} : memref<4x16x16xf32, #tpu.memory_space<vmem>>, vector<1x16x16xf32>,
    %c3 = arith.constant 3 : index
    %c0_77 = arith.constant 0 : index
    %c0_78 = arith.constant 0 : index
    %108 = vector.load %arg7[%c3, %c0_77, %c0_78] : memref<8x32x8xbf16, #tpu.memory_space<vmem>>, vector<1x32x8xbf16>
    %109 = vector.shape_cast %108 : vector<1x32x8xbf16> to vector<32x8xbf16>
    %cst_79 = arith.constant dense<0.000000e+00> : vector<16x8xf32>
    %110 = tpu.matmul %33, %109, %cst_79 {dimension_numbers = #tpu.dot_dimension_numbers<[1], [0], [0], [1], [0, 0, 1, 1], [], []>} : vector<16x32xbf16>, vector<32x8xbf16>, vector<16x8xf32> -> vector<16x8xf32>
    %c3_80 = arith.constant 3 : index
    %c0_81 = arith.constant 0 : index
    %c0_82 = arith.constant 0 : index
    %111 = vector.load %arg8[%c3_80, %c0_81, %c0_82] : memref<8x1x8xf32, #tpu.memory_space<vmem>>, vector<1x1x8xf32>
    %112 = vector.shape_cast %111 : vector<1x1x8xf32> to vector<1x8xf32>
    %113 = vector.broadcast %112 : vector<1x8xf32> to vector<16x8xf32>
    %114 = arith.addf %110, %113 : vector<16x8xf32>
    %cst_83 = arith.constant 0.353553385 : f32
    %115 = vector.broadcast %cst_83 : f32 to vector<16x8xf32>
    %116 = arith.mulf %114, %115 : vector<16x8xf32>
    %c3_84 = arith.constant 3 : index
    %c0_85 = arith.constant 0 : index
    %c0_86 = arith.constant 0 : index
    %117 = vector.load %arg9[%c3_84, %c0_85, %c0_86] : memref<8x32x8xbf16, #tpu.memory_space<vmem>>, vector<1x32x8xbf16>
    %118 = vector.shape_cast %117 : vector<1x32x8xbf16> to vector<32x8xbf16>
    %cst_87 = arith.constant dense<0.000000e+00> : vector<16x8xf32>
    %119 = tpu.matmul %33, %118, %cst_87 {dimension_numbers = #tpu.dot_dimension_numbers<[1], [0], [0], [1], [0, 0, 1, 1], [], []>} : vector<16x32xbf16>, vector<32x8xbf16>, vector<16x8xf32> -> vector<16x8xf32>
    %c3_88 = arith.constant 3 : index
    %c0_89 = arith.constant 0 : index
    %c0_90 = arith.constant 0 : index
    %120 = vector.load %arg10[%c3_88, %c0_89, %c0_90] : memref<8x1x8xf32, #tpu.memory_space<vmem>>, vector<1x1x8xf32>
    %121 = vector.shape_cast %120 : vector<1x1x8xf32> to vector<1x8xf32>
    %122 = vector.broadcast %121 : vector<1x8xf32> to vector<16x8xf32>
    %123 = arith.addf %119, %122 : vector<16x8xf32>
    %124 = arith.truncf %116 : vector<16x8xf32> to vector<16x8xbf16>
    %125 = arith.truncf %123 : vector<16x8xf32> to vector<16x8xbf16>
    %cst_91 = arith.constant dense<0.000000e+00> : vector<16x16xf32>
    %126 = tpu.matmul %124, %125, %cst_91 {dimension_numbers = #tpu.dot_dimension_numbers<[1], [1], [0], [0], [0, 0, 1, 0], [], []>} : vector<16x8xbf16>, vector<16x8xbf16>, vector<16x16xf32> -> vector<16x16xf32>
    %c3_92 = arith.constant 3 : index
    %c0_93 = arith.constant 0 : index
    %c0_94 = arith.constant 0 : index
    %127 = vector.load %arg18[%c3_92, %c0_93, %c0_94] : memref<4x16x16xf32, #tpu.memory_space<vmem>>, vector<1x16x16xf32>
    %128 = vector.shape_cast %127 : vector<1x16x16xf32> to vector<16x16xf32>
    %129 = vector.shape_cast %126 : vector<16x16xf32> to vector<1x16x16xf32>
    tpu.vector_store %arg18[%c3_92, %c0_93, %c0_94], %129 {strides = array<i32>} : memref<4x16x16xf32, #tpu.memory_space<vmem>>, vector<1x16x16xf32>,
    %c0_95 = arith.constant 0 : index
    %c0_96 = arith.constant 0 : index
    %c0_97 = arith.constant 0 : index
    %130 = vector.load %arg18[%c0_95, %c0_96, %c0_97] : memref<4x16x16xf32, #tpu.memory_space<vmem>>, vector<4x16x16xf32>
    %cst_98 = arith.constant dense<0xFF800000> : vector<16x16xf32>
    %131 = vector.multi_reduction <maximumf>, %130, %cst_98 [0] : vector<4x16x16xf32> to vector<16x16xf32>
    %132 = vector.shape_cast %131 : vector<16x16xf32> to vector<1x16x16xf32>
    %133 = vector.broadcast %132 : vector<1x16x16xf32> to vector<4x16x16xf32>
    %134 = arith.subf %130, %133 : vector<4x16x16xf32>
    %135 = math.exp %134 : vector<4x16x16xf32>
    %cst_99 = arith.constant dense<0.000000e+00> : vector<16x16xf32>
    %136 = vector.multi_reduction <add>, %135, %cst_99 [0] : vector<4x16x16xf32> to vector<16x16xf32>
    %137 = vector.shape_cast %136 : vector<16x16xf32> to vector<1x16x16xf32>
    %138 = tpu.reciprocal %137 {approx = true} : vector<1x16x16xf32> -> vector<1x16x16xf32>
    %139 = vector.broadcast %138 : vector<1x16x16xf32> to vector<4x16x16xf32>
    %140 = arith.mulf %135, %139 : vector<4x16x16xf32>
    %cst_100 = arith.constant 0.000000e+00 : f32
    %141 = vector.broadcast %cst_100 : f32 to vector<16x32xf32>
    %c0_101 = arith.constant 0 : index
    %c0_102 = arith.constant 0 : index
    %c0_103 = arith.constant 0 : index
    %142 = vector.load %arg11[%c0_101, %c0_102, %c0_103] : memref<8x32x32xbf16, #tpu.memory_space<vmem>>, vector<1x32x32xbf16>
    %143 = vector.shape_cast %142 : vector<1x32x32xbf16> to vector<32x32xbf16>
    %cst_104 = arith.constant dense<0.000000e+00> : vector<16x32xf32>
    %144 = tpu.matmul %41, %143, %cst_104 {dimension_numbers = #tpu.dot_dimension_numbers<[1], [0], [0], [1], [0, 0, 1, 1], [], []>} : vector<16x32xbf16>, vector<32x32xbf16>, vector<16x32xf32> -> vector<16x32xf32>
    %c0_105 = arith.constant 0 : index
    %c0_106 = arith.constant 0 : index
    %c0_107 = arith.constant 0 : index
    %145 = vector.load %arg12[%c0_105, %c0_106, %c0_107] : memref<8x1x32xf32, #tpu.memory_space<vmem>>, vector<1x1x32xf32>
    %146 = vector.shape_cast %145 : vector<1x1x32xf32> to vector<1x32xf32>
    %147 = vector.broadcast %146 : vector<1x32xf32> to vector<16x32xf32>
    %148 = arith.addf %144, %147 : vector<16x32xf32>
    %149 = vector.extract_strided_slice %140 {offsets = [0, 0, 0], sizes = [1, 16, 16], strides = [1, 1, 1]} : vector<4x16x16xf32> to vector<1x16x16xf32>
    %150 = vector.shape_cast %149 : vector<1x16x16xf32> to vector<16x16xf32>
    %151 = arith.truncf %150 : vector<16x16xf32> to vector<16x16xbf16>
    %152 = arith.truncf %148 : vector<16x32xf32> to vector<16x32xbf16>
    %cst_108 = arith.constant dense<0.000000e+00> : vector<16x32xf32>
    %153 = tpu.matmul %151, %152, %cst_108 {dimension_numbers = #tpu.dot_dimension_numbers<[1], [0], [0], [1], [0, 0, 1, 1], [], []>} : vector<16x16xbf16>, vector<16x32xbf16>, vector<16x32xf32> -> vector<16x32xf32>
    %154 = arith.addf %141, %153 : vector<16x32xf32>
    %c1_109 = arith.constant 1 : index
    %c0_110 = arith.constant 0 : index
    %c0_111 = arith.constant 0 : index
    %155 = vector.load %arg11[%c1_109, %c0_110, %c0_111] : memref<8x32x32xbf16, #tpu.memory_space<vmem>>, vector<1x32x32xbf16>
    %156 = vector.shape_cast %155 : vector<1x32x32xbf16> to vector<32x32xbf16>
    %cst_112 = arith.constant dense<0.000000e+00> : vector<16x32xf32>
    %157 = tpu.matmul %41, %156, %cst_112 {dimension_numbers = #tpu.dot_dimension_numbers<[1], [0], [0], [1], [0, 0, 1, 1], [], []>} : vector<16x32xbf16>, vector<32x32xbf16>, vector<16x32xf32> -> vector<16x32xf32>
    %c1_113 = arith.constant 1 : index
    %c0_114 = arith.constant 0 : index
    %c0_115 = arith.constant 0 : index
    %158 = vector.load %arg12[%c1_113, %c0_114, %c0_115] : memref<8x1x32xf32, #tpu.memory_space<vmem>>, vector<1x1x32xf32>
    %159 = vector.shape_cast %158 : vector<1x1x32xf32> to vector<1x32xf32>
    %160 = vector.broadcast %159 : vector<1x32xf32> to vector<16x32xf32>
    %161 = arith.addf %157, %160 : vector<16x32xf32>
    %162 = vector.extract_strided_slice %140 {offsets = [1, 0, 0], sizes = [1, 16, 16], strides = [1, 1, 1]} : vector<4x16x16xf32> to vector<1x16x16xf32>
    %163 = vector.shape_cast %162 : vector<1x16x16xf32> to vector<16x16xf32>
    %164 = arith.truncf %163 : vector<16x16xf32> to vector<16x16xbf16>
    %165 = arith.truncf %161 : vector<16x32xf32> to vector<16x32xbf16>
    %cst_116 = arith.constant dense<0.000000e+00> : vector<16x32xf32>
    %166 = tpu.matmul %164, %165, %cst_116 {dimension_numbers = #tpu.dot_dimension_numbers<[1], [0], [0], [1], [0, 0, 1, 1], [], []>} : vector<16x16xbf16>, vector<16x32xbf16>, vector<16x32xf32> -> vector<16x32xf32>
    %167 = arith.addf %154, %166 : vector<16x32xf32>
    %c2_117 = arith.constant 2 : index
    %c0_118 = arith.constant 0 : index
    %c0_119 = arith.constant 0 : index
    %168 = vector.load %arg11[%c2_117, %c0_118, %c0_119] : memref<8x32x32xbf16, #tpu.memory_space<vmem>>, vector<1x32x32xbf16>
    %169 = vector.shape_cast %168 : vector<1x32x32xbf16> to vector<32x32xbf16>
    %cst_120 = arith.constant dense<0.000000e+00> : vector<16x32xf32>
    %170 = tpu.matmul %41, %169, %cst_120 {dimension_numbers = #tpu.dot_dimension_numbers<[1], [0], [0], [1], [0, 0, 1, 1], [], []>} : vector<16x32xbf16>, vector<32x32xbf16>, vector<16x32xf32> -> vector<16x32xf32>
    %c2_121 = arith.constant 2 : index
    %c0_122 = arith.constant 0 : index
    %c0_123 = arith.constant 0 : index
    %171 = vector.load %arg12[%c2_121, %c0_122, %c0_123] : memref<8x1x32xf32, #tpu.memory_space<vmem>>, vector<1x1x32xf32>
    %172 = vector.shape_cast %171 : vector<1x1x32xf32> to vector<1x32xf32>
    %173 = vector.broadcast %172 : vector<1x32xf32> to vector<16x32xf32>
    %174 = arith.addf %170, %173 : vector<16x32xf32>
    %175 = vector.extract_strided_slice %140 {offsets = [2, 0, 0], sizes = [1, 16, 16], strides = [1, 1, 1]} : vector<4x16x16xf32> to vector<1x16x16xf32>
    %176 = vector.shape_cast %175 : vector<1x16x16xf32> to vector<16x16xf32>
    %177 = arith.truncf %176 : vector<16x16xf32> to vector<16x16xbf16>
    %178 = arith.truncf %174 : vector<16x32xf32> to vector<16x32xbf16>
    %cst_124 = arith.constant dense<0.000000e+00> : vector<16x32xf32>
    %179 = tpu.matmul %177, %178, %cst_124 {dimension_numbers = #tpu.dot_dimension_numbers<[1], [0], [0], [1], [0, 0, 1, 1], [], []>} : vector<16x16xbf16>, vector<16x32xbf16>, vector<16x32xf32> -> vector<16x32xf32>
    %180 = arith.addf %167, %179 : vector<16x32xf32>
    %c3_125 = arith.constant 3 : index
    %c0_126 = arith.constant 0 : index
    %c0_127 = arith.constant 0 : index
    %181 = vector.load %arg11[%c3_125, %c0_126, %c0_127] : memref<8x32x32xbf16, #tpu.memory_space<vmem>>, vector<1x32x32xbf16>
    %182 = vector.shape_cast %181 : vector<1x32x32xbf16> to vector<32x32xbf16>
    %cst_128 = arith.constant dense<0.000000e+00> : vector<16x32xf32>
    %183 = tpu.matmul %41, %182, %cst_128 {dimension_numbers = #tpu.dot_dimension_numbers<[1], [0], [0], [1], [0, 0, 1, 1], [], []>} : vector<16x32xbf16>, vector<32x32xbf16>, vector<16x32xf32> -> vector<16x32xf32>
    %c3_129 = arith.constant 3 : index
    %c0_130 = arith.constant 0 : index
    %c0_131 = arith.constant 0 : index
    %184 = vector.load %arg12[%c3_129, %c0_130, %c0_131] : memref<8x1x32xf32, #tpu.memory_space<vmem>>, vector<1x1x32xf32>
    %185 = vector.shape_cast %184 : vector<1x1x32xf32> to vector<1x32xf32>
    %186 = vector.broadcast %185 : vector<1x32xf32> to vector<16x32xf32>
    %187 = arith.addf %183, %186 : vector<16x32xf32>
    %188 = vector.extract_strided_slice %140 {offsets = [3, 0, 0], sizes = [1, 16, 16], strides = [1, 1, 1]} : vector<4x16x16xf32> to vector<1x16x16xf32>
    %189 = vector.shape_cast %188 : vector<1x16x16xf32> to vector<16x16xf32>
    %190 = arith.truncf %189 : vector<16x16xf32> to vector<16x16xbf16>
    %191 = arith.truncf %187 : vector<16x32xf32> to vector<16x32xbf16>
    %cst_132 = arith.constant dense<0.000000e+00> : vector<16x32xf32>
    %192 = tpu.matmul %190, %191, %cst_132 {dimension_numbers = #tpu.dot_dimension_numbers<[1], [0], [0], [1], [0, 0, 1, 1], [], []>} : vector<16x16xbf16>, vector<16x32xbf16>, vector<16x32xf32> -> vector<16x32xf32>
    %193 = arith.addf %180, %192 : vector<16x32xf32>
    %cst_133 = arith.constant 2.500000e-01 : f32
    %194 = vector.broadcast %cst_133 : f32 to vector<16x32xf32>
    %195 = arith.mulf %193, %194 : vector<16x32xf32>
    %cst_134 = arith.constant 5.000000e-01 : f32
    %196 = vector.broadcast %cst_134 : f32 to vector<16x32xf32>
    %197 = arith.mulf %196, %195 : vector<16x32xf32>
    %cst_135 = arith.constant 5.000000e-01 : f32
    %198 = vector.broadcast %cst_135 : f32 to vector<16x32xf32>
    %199 = arith.mulf %198, %32 : vector<16x32xf32>
    %200 = arith.addf %197, %199 : vector<16x32xf32>
    %c0_136 = arith.constant 0 : index
    %c0_137 = arith.constant 0 : index
    %c0_138 = arith.constant 0 : index
    %201 = vector.load %arg13[%c0_136, %c0_137, %c0_138] : memref<2x1x32xf32, #tpu.memory_space<vmem>>, vector<1x1x32xf32>
    %202 = vector.shape_cast %201 : vector<1x1x32xf32> to vector<1x32xf32>
    %c0_139 = arith.constant 0 : index
    %c0_140 = arith.constant 0 : index
    %c0_141 = arith.constant 0 : index
    %203 = vector.load %arg14[%c0_139, %c0_140, %c0_141] : memref<2x1x32xf32, #tpu.memory_space<vmem>>, vector<1x1x32xf32>
    %204 = vector.shape_cast %203 : vector<1x1x32xf32> to vector<1x32xf32>
    %cst_142 = arith.constant dense<0.000000e+00> : vector<16xf32>
    %205 = vector.multi_reduction <add>, %200, %cst_142 [1] : vector<16x32xf32> to vector<16xf32>
    %206 = vector.shape_cast %205 : vector<16xf32> to vector<16x1xf32>
    %cst_143 = arith.constant 3.200000e+01 : f32
    %207 = vector.broadcast %cst_143 : f32 to vector<16x1xf32>
    %208 = arith.divf %206, %207 : vector<16x1xf32>
    %209 = vector.broadcast %208 : vector<16x1xf32> to vector<16x32xf32>
    %210 = arith.subf %200, %209 : vector<16x32xf32>
    %211 = arith.mulf %210, %210 : vector<16x32xf32>
    %cst_144 = arith.constant dense<0.000000e+00> : vector<16xf32>
    %212 = vector.multi_reduction <add>, %211, %cst_144 [1] : vector<16x32xf32> to vector<16xf32>
    %213 = vector.shape_cast %212 : vector<16xf32> to vector<16x1xf32>
    %cst_145 = arith.constant 3.200000e+01 : f32
    %214 = vector.broadcast %cst_145 : f32 to vector<16x1xf32>
    %215 = arith.divf %213, %214 : vector<16x1xf32>
    %216 = vector.broadcast %208 : vector<16x1xf32> to vector<16x32xf32>
    %217 = arith.subf %200, %216 : vector<16x32xf32>
    %cst_146 = arith.constant 9.99999974E-6 : f32
    %218 = vector.broadcast %cst_146 : f32 to vector<16x1xf32>
    %219 = arith.addf %215, %218 : vector<16x1xf32>
    %220 = math.rsqrt %219 : vector<16x1xf32>
    %221 = vector.broadcast %220 : vector<16x1xf32> to vector<16x32xf32>
    %222 = arith.mulf %217, %221 : vector<16x32xf32>
    %223 = vector.broadcast %202 : vector<1x32xf32> to vector<16x32xf32>
    %224 = arith.mulf %222, %223 : vector<16x32xf32>
    %225 = vector.broadcast %204 : vector<1x32xf32> to vector<16x32xf32>
    %226 = arith.addf %224, %225 : vector<16x32xf32>
    %227 = arith.truncf %226 : vector<16x32xf32> to vector<16x32xbf16>
    %c1_147 = arith.constant 1 : index
    %c0_148 = arith.constant 0 : index
    %c0_149 = arith.constant 0 : index
    %228 = vector.load %arg5[%c1_147, %c0_148, %c0_149] : memref<2x32x32xbf16, #tpu.memory_space<vmem>>, vector<1x32x32xbf16>
    %229 = vector.shape_cast %228 : vector<1x32x32xbf16> to vector<32x32xbf16>
    %cst_150 = arith.constant dense<0.000000e+00> : vector<16x32xf32>
    %230 = tpu.matmul %227, %229, %cst_150 {dimension_numbers = #tpu.dot_dimension_numbers<[1], [0], [0], [1], [0, 0, 1, 1], [], []>} : vector<16x32xbf16>, vector<32x32xbf16>, vector<16x32xf32> -> vector<16x32xf32>
    %c1_151 = arith.constant 1 : index
    %c0_152 = arith.constant 0 : index
    %c0_153 = arith.constant 0 : index
    %231 = vector.load %arg6[%c1_151, %c0_152, %c0_153] : memref<2x1x32xf32, #tpu.memory_space<vmem>>, vector<1x1x32xf32>
    %232 = vector.shape_cast %231 : vector<1x1x32xf32> to vector<1x32xf32>
    %233 = vector.broadcast %232 : vector<1x32xf32> to vector<16x32xf32>
    %234 = arith.addf %230, %233 : vector<16x32xf32>
    %235 = arith.truncf %234 : vector<16x32xf32> to vector<16x32xbf16>
    %c4 = arith.constant 4 : index
    %c0_154 = arith.constant 0 : index
    %c0_155 = arith.constant 0 : index
    %236 = vector.load %arg7[%c4, %c0_154, %c0_155] : memref<8x32x8xbf16, #tpu.memory_space<vmem>>, vector<1x32x8xbf16>
    %237 = vector.shape_cast %236 : vector<1x32x8xbf16> to vector<32x8xbf16>
    %cst_156 = arith.constant dense<0.000000e+00> : vector<16x8xf32>
    %238 = tpu.matmul %227, %237, %cst_156 {dimension_numbers = #tpu.dot_dimension_numbers<[1], [0], [0], [1], [0, 0, 1, 1], [], []>} : vector<16x32xbf16>, vector<32x8xbf16>, vector<16x8xf32> -> vector<16x8xf32>
    %c4_157 = arith.constant 4 : index
    %c0_158 = arith.constant 0 : index
    %c0_159 = arith.constant 0 : index
    %239 = vector.load %arg8[%c4_157, %c0_158, %c0_159] : memref<8x1x8xf32, #tpu.memory_space<vmem>>, vector<1x1x8xf32>
    %240 = vector.shape_cast %239 : vector<1x1x8xf32> to vector<1x8xf32>
    %241 = vector.broadcast %240 : vector<1x8xf32> to vector<16x8xf32>
    %242 = arith.addf %238, %241 : vector<16x8xf32>
    %cst_160 = arith.constant 0.353553385 : f32
    %243 = vector.broadcast %cst_160 : f32 to vector<16x8xf32>
    %244 = arith.mulf %242, %243 : vector<16x8xf32>
    %c4_161 = arith.constant 4 : index
    %c0_162 = arith.constant 0 : index
    %c0_163 = arith.constant 0 : index
    %245 = vector.load %arg9[%c4_161, %c0_162, %c0_163] : memref<8x32x8xbf16, #tpu.memory_space<vmem>>, vector<1x32x8xbf16>
    %246 = vector.shape_cast %245 : vector<1x32x8xbf16> to vector<32x8xbf16>
    %cst_164 = arith.constant dense<0.000000e+00> : vector<16x8xf32>
    %247 = tpu.matmul %227, %246, %cst_164 {dimension_numbers = #tpu.dot_dimension_numbers<[1], [0], [0], [1], [0, 0, 1, 1], [], []>} : vector<16x32xbf16>, vector<32x8xbf16>, vector<16x8xf32> -> vector<16x8xf32>
    %c4_165 = arith.constant 4 : index
    %c0_166 = arith.constant 0 : index
    %c0_167 = arith.constant 0 : index
    %248 = vector.load %arg10[%c4_165, %c0_166, %c0_167] : memref<8x1x8xf32, #tpu.memory_space<vmem>>, vector<1x1x8xf32>
    %249 = vector.shape_cast %248 : vector<1x1x8xf32> to vector<1x8xf32>
    %250 = vector.broadcast %249 : vector<1x8xf32> to vector<16x8xf32>
    %251 = arith.addf %247, %250 : vector<16x8xf32>
    %252 = arith.truncf %244 : vector<16x8xf32> to vector<16x8xbf16>
    %253 = arith.truncf %251 : vector<16x8xf32> to vector<16x8xbf16>
    %cst_168 = arith.constant dense<0.000000e+00> : vector<16x16xf32>
    %254 = tpu.matmul %252, %253, %cst_168 {dimension_numbers = #tpu.dot_dimension_numbers<[1], [1], [0], [0], [0, 0, 1, 0], [], []>} : vector<16x8xbf16>, vector<16x8xbf16>, vector<16x16xf32> -> vector<16x16xf32>
    %c0_169 = arith.constant 0 : index
    %c0_170 = arith.constant 0 : index
    %c0_171 = arith.constant 0 : index
    %255 = vector.load %arg18[%c0_169, %c0_170, %c0_171] : memref<4x16x16xf32, #tpu.memory_space<vmem>>, vector<1x16x16xf32>
    %256 = vector.shape_cast %255 : vector<1x16x16xf32> to vector<16x16xf32>
    %257 = vector.shape_cast %254 : vector<16x16xf32> to vector<1x16x16xf32>
    tpu.vector_store %arg18[%c0_169, %c0_170, %c0_171], %257 {strides = array<i32>} : memref<4x16x16xf32, #tpu.memory_space<vmem>>, vector<1x16x16xf32>,
    %c5 = arith.constant 5 : index
    %c0_172 = arith.constant 0 : index
    %c0_173 = arith.constant 0 : index
    %258 = vector.load %arg7[%c5, %c0_172, %c0_173] : memref<8x32x8xbf16, #tpu.memory_space<vmem>>, vector<1x32x8xbf16>
    %259 = vector.shape_cast %258 : vector<1x32x8xbf16> to vector<32x8xbf16>
    %cst_174 = arith.constant dense<0.000000e+00> : vector<16x8xf32>
    %260 = tpu.matmul %227, %259, %cst_174 {dimension_numbers = #tpu.dot_dimension_numbers<[1], [0], [0], [1], [0, 0, 1, 1], [], []>} : vector<16x32xbf16>, vector<32x8xbf16>, vector<16x8xf32> -> vector<16x8xf32>
    %c5_175 = arith.constant 5 : index
    %c0_176 = arith.constant 0 : index
    %c0_177 = arith.constant 0 : index
    %261 = vector.load %arg8[%c5_175, %c0_176, %c0_177] : memref<8x1x8xf32, #tpu.memory_space<vmem>>, vector<1x1x8xf32>
    %262 = vector.shape_cast %261 : vector<1x1x8xf32> to vector<1x8xf32>
    %263 = vector.broadcast %262 : vector<1x8xf32> to vector<16x8xf32>
    %264 = arith.addf %260, %263 : vector<16x8xf32>
    %cst_178 = arith.constant 0.353553385 : f32
    %265 = vector.broadcast %cst_178 : f32 to vector<16x8xf32>
    %266 = arith.mulf %264, %265 : vector<16x8xf32>
    %c5_179 = arith.constant 5 : index
    %c0_180 = arith.constant 0 : index
    %c0_181 = arith.constant 0 : index
    %267 = vector.load %arg9[%c5_179, %c0_180, %c0_181] : memref<8x32x8xbf16, #tpu.memory_space<vmem>>, vector<1x32x8xbf16>
    %268 = vector.shape_cast %267 : vector<1x32x8xbf16> to vector<32x8xbf16>
    %cst_182 = arith.constant dense<0.000000e+00> : vector<16x8xf32>
    %269 = tpu.matmul %227, %268, %cst_182 {dimension_numbers = #tpu.dot_dimension_numbers<[1], [0], [0], [1], [0, 0, 1, 1], [], []>} : vector<16x32xbf16>, vector<32x8xbf16>, vector<16x8xf32> -> vector<16x8xf32>
    %c5_183 = arith.constant 5 : index
    %c0_184 = arith.constant 0 : index
    %c0_185 = arith.constant 0 : index
    %270 = vector.load %arg10[%c5_183, %c0_184, %c0_185] : memref<8x1x8xf32, #tpu.memory_space<vmem>>, vector<1x1x8xf32>
    %271 = vector.shape_cast %270 : vector<1x1x8xf32> to vector<1x8xf32>
    %272 = vector.broadcast %271 : vector<1x8xf32> to vector<16x8xf32>
    %273 = arith.addf %269, %272 : vector<16x8xf32>
    %274 = arith.truncf %266 : vector<16x8xf32> to vector<16x8xbf16>
    %275 = arith.truncf %273 : vector<16x8xf32> to vector<16x8xbf16>
    %cst_186 = arith.constant dense<0.000000e+00> : vector<16x16xf32>
    %276 = tpu.matmul %274, %275, %cst_186 {dimension_numbers = #tpu.dot_dimension_numbers<[1], [1], [0], [0], [0, 0, 1, 0], [], []>} : vector<16x8xbf16>, vector<16x8xbf16>, vector<16x16xf32> -> vector<16x16xf32>
    %c1_187 = arith.constant 1 : index
    %c0_188 = arith.constant 0 : index
    %c0_189 = arith.constant 0 : index
    %277 = vector.load %arg18[%c1_187, %c0_188, %c0_189] : memref<4x16x16xf32, #tpu.memory_space<vmem>>, vector<1x16x16xf32>
    %278 = vector.shape_cast %277 : vector<1x16x16xf32> to vector<16x16xf32>
    %279 = vector.shape_cast %276 : vector<16x16xf32> to vector<1x16x16xf32>
    tpu.vector_store %arg18[%c1_187, %c0_188, %c0_189], %279 {strides = array<i32>} : memref<4x16x16xf32, #tpu.memory_space<vmem>>, vector<1x16x16xf32>,
    %c6 = arith.constant 6 : index
    %c0_190 = arith.constant 0 : index
    %c0_191 = arith.constant 0 : index
    %280 = vector.load %arg7[%c6, %c0_190, %c0_191] : memref<8x32x8xbf16, #tpu.memory_space<vmem>>, vector<1x32x8xbf16>
    %281 = vector.shape_cast %280 : vector<1x32x8xbf16> to vector<32x8xbf16>
    %cst_192 = arith.constant dense<0.000000e+00> : vector<16x8xf32>
    %282 = tpu.matmul %227, %281, %cst_192 {dimension_numbers = #tpu.dot_dimension_numbers<[1], [0], [0], [1], [0, 0, 1, 1], [], []>} : vector<16x32xbf16>, vector<32x8xbf16>, vector<16x8xf32> -> vector<16x8xf32>
    %c6_193 = arith.constant 6 : index
    %c0_194 = arith.constant 0 : index
    %c0_195 = arith.constant 0 : index
    %283 = vector.load %arg8[%c6_193, %c0_194, %c0_195] : memref<8x1x8xf32, #tpu.memory_space<vmem>>, vector<1x1x8xf32>
    %284 = vector.shape_cast %283 : vector<1x1x8xf32> to vector<1x8xf32>
    %285 = vector.broadcast %284 : vector<1x8xf32> to vector<16x8xf32>
    %286 = arith.addf %282, %285 : vector<16x8xf32>
    %cst_196 = arith.constant 0.353553385 : f32
    %287 = vector.broadcast %cst_196 : f32 to vector<16x8xf32>
    %288 = arith.mulf %286, %287 : vector<16x8xf32>
    %c6_197 = arith.constant 6 : index
    %c0_198 = arith.constant 0 : index
    %c0_199 = arith.constant 0 : index
    %289 = vector.load %arg9[%c6_197, %c0_198, %c0_199] : memref<8x32x8xbf16, #tpu.memory_space<vmem>>, vector<1x32x8xbf16>
    %290 = vector.shape_cast %289 : vector<1x32x8xbf16> to vector<32x8xbf16>
    %cst_200 = arith.constant dense<0.000000e+00> : vector<16x8xf32>
    %291 = tpu.matmul %227, %290, %cst_200 {dimension_numbers = #tpu.dot_dimension_numbers<[1], [0], [0], [1], [0, 0, 1, 1], [], []>} : vector<16x32xbf16>, vector<32x8xbf16>, vector<16x8xf32> -> vector<16x8xf32>
    %c6_201 = arith.constant 6 : index
    %c0_202 = arith.constant 0 : index
    %c0_203 = arith.constant 0 : index
    %292 = vector.load %arg10[%c6_201, %c0_202, %c0_203] : memref<8x1x8xf32, #tpu.memory_space<vmem>>, vector<1x1x8xf32>
    %293 = vector.shape_cast %292 : vector<1x1x8xf32> to vector<1x8xf32>
    %294 = vector.broadcast %293 : vector<1x8xf32> to vector<16x8xf32>
    %295 = arith.addf %291, %294 : vector<16x8xf32>
    %296 = arith.truncf %288 : vector<16x8xf32> to vector<16x8xbf16>
    %297 = arith.truncf %295 : vector<16x8xf32> to vector<16x8xbf16>
    %cst_204 = arith.constant dense<0.000000e+00> : vector<16x16xf32>
    %298 = tpu.matmul %296, %297, %cst_204 {dimension_numbers = #tpu.dot_dimension_numbers<[1], [1], [0], [0], [0, 0, 1, 0], [], []>} : vector<16x8xbf16>, vector<16x8xbf16>, vector<16x16xf32> -> vector<16x16xf32>
    %c2_205 = arith.constant 2 : index
    %c0_206 = arith.constant 0 : index
    %c0_207 = arith.constant 0 : index
    %299 = vector.load %arg18[%c2_205, %c0_206, %c0_207] : memref<4x16x16xf32, #tpu.memory_space<vmem>>, vector<1x16x16xf32>
    %300 = vector.shape_cast %299 : vector<1x16x16xf32> to vector<16x16xf32>
    %301 = vector.shape_cast %298 : vector<16x16xf32> to vector<1x16x16xf32>
    tpu.vector_store %arg18[%c2_205, %c0_206, %c0_207], %301 {strides = array<i32>} : memref<4x16x16xf32, #tpu.memory_space<vmem>>, vector<1x16x16xf32>,
    %c7 = arith.constant 7 : index
    %c0_208 = arith.constant 0 : index
    %c0_209 = arith.constant 0 : index
    %302 = vector.load %arg7[%c7, %c0_208, %c0_209] : memref<8x32x8xbf16, #tpu.memory_space<vmem>>, vector<1x32x8xbf16>
    %303 = vector.shape_cast %302 : vector<1x32x8xbf16> to vector<32x8xbf16>
    %cst_210 = arith.constant dense<0.000000e+00> : vector<16x8xf32>
    %304 = tpu.matmul %227, %303, %cst_210 {dimension_numbers = #tpu.dot_dimension_numbers<[1], [0], [0], [1], [0, 0, 1, 1], [], []>} : vector<16x32xbf16>, vector<32x8xbf16>, vector<16x8xf32> -> vector<16x8xf32>
    %c7_211 = arith.constant 7 : index
    %c0_212 = arith.constant 0 : index
    %c0_213 = arith.constant 0 : index
    %305 = vector.load %arg8[%c7_211, %c0_212, %c0_213] : memref<8x1x8xf32, #tpu.memory_space<vmem>>, vector<1x1x8xf32>
    %306 = vector.shape_cast %305 : vector<1x1x8xf32> to vector<1x8xf32>
    %307 = vector.broadcast %306 : vector<1x8xf32> to vector<16x8xf32>
    %308 = arith.addf %304, %307 : vector<16x8xf32>
    %cst_214 = arith.constant 0.353553385 : f32
    %309 = vector.broadcast %cst_214 : f32 to vector<16x8xf32>
    %310 = arith.mulf %308, %309 : vector<16x8xf32>
    %c7_215 = arith.constant 7 : index
    %c0_216 = arith.constant 0 : index
    %c0_217 = arith.constant 0 : index
    %311 = vector.load %arg9[%c7_215, %c0_216, %c0_217] : memref<8x32x8xbf16, #tpu.memory_space<vmem>>, vector<1x32x8xbf16>
    %312 = vector.shape_cast %311 : vector<1x32x8xbf16> to vector<32x8xbf16>
    %cst_218 = arith.constant dense<0.000000e+00> : vector<16x8xf32>
    %313 = tpu.matmul %227, %312, %cst_218 {dimension_numbers = #tpu.dot_dimension_numbers<[1], [0], [0], [1], [0, 0, 1, 1], [], []>} : vector<16x32xbf16>, vector<32x8xbf16>, vector<16x8xf32> -> vector<16x8xf32>
    %c7_219 = arith.constant 7 : index
    %c0_220 = arith.constant 0 : index
    %c0_221 = arith.constant 0 : index
    %314 = vector.load %arg10[%c7_219, %c0_220, %c0_221] : memref<8x1x8xf32, #tpu.memory_space<vmem>>, vector<1x1x8xf32>
    %315 = vector.shape_cast %314 : vector<1x1x8xf32> to vector<1x8xf32>
    %316 = vector.broadcast %315 : vector<1x8xf32> to vector<16x8xf32>
    %317 = arith.addf %313, %316 : vector<16x8xf32>
    %318 = arith.truncf %310 : vector<16x8xf32> to vector<16x8xbf16>
    %319 = arith.truncf %317 : vector<16x8xf32> to vector<16x8xbf16>
    %cst_222 = arith.constant dense<0.000000e+00> : vector<16x16xf32>
    %320 = tpu.matmul %318, %319, %cst_222 {dimension_numbers = #tpu.dot_dimension_numbers<[1], [1], [0], [0], [0, 0, 1, 0], [], []>} : vector<16x8xbf16>, vector<16x8xbf16>, vector<16x16xf32> -> vector<16x16xf32>
    %c3_223 = arith.constant 3 : index
    %c0_224 = arith.constant 0 : index
    %c0_225 = arith.constant 0 : index
    %321 = vector.load %arg18[%c3_223, %c0_224, %c0_225] : memref<4x16x16xf32, #tpu.memory_space<vmem>>, vector<1x16x16xf32>
    %322 = vector.shape_cast %321 : vector<1x16x16xf32> to vector<16x16xf32>
    %323 = vector.shape_cast %320 : vector<16x16xf32> to vector<1x16x16xf32>
    tpu.vector_store %arg18[%c3_223, %c0_224, %c0_225], %323 {strides = array<i32>} : memref<4x16x16xf32, #tpu.memory_space<vmem>>, vector<1x16x16xf32>,
    %c0_226 = arith.constant 0 : index
    %c0_227 = arith.constant 0 : index
    %c0_228 = arith.constant 0 : index
    %324 = vector.load %arg18[%c0_226, %c0_227, %c0_228] : memref<4x16x16xf32, #tpu.memory_space<vmem>>, vector<4x16x16xf32>
    %cst_229 = arith.constant dense<0xFF800000> : vector<16x16xf32>
    %325 = vector.multi_reduction <maximumf>, %324, %cst_229 [0] : vector<4x16x16xf32> to vector<16x16xf32>
    %326 = vector.shape_cast %325 : vector<16x16xf32> to vector<1x16x16xf32>
    %327 = vector.broadcast %326 : vector<1x16x16xf32> to vector<4x16x16xf32>
    %328 = arith.subf %324, %327 : vector<4x16x16xf32>
    %329 = math.exp %328 : vector<4x16x16xf32>
    %cst_230 = arith.constant dense<0.000000e+00> : vector<16x16xf32>
    %330 = vector.multi_reduction <add>, %329, %cst_230 [0] : vector<4x16x16xf32> to vector<16x16xf32>
    %331 = vector.shape_cast %330 : vector<16x16xf32> to vector<1x16x16xf32>
    %332 = tpu.reciprocal %331 {approx = true} : vector<1x16x16xf32> -> vector<1x16x16xf32>
    %333 = vector.broadcast %332 : vector<1x16x16xf32> to vector<4x16x16xf32>
    %334 = arith.mulf %329, %333 : vector<4x16x16xf32>
    %cst_231 = arith.constant 0.000000e+00 : f32
    %335 = vector.broadcast %cst_231 : f32 to vector<16x32xf32>
    %c4_232 = arith.constant 4 : index
    %c0_233 = arith.constant 0 : index
    %c0_234 = arith.constant 0 : index
    %336 = vector.load %arg11[%c4_232, %c0_233, %c0_234] : memref<8x32x32xbf16, #tpu.memory_space<vmem>>, vector<1x32x32xbf16>
    %337 = vector.shape_cast %336 : vector<1x32x32xbf16> to vector<32x32xbf16>
    %cst_235 = arith.constant dense<0.000000e+00> : vector<16x32xf32>
    %338 = tpu.matmul %235, %337, %cst_235 {dimension_numbers = #tpu.dot_dimension_numbers<[1], [0], [0], [1], [0, 0, 1, 1], [], []>} : vector<16x32xbf16>, vector<32x32xbf16>, vector<16x32xf32> -> vector<16x32xf32>
    %c4_236 = arith.constant 4 : index
    %c0_237 = arith.constant 0 : index
    %c0_238 = arith.constant 0 : index
    %339 = vector.load %arg12[%c4_236, %c0_237, %c0_238] : memref<8x1x32xf32, #tpu.memory_space<vmem>>, vector<1x1x32xf32>
    %340 = vector.shape_cast %339 : vector<1x1x32xf32> to vector<1x32xf32>
    %341 = vector.broadcast %340 : vector<1x32xf32> to vector<16x32xf32>
    %342 = arith.addf %338, %341 : vector<16x32xf32>
    %343 = vector.extract_strided_slice %334 {offsets = [0, 0, 0], sizes = [1, 16, 16], strides = [1, 1, 1]} : vector<4x16x16xf32> to vector<1x16x16xf32>
    %344 = vector.shape_cast %343 : vector<1x16x16xf32> to vector<16x16xf32>
    %345 = arith.truncf %344 : vector<16x16xf32> to vector<16x16xbf16>
    %346 = arith.truncf %342 : vector<16x32xf32> to vector<16x32xbf16>
    %cst_239 = arith.constant dense<0.000000e+00> : vector<16x32xf32>
    %347 = tpu.matmul %345, %346, %cst_239 {dimension_numbers = #tpu.dot_dimension_numbers<[1], [0], [0], [1], [0, 0, 1, 1], [], []>} : vector<16x16xbf16>, vector<16x32xbf16>, vector<16x32xf32> -> vector<16x32xf32>
    %348 = arith.addf %335, %347 : vector<16x32xf32>
    %c5_240 = arith.constant 5 : index
    %c0_241 = arith.constant 0 : index
    %c0_242 = arith.constant 0 : index
    %349 = vector.load %arg11[%c5_240, %c0_241, %c0_242] : memref<8x32x32xbf16, #tpu.memory_space<vmem>>, vector<1x32x32xbf16>
    %350 = vector.shape_cast %349 : vector<1x32x32xbf16> to vector<32x32xbf16>
    %cst_243 = arith.constant dense<0.000000e+00> : vector<16x32xf32>
    %351 = tpu.matmul %235, %350, %cst_243 {dimension_numbers = #tpu.dot_dimension_numbers<[1], [0], [0], [1], [0, 0, 1, 1], [], []>} : vector<16x32xbf16>, vector<32x32xbf16>, vector<16x32xf32> -> vector<16x32xf32>
    %c5_244 = arith.constant 5 : index
    %c0_245 = arith.constant 0 : index
    %c0_246 = arith.constant 0 : index
    %352 = vector.load %arg12[%c5_244, %c0_245, %c0_246] : memref<8x1x32xf32, #tpu.memory_space<vmem>>, vector<1x1x32xf32>
    %353 = vector.shape_cast %352 : vector<1x1x32xf32> to vector<1x32xf32>
    %354 = vector.broadcast %353 : vector<1x32xf32> to vector<16x32xf32>
    %355 = arith.addf %351, %354 : vector<16x32xf32>
    %356 = vector.extract_strided_slice %334 {offsets = [1, 0, 0], sizes = [1, 16, 16], strides = [1, 1, 1]} : vector<4x16x16xf32> to vector<1x16x16xf32>
    %357 = vector.shape_cast %356 : vector<1x16x16xf32> to vector<16x16xf32>
    %358 = arith.truncf %357 : vector<16x16xf32> to vector<16x16xbf16>
    %359 = arith.truncf %355 : vector<16x32xf32> to vector<16x32xbf16>
    %cst_247 = arith.constant dense<0.000000e+00> : vector<16x32xf32>
    %360 = tpu.matmul %358, %359, %cst_247 {dimension_numbers = #tpu.dot_dimension_numbers<[1], [0], [0], [1], [0, 0, 1, 1], [], []>} : vector<16x16xbf16>, vector<16x32xbf16>, vector<16x32xf32> -> vector<16x32xf32>
    %361 = arith.addf %348, %360 : vector<16x32xf32>
    %c6_248 = arith.constant 6 : index
    %c0_249 = arith.constant 0 : index
    %c0_250 = arith.constant 0 : index
    %362 = vector.load %arg11[%c6_248, %c0_249, %c0_250] : memref<8x32x32xbf16, #tpu.memory_space<vmem>>, vector<1x32x32xbf16>
    %363 = vector.shape_cast %362 : vector<1x32x32xbf16> to vector<32x32xbf16>
    %cst_251 = arith.constant dense<0.000000e+00> : vector<16x32xf32>
    %364 = tpu.matmul %235, %363, %cst_251 {dimension_numbers = #tpu.dot_dimension_numbers<[1], [0], [0], [1], [0, 0, 1, 1], [], []>} : vector<16x32xbf16>, vector<32x32xbf16>, vector<16x32xf32> -> vector<16x32xf32>
    %c6_252 = arith.constant 6 : index
    %c0_253 = arith.constant 0 : index
    %c0_254 = arith.constant 0 : index
    %365 = vector.load %arg12[%c6_252, %c0_253, %c0_254] : memref<8x1x32xf32, #tpu.memory_space<vmem>>, vector<1x1x32xf32>
    %366 = vector.shape_cast %365 : vector<1x1x32xf32> to vector<1x32xf32>
    %367 = vector.broadcast %366 : vector<1x32xf32> to vector<16x32xf32>
    %368 = arith.addf %364, %367 : vector<16x32xf32>
    %369 = vector.extract_strided_slice %334 {offsets = [2, 0, 0], sizes = [1, 16, 16], strides = [1, 1, 1]} : vector<4x16x16xf32> to vector<1x16x16xf32>
    %370 = vector.shape_cast %369 : vector<1x16x16xf32> to vector<16x16xf32>
    %371 = arith.truncf %370 : vector<16x16xf32> to vector<16x16xbf16>
    %372 = arith.truncf %368 : vector<16x32xf32> to vector<16x32xbf16>
    %cst_255 = arith.constant dense<0.000000e+00> : vector<16x32xf32>
    %373 = tpu.matmul %371, %372, %cst_255 {dimension_numbers = #tpu.dot_dimension_numbers<[1], [0], [0], [1], [0, 0, 1, 1], [], []>} : vector<16x16xbf16>, vector<16x32xbf16>, vector<16x32xf32> -> vector<16x32xf32>
    %374 = arith.addf %361, %373 : vector<16x32xf32>
    %c7_256 = arith.constant 7 : index
    %c0_257 = arith.constant 0 : index
    %c0_258 = arith.constant 0 : index
    %375 = vector.load %arg11[%c7_256, %c0_257, %c0_258] : memref<8x32x32xbf16, #tpu.memory_space<vmem>>, vector<1x32x32xbf16>
    %376 = vector.shape_cast %375 : vector<1x32x32xbf16> to vector<32x32xbf16>
    %cst_259 = arith.constant dense<0.000000e+00> : vector<16x32xf32>
    %377 = tpu.matmul %235, %376, %cst_259 {dimension_numbers = #tpu.dot_dimension_numbers<[1], [0], [0], [1], [0, 0, 1, 1], [], []>} : vector<16x32xbf16>, vector<32x32xbf16>, vector<16x32xf32> -> vector<16x32xf32>
    %c7_260 = arith.constant 7 : index
    %c0_261 = arith.constant 0 : index
    %c0_262 = arith.constant 0 : index
    %378 = vector.load %arg12[%c7_260, %c0_261, %c0_262] : memref<8x1x32xf32, #tpu.memory_space<vmem>>, vector<1x1x32xf32>
    %379 = vector.shape_cast %378 : vector<1x1x32xf32> to vector<1x32xf32>
    %380 = vector.broadcast %379 : vector<1x32xf32> to vector<16x32xf32>
    %381 = arith.addf %377, %380 : vector<16x32xf32>
    %382 = vector.extract_strided_slice %334 {offsets = [3, 0, 0], sizes = [1, 16, 16], strides = [1, 1, 1]} : vector<4x16x16xf32> to vector<1x16x16xf32>
    %383 = vector.shape_cast %382 : vector<1x16x16xf32> to vector<16x16xf32>
    %384 = arith.truncf %383 : vector<16x16xf32> to vector<16x16xbf16>
    %385 = arith.truncf %381 : vector<16x32xf32> to vector<16x32xbf16>
    %cst_263 = arith.constant dense<0.000000e+00> : vector<16x32xf32>
    %386 = tpu.matmul %384, %385, %cst_263 {dimension_numbers = #tpu.dot_dimension_numbers<[1], [0], [0], [1], [0, 0, 1, 1], [], []>} : vector<16x16xbf16>, vector<16x32xbf16>, vector<16x32xf32> -> vector<16x32xf32>
    %387 = arith.addf %374, %386 : vector<16x32xf32>
    %cst_264 = arith.constant 2.500000e-01 : f32
    %388 = vector.broadcast %cst_264 : f32 to vector<16x32xf32>
    %389 = arith.mulf %387, %388 : vector<16x32xf32>
    %cst_265 = arith.constant 5.000000e-01 : f32
    %390 = vector.broadcast %cst_265 : f32 to vector<16x32xf32>
    %391 = arith.mulf %390, %389 : vector<16x32xf32>
    %cst_266 = arith.constant 5.000000e-01 : f32
    %392 = vector.broadcast %cst_266 : f32 to vector<16x32xf32>
    %393 = arith.mulf %392, %226 : vector<16x32xf32>
    %394 = arith.addf %391, %393 : vector<16x32xf32>
    %c1_267 = arith.constant 1 : index
    %c0_268 = arith.constant 0 : index
    %c0_269 = arith.constant 0 : index
    %395 = vector.load %arg13[%c1_267, %c0_268, %c0_269] : memref<2x1x32xf32, #tpu.memory_space<vmem>>, vector<1x1x32xf32>
    %396 = vector.shape_cast %395 : vector<1x1x32xf32> to vector<1x32xf32>
    %c1_270 = arith.constant 1 : index
    %c0_271 = arith.constant 0 : index
    %c0_272 = arith.constant 0 : index
    %397 = vector.load %arg14[%c1_270, %c0_271, %c0_272] : memref<2x1x32xf32, #tpu.memory_space<vmem>>, vector<1x1x32xf32>
    %398 = vector.shape_cast %397 : vector<1x1x32xf32> to vector<1x32xf32>
    %cst_273 = arith.constant dense<0.000000e+00> : vector<16xf32>
    %399 = vector.multi_reduction <add>, %394, %cst_273 [1] : vector<16x32xf32> to vector<16xf32>
    %400 = vector.shape_cast %399 : vector<16xf32> to vector<16x1xf32>
    %cst_274 = arith.constant 3.200000e+01 : f32
    %401 = vector.broadcast %cst_274 : f32 to vector<16x1xf32>
    %402 = arith.divf %400, %401 : vector<16x1xf32>
    %403 = vector.broadcast %402 : vector<16x1xf32> to vector<16x32xf32>
    %404 = arith.subf %394, %403 : vector<16x32xf32>
    %405 = arith.mulf %404, %404 : vector<16x32xf32>
    %cst_275 = arith.constant dense<0.000000e+00> : vector<16xf32>
    %406 = vector.multi_reduction <add>, %405, %cst_275 [1] : vector<16x32xf32> to vector<16xf32>
    %407 = vector.shape_cast %406 : vector<16xf32> to vector<16x1xf32>
    %cst_276 = arith.constant 3.200000e+01 : f32
    %408 = vector.broadcast %cst_276 : f32 to vector<16x1xf32>
    %409 = arith.divf %407, %408 : vector<16x1xf32>
    %410 = vector.broadcast %402 : vector<16x1xf32> to vector<16x32xf32>
    %411 = arith.subf %394, %410 : vector<16x32xf32>
    %cst_277 = arith.constant 9.99999974E-6 : f32
    %412 = vector.broadcast %cst_277 : f32 to vector<16x1xf32>
    %413 = arith.addf %409, %412 : vector<16x1xf32>
    %414 = math.rsqrt %413 : vector<16x1xf32>
    %415 = vector.broadcast %414 : vector<16x1xf32> to vector<16x32xf32>
    %416 = arith.mulf %411, %415 : vector<16x32xf32>
    %417 = vector.broadcast %396 : vector<1x32xf32> to vector<16x32xf32>
    %418 = arith.mulf %416, %417 : vector<16x32xf32>
    %419 = vector.broadcast %398 : vector<1x32xf32> to vector<16x32xf32>
    %420 = arith.addf %418, %419 : vector<16x32xf32>
    %421 = arith.truncf %420 : vector<16x32xf32> to vector<16x32xbf16>
    %c0_278 = arith.constant 0 : index
    %c0_279 = arith.constant 0 : index
    %422 = vector.load %arg15[%c0_278, %c0_279] : memref<32x128xbf16, #tpu.memory_space<vmem>>, vector<32x128xbf16>
    %cst_280 = arith.constant dense<0.000000e+00> : vector<16x128xf32>
    %423 = tpu.matmul %421, %422, %cst_280 {dimension_numbers = #tpu.dot_dimension_numbers<[1], [0], [0], [1], [0, 0, 1, 1], [], []>} : vector<16x32xbf16>, vector<32x128xbf16>, vector<16x128xf32> -> vector<16x128xf32>
    %c0_281 = arith.constant 0 : index
    %c0_282 = arith.constant 0 : index
    %424 = vector.load %arg16[%c0_281, %c0_282] : memref<1x128xf32, #tpu.memory_space<vmem>>, vector<1x128xf32>
    %425 = vector.broadcast %424 : vector<1x128xf32> to vector<16x128xf32>
    %426 = arith.addf %423, %425 : vector<16x128xf32>
    %c0_283 = arith.constant 0 : index
    %c0_284 = arith.constant 0 : index
    %427 = vector.load %arg17[%c0_283, %c0_284] : memref<16x128xf32, #tpu.memory_space<vmem>>, vector<16x128xf32>
    tpu.vector_store %arg17[%c0_283, %c0_284], %426 {strides = array<i32>} : memref<16x128xf32, #tpu.memory_space<vmem>>, vector<16x128xf32>,
    return
  }
}

</mosaic_0001>

<llo_original>
// kernel: sgformer_gat_forward.1
$region0: #{sgformer_gat_forward.1}
  #allocation0 [shape = 'u32[]', space=smem, size = 0x4, offset = 0x4, fixed_abs, tag = 'smem constant byte address 0x4 - core index']
  #allocation1 [shape = 'u32[144,128]{1,0:T(1,128)}', space=vmem, size = 0x12000, scoped, tag = 'internal scratch']
  #allocation2 [shape = 'f32[4,16,16]{2,1,0:T(8,128)}', space=vmem, size = 0x8000, scoped, tag = 'scratch operand']
  %s0 = inlined_call_operand.vmem [shape: f32[16,16], index: 0, kind: input, shape index: {}]
  %s1 = inlined_call_operand.vmem [shape: bf16[16,32], index: 1, kind: input, shape index: {}]
  %s2 = inlined_call_operand.vmem [shape: f32[1,32], index: 2, kind: input, shape index: {}]
  %s3 = inlined_call_operand.vmem [shape: f32[1,32], index: 3, kind: input, shape index: {}]
  %s4 = inlined_call_operand.vmem [shape: f32[1,32], index: 4, kind: input, shape index: {}]
  %s5 = inlined_call_operand.vmem [shape: bf16[2,32,32], index: 5, kind: input, shape index: {}]
  %s6 = inlined_call_operand.vmem [shape: f32[2,1,32], index: 6, kind: input, shape index: {}]
  %s7 = inlined_call_operand.vmem [shape: bf16[8,32,8], index: 7, kind: input, shape index: {}]
  %s8 = inlined_call_operand.vmem [shape: f32[8,1,8], index: 8, kind: input, shape index: {}]
  %s9 = inlined_call_operand.vmem [shape: bf16[8,32,8], index: 9, kind: input, shape index: {}]
  %s10 = inlined_call_operand.vmem [shape: f32[8,1,8], index: 10, kind: input, shape index: {}]
  %s11 = inlined_call_operand.vmem [shape: bf16[8,32,32], index: 11, kind: input, shape index: {}]
  %s12 = inlined_call_operand.vmem [shape: f32[8,1,32], index: 12, kind: input, shape index: {}]
  %s13 = inlined_call_operand.vmem [shape: f32[2,1,32], index: 13, kind: input, shape index: {}]
  %s14 = inlined_call_operand.vmem [shape: f32[2,1,32], index: 14, kind: input, shape index: {}]
  %s15 = inlined_call_operand.vmem [shape: bf16[32,128], index: 15, kind: input, shape index: {}]
  %s16 = inlined_call_operand.vmem [shape: f32[1,128], index: 16, kind: input, shape index: {}]
  %s17 = inlined_call_operand.vmem [shape: f32[16,128], index: 17, kind: output, shape index: {}]
  %s18 = sld [smem:[#allocation0]]
  $region78: #{sgformer_gat_forward.1} parent=0
    _
  %s20 = ssub.s32 1, %s18
  %s21 = scalar_select 0, %s20, %s18
  // Predicated region
  $region2: #{sgformer_gat_forward.1} parent=0 // pred_check
    _
  $region3: #{sgformer_gat_forward.1} parent=0 // pred_check_branch
    %23 = sbr.rel (0) target = $region5
  $region4: #{sgformer_gat_forward.1} parent=0 // pred_region
    _
  $region5: #{sgformer_gat_forward.1} parent=0 // pred_fallthru
    _
  // Predicated region
  $region6: #{sgformer_gat_forward.1} parent=0 // pred_check
    _
  $region7: #{sgformer_gat_forward.1} parent=0 // pred_check_branch
    %25 = sbr.rel (0) target = $region9
  $region8: #{sgformer_gat_forward.1} parent=0 // pred_region
    _
  $region9: #{sgformer_gat_forward.1} parent=0 // pred_fallthru
    _
  // Predicated region
  $region10: #{sgformer_gat_forward.1} parent=0 // pred_check
    _
  $region11: #{sgformer_gat_forward.1} parent=0 // pred_check_branch
    %27 = sbr.rel (0) target = $region13
  $region12: #{sgformer_gat_forward.1} parent=0 // pred_region
    _
  $region13: #{sgformer_gat_forward.1} parent=0 // pred_fallthru
    _
  // Predicated region
  $region14: #{sgformer_gat_forward.1} parent=0 // pred_check
    _
  $region15: #{sgformer_gat_forward.1} parent=0 // pred_check_branch
    %29 = sbr.rel (0) target = $region17
  $region16: #{sgformer_gat_forward.1} parent=0 // pred_region
    _
  $region17: #{sgformer_gat_forward.1} parent=0 // pred_fallthru
    _
  // Predicated region
  $region18: #{sgformer_gat_forward.1} parent=0 // pred_check
    _
  $region19: #{sgformer_gat_forward.1} parent=0 // pred_check_branch
    %31 = sbr.rel (0) target = $region21
  $region20: #{sgformer_gat_forward.1} parent=0 // pred_region
    _
  $region21: #{sgformer_gat_forward.1} parent=0 // pred_fallthru
    _
  // Predicated region
  $region22: #{sgformer_gat_forward.1} parent=0 // pred_check
    _
  $region23: #{sgformer_gat_forward.1} parent=0 // pred_check_branch
    %33 = sbr.rel (0) target = $region25
  $region24: #{sgformer_gat_forward.1} parent=0 // pred_region
    _
  $region25: #{sgformer_gat_forward.1} parent=0 // pred_fallthru
    _
  // Predicated region
  $region26: #{sgformer_gat_forward.1} parent=0 // pred_check
    _
  $region27: #{sgformer_gat_forward.1} parent=0 // pred_check_branch
    %35 = sbr.rel (0) target = $region29
  $region28: #{sgformer_gat_forward.1} parent=0 // pred_region
    _
  $region29: #{sgformer_gat_forward.1} parent=0 // pred_fallthru
    _
  // Predicated region
  $region30: #{sgformer_gat_forward.1} parent=0 // pred_check
    _
  $region31: #{sgformer_gat_forward.1} parent=0 // pred_check_branch
    %37 = sbr.rel (0) target = $region33
  $region32: #{sgformer_gat_forward.1} parent=0 // pred_region
    _
  $region33: #{sgformer_gat_forward.1} parent=0 // pred_fallthru
    _
  // Predicated region
  $region34: #{sgformer_gat_forward.1} parent=0 // pred_check
    _
  $region35: #{sgformer_gat_forward.1} parent=0 // pred_check_branch
    %39 = sbr.rel (0) target = $region37
  $region36: #{sgformer_gat_forward.1} parent=0 // pred_region
    _
  $region37: #{sgformer_gat_forward.1} parent=0 // pred_fallthru
    _
  // Predicated region
  $region38: #{sgformer_gat_forward.1} parent=0 // pred_check
    _
  $region39: #{sgformer_gat_forward.1} parent=0 // pred_check_branch
    %41 = sbr.rel (0) target = $region41
  $region40: #{sgformer_gat_forward.1} parent=0 // pred_region
    _
  $region41: #{sgformer_gat_forward.1} parent=0 // pred_fallthru
    _
  // Predicated region
  $region42: #{sgformer_gat_forward.1} parent=0 // pred_check
    _
  $region43: #{sgformer_gat_forward.1} parent=0 // pred_check_branch
    %43 = sbr.rel (0) target = $region45
  $region44: #{sgformer_gat_forward.1} parent=0 // pred_region
    _
  $region45: #{sgformer_gat_forward.1} parent=0 // pred_fallthru
    _
  // Predicated region
  $region46: #{sgformer_gat_forward.1} parent=0 // pred_check
    _
  $region47: #{sgformer_gat_forward.1} parent=0 // pred_check_branch
    %45 = sbr.rel (0) target = $region49
  $region48: #{sgformer_gat_forward.1} parent=0 // pred_region
    _
  $region49: #{sgformer_gat_forward.1} parent=0 // pred_fallthru
    _
  // Predicated region
  $region50: #{sgformer_gat_forward.1} parent=0 // pred_check
    _
  $region51: #{sgformer_gat_forward.1} parent=0 // pred_check_branch
    %47 = sbr.rel (0) target = $region53
  $region52: #{sgformer_gat_forward.1} parent=0 // pred_region
    _
  $region53: #{sgformer_gat_forward.1} parent=0 // pred_fallthru
    _
  // Predicated region
  $region54: #{sgformer_gat_forward.1} parent=0 // pred_check
    _
  $region55: #{sgformer_gat_forward.1} parent=0 // pred_check_branch
    %49 = sbr.rel (0) target = $region57
  $region56: #{sgformer_gat_forward.1} parent=0 // pred_region
    _
  $region57: #{sgformer_gat_forward.1} parent=0 // pred_fallthru
    _
  // Predicated region
  $region58: #{sgformer_gat_forward.1} parent=0 // pred_check
    _
  $region59: #{sgformer_gat_forward.1} parent=0 // pred_check_branch
    %51 = sbr.rel (0) target = $region61
  $region60: #{sgformer_gat_forward.1} parent=0 // pred_region
    _
  $region61: #{sgformer_gat_forward.1} parent=0 // pred_fallthru
    _
  // Predicated region
  $region62: #{sgformer_gat_forward.1} parent=0 // pred_check
    _
  $region63: #{sgformer_gat_forward.1} parent=0 // pred_check_branch
    %53 = sbr.rel (0) target = $region65
  $region64: #{sgformer_gat_forward.1} parent=0 // pred_region
    _
  $region65: #{sgformer_gat_forward.1} parent=0 // pred_fallthru
    _
  // Predicated region
  $region66: #{sgformer_gat_forward.1} parent=0 // pred_check
    _
  $region67: #{sgformer_gat_forward.1} parent=0 // pred_check_branch
    %55 = sbr.rel (0) target = $region69
  $region68: #{sgformer_gat_forward.1} parent=0 // pred_region
    _
  $region69: #{sgformer_gat_forward.1} parent=0 // pred_fallthru
    _
  %v57 = vld [vmem:[%s0] sm:$0xff]
  %v58 = vld [vmem:[%s0 + $0x8] sm:$0xff]
  %v59 = vpack.c.bf16 %v58, %v57
  %v60 = vld [vmem:[%s1] sm:$0xf]
  %v61 = vld [vmem:[%s1 + $0x4] sm:$0xf]
  %v62 = vld [vmem:[%s2] sm:$0x1]
  %v64 = vlaneseq
  %v65 = vshrl.u32 %v64, 7
  %v66 = vsub.s32 0, %v65
  %v67 = vrot.slane %v62, %v66
  %v71 = vunpack.c.l.b16 %v60
  %v72 = vunpack.c.l.b16 %v61
  %v73 = vpack.c.b16 %v72, %v71
  %vm75 = vcmask 130048
  %v77 = vsel %vm75, %v59, 0
  %79 = vmatprep.subr.bf16.mxu0 0
  %80 = vmatpush1.bf16.msra.mxu0 0
  %81 = vmatprep.subr.bf16.mxu0 0
  %82 = vmatpush1.bf16.msra.mxu0 0
  %83 = vmatprep.subr.bf16.mxu0 0
  %84 = vmatpush1.bf16.msra.mxu0 0
  %85 = vmatprep.subr.bf16.mxu0 0
  %86 = vmatpush1.bf16.msra.mxu0 0
  %87 = vmatprep.subr.bf16.mxu0 0
  %88 = vmatpush1.bf16.msra.mxu0 0
  %89 = vmatprep.subr.bf16.mxu0 0
  %90 = vmatpush1.bf16.msra.mxu0 0
  %91 = vmatprep.subr.bf16.mxu0 0
  %92 = vmatpush1.bf16.msra.mxu0 0
  %93 = vmatprep.subr.bf16.mxu0 0
  %94 = vmatpush1.bf16.msra.mxu0 %v73
  %95 = vmatprep.subr.bf16.mxu0 0
  %96 = vmatpush2.bf16.msra.mxu0 0
  %97 = vmatprep.subr.bf16.mxu0 0
  %98 = vmatpush2.bf16.msra.mxu0 0
  %99 = vmatprep.subr.bf16.mxu0 0
  %100 = vmatpush2.bf16.msra.mxu0 0
  %101 = vmatprep.subr.bf16.mxu0 0
  %102 = vmatpush2.bf16.msra.mxu0 0
  %103 = vmatprep.subr.bf16.mxu0 0
  %104 = vmatpush2.bf16.msra.mxu0 0
  %105 = vmatprep.subr.bf16.mxu0 0
  %106 = vmatpush2.bf16.msra.mxu0 0
  %107 = vmatprep.subr.bf16.mxu0 0
  %108 = vmatpush2.bf16.msra.mxu0 0
  %109 = vmatprep.subr.bf16.mxu0 0
  %110 = vmatpush2.bf16.msra.mxu0 0
  %111 = vmatprep.mubr.bf16.mxu0 0
  %112 = vmatmul.mubr.bf16.gmra.mxu0 %v77
  %v113 = vpop.f32.mrf.mxu0
  %v114 = vadd.f32 %v67, %v113
  %v115 = vpop.f32.mrf.mxu0
  %v116 = vpop.f32.mrf.mxu0
  %v117 = vadd.f32 %v67, %v116
  %v118 = vpop.f32.mrf.mxu0
  %119 = vdwg.mxu0
  %v120 = vld [vmem:[%s3] sm:$0x1]
  %v121 = vld [vmem:[%s4] sm:$0x1]
  %vm122 = vcmask 261120
  %v123 = vsel %vm122, %v114, 0.0
  %124 = vadd.xlane.f32.xlu0 %v123
  %v125 = vpop.xlane.xlu0 %124
  %v126 = vsel %vm122, %v117, 0.0
  %127 = vadd.xlane.f32.xlu0 %v126
  %v128 = vpop.xlane.xlu0 %127
  %v129 = vrcp.pop 32.0
  %v130 = vmul.f32 %v125, %v129
  %v131 = vmul.f32 %v128, %v129
  %v132 = vsub.f32 %v114, %v130
  %v133 = vsub.f32 %v117, %v131
  %v134 = vmul.f32 %v132, %v132
  %v135 = vmul.f32 %v133, %v133
  %v136 = vsel %vm122, %v134, 0.0
  %137 = vadd.xlane.f32.xlu0 %v136
  %v138 = vpop.xlane.xlu0 %137
  %v139 = vsel %vm122, %v135, 0.0
  %140 = vadd.xlane.f32.xlu0 %v139
  %v141 = vpop.xlane.xlu0 %140
  %v142 = vmul.f32 %v138, %v129
  %v143 = vmul.f32 %v141, %v129
  %v144 = vadd.f32 %v142, 1e-05
  %v145 = vadd.f32 %v143, 1e-05
  %v146 = vrsqrt.pop %v144
  %v147 = vrsqrt.pop %v145
  %v148 = vmul.f32 %v132, %v146
  %v149 = vmul.f32 %v133, %v147
  %v151 = vlaneseq
  %v152 = vshrl.u32 %v151, 7
  %v153 = vsub.s32 0, %v152
  %v154 = vrot.slane %v120, %v153
  %v156 = vmul.f32 %v148, %v154
  %v157 = vmul.f32 %v149, %v154
  %v159 = vlaneseq
  %v160 = vshrl.u32 %v159, 7
  %v161 = vsub.s32 0, %v160
  %v162 = vrot.slane %v121, %v161
  %v164 = vadd.f32 %v156, %v162
  %v165 = vadd.f32 %v157, %v162
  %v166 = vmax.f32 %v164, 0.0
  %v167 = vmax.f32 %v165, 0.0
  %v168 = vpack.c.bf16 %v167, %v166
  %v169 = vld [vmem:[%s5] sm:$0xf]
  %v170 = vld [vmem:[%s5 + $0x4] sm:$0xf]
  %v171 = vld [vmem:[%s5 + $0x8] sm:$0xf]
  %v172 = vld [vmem:[%s5 + $0xc] sm:$0xf]
  %v173 = vld [vmem:[%s6] sm:$0x1]
  %v175 = vlaneseq
  %v176 = vshrl.u32 %v175, 7
  %v177 = vsub.s32 0, %v176
  %v178 = vrot.slane %v173, %v177
  %v184 = vunpack.c.l.b16 %v169
  %v185 = vunpack.c.l.b16 %v170
  %v186 = vunpack.c.l.b16 %v171
  %v187 = vunpack.c.l.b16 %v172
  %v188 = vpack.c.b16 %v185, %v184
  %v189 = vpack.c.b16 %v187, %v186
  %v193 = vsel %vm122, %v168, 0
  %195 = vmatprep.subr.bf16.mxu0 0
  %196 = vmatpush1.bf16.msra.mxu0 0
  %197 = vmatprep.subr.bf16.mxu0 0
  %198 = vmatpush1.bf16.msra.mxu0 0
  %199 = vmatprep.subr.bf16.mxu0 0
  %200 = vmatpush1.bf16.msra.mxu0 0
  %201 = vmatprep.subr.bf16.mxu0 0
  %202 = vmatpush1.bf16.msra.mxu0 0
  %203 = vmatprep.subr.bf16.mxu0 0
  %204 = vmatpush1.bf16.msra.mxu0 0
  %205 = vmatprep.subr.bf16.mxu0 0
  %206 = vmatpush1.bf16.msra.mxu0 0
  %207 = vmatprep.subr.bf16.mxu0 0
  %208 = vmatpush1.bf16.msra.mxu0 %v189
  %209 = vmatprep.subr.bf16.mxu0 0
  %210 = vmatpush1.bf16.msra.mxu0 %v188
  %211 = vmatprep.subr.bf16.mxu0 0
  %212 = vmatpush2.bf16.msra.mxu0 0
  %213 = vmatprep.subr.bf16.mxu0 0
  %214 = vmatpush2.bf16.msra.mxu0 0
  %215 = vmatprep.subr.bf16.mxu0 0
  %216 = vmatpush2.bf16.msra.mxu0 0
  %217 = vmatprep.subr.bf16.mxu0 0
  %218 = vmatpush2.bf16.msra.mxu0 0
  %219 = vmatprep.subr.bf16.mxu0 0
  %220 = vmatpush2.bf16.msra.mxu0 0
  %221 = vmatprep.subr.bf16.mxu0 0
  %222 = vmatpush2.bf16.msra.mxu0 0
  %223 = vmatprep.subr.bf16.mxu0 0
  %224 = vmatpush2.bf16.msra.mxu0 0
  %225 = vmatprep.subr.bf16.mxu0 0
  %226 = vmatpush2.bf16.msra.mxu0 0
  %227 = vmatprep.mubr.bf16.mxu0 0
  %228 = vmatmul.mubr.bf16.gmra.mxu0 %v193
  %v229 = vpop.f32.mrf.mxu0
  %v230 = vadd.f32 %v178, %v229
  %v231 = vpop.f32.mrf.mxu0
  %v232 = vpop.f32.mrf.mxu0
  %v233 = vadd.f32 %v178, %v232
  %v234 = vpop.f32.mrf.mxu0
  %235 = vdwg.mxu0
  %v236 = vpack.c.bf16 %v233, %v230
  %v237 = vld [vmem:[%s7] sm:$0xf]
  %v238 = vld [vmem:[%s7 + $0x4] sm:$0xf]
  %v239 = vld [vmem:[%s7 + $0x8] sm:$0xf]
  %v240 = vld [vmem:[%s7 + $0xc] sm:$0xf]
  %v241 = vld [vmem:[%s8] sm:$0x1]
  %v243 = vlaneseq
  %v244 = vshrl.u32 %v243, 7
  %v245 = vsub.s32 0, %v244
  %v246 = vrot.slane %v241, %v245
  %v252 = vunpack.c.l.b16 %v237
  %v253 = vunpack.c.l.b16 %v238
  %v254 = vunpack.c.l.b16 %v239
  %v255 = vunpack.c.l.b16 %v240
  %v256 = vpack.c.b16 %v253, %v252
  %v257 = vpack.c.b16 %v255, %v254
  %260 = vmatprep.subr.bf16.mxu0 0
  %261 = vmatpush1.bf16.msra.mxu0 0
  %262 = vmatprep.subr.bf16.mxu0 0
  %263 = vmatpush1.bf16.msra.mxu0 0
  %264 = vmatprep.subr.bf16.mxu0 0
  %265 = vmatpush1.bf16.msra.mxu0 0
  %266 = vmatprep.subr.bf16.mxu0 0
  %267 = vmatpush1.bf16.msra.mxu0 0
  %268 = vmatprep.subr.bf16.mxu0 0
  %269 = vmatpush1.bf16.msra.mxu0 0
  %270 = vmatprep.subr.bf16.mxu0 0
  %271 = vmatpush1.bf16.msra.mxu0 0
  %272 = vmatprep.subr.bf16.mxu0 0
  %273 = vmatpush1.bf16.msra.mxu0 %v257
  %274 = vmatprep.subr.bf16.mxu0 0
  %275 = vmatpush1.bf16.msra.mxu0 %v256
  %276 = vmatprep.subr.bf16.mxu0 0
  %277 = vmatpush2.bf16.msra.mxu0 0
  %278 = vmatprep.subr.bf16.mxu0 0
  %279 = vmatpush2.bf16.msra.mxu0 0
  %280 = vmatprep.subr.bf16.mxu0 0
  %281 = vmatpush2.bf16.msra.mxu0 0
  %282 = vmatprep.subr.bf16.mxu0 0
  %283 = vmatpush2.bf16.msra.mxu0 0
  %284 = vmatprep.subr.bf16.mxu0 0
  %285 = vmatpush2.bf16.msra.mxu0 0
  %286 = vmatprep.subr.bf16.mxu0 0
  %287 = vmatpush2.bf16.msra.mxu0 0
  %288 = vmatprep.subr.bf16.mxu0 0
  %289 = vmatpush2.bf16.msra.mxu0 0
  %290 = vmatprep.subr.bf16.mxu0 0
  %291 = vmatpush2.bf16.msra.mxu0 0
  %292 = vmatprep.mubr.bf16.mxu0 0
  %293 = vmatmul.mubr.bf16.gmra.mxu0 %v193
  %v294 = vpop.f32.mrf.mxu0
  %v295 = vadd.f32 %v246, %v294
  %v296 = vpop.f32.mrf.mxu0
  %v297 = vpop.f32.mrf.mxu0
  %v298 = vadd.f32 %v246, %v297
  %v299 = vpop.f32.mrf.mxu0
  %300 = vdwg.mxu0
  %v301 = vmul.f32 %v295, 0.35355338
  %v302 = vmul.f32 %v298, 0.35355338
  %v303 = vld [vmem:[%s9] sm:$0xf]
  %v304 = vld [vmem:[%s9 + $0x4] sm:$0xf]
  %v305 = vld [vmem:[%s9 + $0x8] sm:$0xf]
  %v306 = vld [vmem:[%s9 + $0xc] sm:$0xf]
  %v307 = vld [vmem:[%s10] sm:$0x1]
  %v309 = vlaneseq
  %v310 = vshrl.u32 %v309, 7
  %v311 = vsub.s32 0, %v310
  %v312 = vrot.slane %v307, %v311
  %v318 = vunpack.c.l.b16 %v303
  %v319 = vunpack.c.l.b16 %v304
  %v320 = vunpack.c.l.b16 %v305
  %v321 = vunpack.c.l.b16 %v306
  %v322 = vpack.c.b16 %v319, %v318
  %v323 = vpack.c.b16 %v321, %v320
  %326 = vmatprep.subr.bf16.mxu0 0
  %327 = vmatpush1.bf16.msra.mxu0 0
  %328 = vmatprep.subr.bf16.mxu0 0
  %329 = vmatpush1.bf16.msra.mxu0 0
  %330 = vmatprep.subr.bf16.mxu0 0
  %331 = vmatpush1.bf16.msra.mxu0 0
  %332 = vmatprep.subr.bf16.mxu0 0
  %333 = vmatpush1.bf16.msra.mxu0 0
  %334 = vmatprep.subr.bf16.mxu0 0
  %335 = vmatpush1.bf16.msra.mxu0 0
  %336 = vmatprep.subr.bf16.mxu0 0
  %337 = vmatpush1.bf16.msra.mxu0 0
  %338 = vmatprep.subr.bf16.mxu0 0
  %339 = vmatpush1.bf16.msra.mxu0 %v323
  %340 = vmatprep.subr.bf16.mxu0 0
  %341 = vmatpush1.bf16.msra.mxu0 %v322
  %342 = vmatprep.subr.bf16.mxu0 0
  %343 = vmatpush2.bf16.msra.mxu0 0
  %344 = vmatprep.subr.bf16.mxu0 0
  %345 = vmatpush2.bf16.msra.mxu0 0
  %346 = vmatprep.subr.bf16.mxu0 0
  %347 = vmatpush2.bf16.msra.mxu0 0
  %348 = vmatprep.subr.bf16.mxu0 0
  %349 = vmatpush2.bf16.msra.mxu0 0
  %350 = vmatprep.subr.bf16.mxu0 0
  %351 = vmatpush2.bf16.msra.mxu0 0
  %352 = vmatprep.subr.bf16.mxu0 0
  %353 = vmatpush2.bf16.msra.mxu0 0
  %354 = vmatprep.subr.bf16.mxu0 0
  %355 = vmatpush2.bf16.msra.mxu0 0
  %356 = vmatprep.subr.bf16.mxu0 0
  %357 = vmatpush2.bf16.msra.mxu0 0
  %358 = vmatprep.mubr.bf16.mxu0 0
  %359 = vmatmul.mubr.bf16.gmra.mxu0 %v193
  %v360 = vpop.f32.mrf.mxu0
  %v361 = vadd.f32 %v312, %v360
  %v362 = vpop.f32.mrf.mxu0
  %v363 = vpop.f32.mrf.mxu0
  %v364 = vadd.f32 %v312, %v363
  %v365 = vpop.f32.mrf.mxu0
  %366 = vdwg.mxu0
  %v367 = vpack.c.bf16 %v302, %v301
  %v368 = vpack.c.bf16 %v364, %v361
  %vm369 = vcmask 64512
  %v371 = vsel %vm369, %v367, 0
  %v374 = vsel %vm369, %v368, 0
  %376 = vmatprep.subr.bf16.mxu0 0
  %377 = vmatpush1.bf16.xpose.msra.mxu0 0
  %378 = vmatprep.subr.bf16.mxu0 0
  %379 = vmatpush1.bf16.xpose.msra.mxu0 0
  %380 = vmatprep.subr.bf16.mxu0 0
  %381 = vmatpush1.bf16.xpose.msra.mxu0 0
  %382 = vmatprep.subr.bf16.mxu0 0
  %383 = vmatpush1.bf16.xpose.msra.mxu0 0
  %384 = vmatprep.subr.bf16.mxu0 0
  %385 = vmatpush1.bf16.xpose.msra.mxu0 0
  %386 = vmatprep.subr.bf16.mxu0 0
  %387 = vmatpush1.bf16.xpose.msra.mxu0 0
  %388 = vmatprep.subr.bf16.mxu0 0
  %389 = vmatpush1.bf16.xpose.msra.mxu0 0
  %390 = vmatprep.subr.bf16.mxu0 0
  %391 = vmatpush1.bf16.xpose.msra.mxu0 %v374
  %392 = vmatprep.subr.bf16.mxu0 0
  %393 = vmatpush2.bf16.xpose.msra.mxu0 0
  %394 = vmatprep.subr.bf16.mxu0 0
  %395 = vmatpush2.bf16.xpose.msra.mxu0 0
  %396 = vmatprep.subr.bf16.mxu0 0
  %397 = vmatpush2.bf16.xpose.msra.mxu0 0
  %398 = vmatprep.subr.bf16.mxu0 0
  %399 = vmatpush2.bf16.xpose.msra.mxu0 0
  %400 = vmatprep.subr.bf16.mxu0 0
  %401 = vmatpush2.bf16.xpose.msra.mxu0 0
  %402 = vmatprep.subr.bf16.mxu0 0
  %403 = vmatpush2.bf16.xpose.msra.mxu0 0
  %404 = vmatprep.subr.bf16.mxu0 0
  %405 = vmatpush2.bf16.xpose.msra.mxu0 0
  %406 = vmatprep.subr.bf16.mxu0 0
  %407 = vmatpush2.bf16.xpose.msra.mxu0 0
  %408 = vmatprep.mubr.bf16.mxu0 0
  %409 = vmatmul.mubr.bf16.gmra.mxu0 %v371
  %v410 = vpop.f32.mrf.mxu0
  %v411 = vadd.f32 0.0, %v410
  %v412 = vpop.f32.mrf.mxu0
  %v413 = vpop.f32.mrf.mxu0
  %v414 = vadd.f32 0.0, %v413
  %v415 = vpop.f32.mrf.mxu0
  %416 = vdwg.mxu0
  %417 = vst.msk [vmem:[#allocation2] sm:$0xff] %vm75, %v411
  %418 = vst.msk [vmem:[#allocation2 + $0x8] sm:$0xff] %vm75, %v414
  %s419 = scalar_lea.vmem %s7, 16
  %v420 = vld [vmem:[%s419] sm:$0xf]
  %v421 = vld [vmem:[%s419 + $0x4] sm:$0xf]
  %v422 = vld [vmem:[%s419 + $0x8] sm:$0xf]
  %v423 = vld [vmem:[%s419 + $0xc] sm:$0xf]
  %s424 = scalar_lea.vmem %s8, 1
  %v425 = vld [vmem:[%s424] sm:$0x1]
  %v427 = vlaneseq
  %v428 = vshrl.u32 %v427, 7
  %v429 = vsub.s32 0, %v428
  %v430 = vrot.slane %v425, %v429
  %v436 = vunpack.c.l.b16 %v420
  %v437 = vunpack.c.l.b16 %v421
  %v438 = vunpack.c.l.b16 %v422
  %v439 = vunpack.c.l.b16 %v423
  %v440 = vpack.c.b16 %v437, %v436
  %v441 = vpack.c.b16 %v439, %v438
  %444 = vmatprep.subr.bf16.mxu0 0
  %445 = vmatpush1.bf16.msra.mxu0 0
  %446 = vmatprep.subr.bf16.mxu0 0
  %447 = vmatpush1.bf16.msra.mxu0 0
  %448 = vmatprep.subr.bf16.mxu0 0
  %449 = vmatpush1.bf16.msra.mxu0 0
  %450 = vmatprep.subr.bf16.mxu0 0
  %451 = vmatpush1.bf16.msra.mxu0 0
  %452 = vmatprep.subr.bf16.mxu0 0
  %453 = vmatpush1.bf16.msra.mxu0 0
  %454 = vmatprep.subr.bf16.mxu0 0
  %455 = vmatpush1.bf16.msra.mxu0 0
  %456 = vmatprep.subr.bf16.mxu0 0
  %457 = vmatpush1.bf16.msra.mxu0 %v441
  %458 = vmatprep.subr.bf16.mxu0 0
  %459 = vmatpush1.bf16.msra.mxu0 %v440
  %460 = vmatprep.subr.bf16.mxu0 0
  %461 = vmatpush2.bf16.msra.mxu0 0
  %462 = vmatprep.subr.bf16.mxu0 0
  %463 = vmatpush2.bf16.msra.mxu0 0
  %464 = vmatprep.subr.bf16.mxu0 0
  %465 = vmatpush2.bf16.msra.mxu0 0
  %466 = vmatprep.subr.bf16.mxu0 0
  %467 = vmatpush2.bf16.msra.mxu0 0
  %468 = vmatprep.subr.bf16.mxu0 0
  %469 = vmatpush2.bf16.msra.mxu0 0
  %470 = vmatprep.subr.bf16.mxu0 0
  %471 = vmatpush2.bf16.msra.mxu0 0
  %472 = vmatprep.subr.bf16.mxu0 0
  %473 = vmatpush2.bf16.msra.mxu0 0
  %474 = vmatprep.subr.bf16.mxu0 0
  %475 = vmatpush2.bf16.msra.mxu0 0
  %476 = vmatprep.mubr.bf16.mxu0 0
  %477 = vmatmul.mubr.bf16.gmra.mxu0 %v193
  %v478 = vpop.f32.mrf.mxu0
  %v479 = vadd.f32 %v430, %v478
  %v480 = vpop.f32.mrf.mxu0
  %v481 = vpop.f32.mrf.mxu0
  %v482 = vadd.f32 %v430, %v481
  %v483 = vpop.f32.mrf.mxu0
  %484 = vdwg.mxu0
  %v485 = vmul.f32 %v479, 0.35355338
  %v486 = vmul.f32 %v482, 0.35355338
  %s487 = scalar_lea.vmem %s9, 16
  %v488 = vld [vmem:[%s487] sm:$0xf]
  %v489 = vld [vmem:[%s487 + $0x4] sm:$0xf]
  %v490 = vld [vmem:[%s487 + $0x8] sm:$0xf]
  %v491 = vld [vmem:[%s487 + $0xc] sm:$0xf]
  %s492 = scalar_lea.vmem %s10, 1
  %v493 = vld [vmem:[%s492] sm:$0x1]
  %v495 = vlaneseq
  %v496 = vshrl.u32 %v495, 7
  %v497 = vsub.s32 0, %v496
  %v498 = vrot.slane %v493, %v497
  %v504 = vunpack.c.l.b16 %v488
  %v505 = vunpack.c.l.b16 %v489
  %v506 = vunpack.c.l.b16 %v490
  %v507 = vunpack.c.l.b16 %v491
  %v508 = vpack.c.b16 %v505, %v504
  %v509 = vpack.c.b16 %v507, %v506
  %512 = vmatprep.subr.bf16.mxu0 0
  %513 = vmatpush1.bf16.msra.mxu0 0
  %514 = vmatprep.subr.bf16.mxu0 0
  %515 = vmatpush1.bf16.msra.mxu0 0
  %516 = vmatprep.subr.bf16.mxu0 0
  %517 = vmatpush1.bf16.msra.mxu0 0
  %518 = vmatprep.subr.bf16.mxu0 0
  %519 = vmatpush1.bf16.msra.mxu0 0
  %520 = vmatprep.subr.bf16.mxu0 0
  %521 = vmatpush1.bf16.msra.mxu0 0
  %522 = vmatprep.subr.bf16.mxu0 0
  %523 = vmatpush1.bf16.msra.mxu0 0
  %524 = vmatprep.subr.bf16.mxu0 0
  %525 = vmatpush1.bf16.msra.mxu0 %v509
  %526 = vmatprep.subr.bf16.mxu0 0
  %527 = vmatpush1.bf16.msra.mxu0 %v508
  %528 = vmatprep.subr.bf16.mxu0 0
  %529 = vmatpush2.bf16.msra.mxu0 0
  %530 = vmatprep.subr.bf16.mxu0 0
  %531 = vmatpush2.bf16.msra.mxu0 0
  %532 = vmatprep.subr.bf16.mxu0 0
  %533 = vmatpush2.bf16.msra.mxu0 0
  %534 = vmatprep.subr.bf16.mxu0 0
  %535 = vmatpush2.bf16.msra.mxu0 0
  %536 = vmatprep.subr.bf16.mxu0 0
  %537 = vmatpush2.bf16.msra.mxu0 0
  %538 = vmatprep.subr.bf16.mxu0 0
  %539 = vmatpush2.bf16.msra.mxu0 0
  %540 = vmatprep.subr.bf16.mxu0 0
  %541 = vmatpush2.bf16.msra.mxu0 0
  %542 = vmatprep.subr.bf16.mxu0 0
  %543 = vmatpush2.bf16.msra.mxu0 0
  %544 = vmatprep.mubr.bf16.mxu0 0
  %545 = vmatmul.mubr.bf16.gmra.mxu0 %v193
  %v546 = vpop.f32.mrf.mxu0
  %v547 = vadd.f32 %v498, %v546
  %v548 = vpop.f32.mrf.mxu0
  %v549 = vpop.f32.mrf.mxu0
  %v550 = vadd.f32 %v498, %v549
  %v551 = vpop.f32.mrf.mxu0
  %552 = vdwg.mxu0
  %v553 = vpack.c.bf16 %v486, %v485
  %v554 = vpack.c.bf16 %v550, %v547
  %v556 = vsel %vm369, %v553, 0
  %v559 = vsel %vm369, %v554, 0
  %561 = vmatprep.subr.bf16.mxu0 0
  %562 = vmatpush1.bf16.xpose.msra.mxu0 0
  %563 = vmatprep.subr.bf16.mxu0 0
  %564 = vmatpush1.bf16.xpose.msra.mxu0 0
  %565 = vmatprep.subr.bf16.mxu0 0
  %566 = vmatpush1.bf16.xpose.msra.mxu0 0
  %567 = vmatprep.subr.bf16.mxu0 0
  %568 = vmatpush1.bf16.xpose.msra.mxu0 0
  %569 = vmatprep.subr.bf16.mxu0 0
  %570 = vmatpush1.bf16.xpose.msra.mxu0 0
  %571 = vmatprep.subr.bf16.mxu0 0
  %572 = vmatpush1.bf16.xpose.msra.mxu0 0
  %573 = vmatprep.subr.bf16.mxu0 0
  %574 = vmatpush1.bf16.xpose.msra.mxu0 0
  %575 = vmatprep.subr.bf16.mxu0 0
  %576 = vmatpush1.bf16.xpose.msra.mxu0 %v559
  %577 = vmatprep.subr.bf16.mxu0 0
  %578 = vmatpush2.bf16.xpose.msra.mxu0 0
  %579 = vmatprep.subr.bf16.mxu0 0
  %580 = vmatpush2.bf16.xpose.msra.mxu0 0
  %581 = vmatprep.subr.bf16.mxu0 0
  %582 = vmatpush2.bf16.xpose.msra.mxu0 0
  %583 = vmatprep.subr.bf16.mxu0 0
  %584 = vmatpush2.bf16.xpose.msra.mxu0 0
  %585 = vmatprep.subr.bf16.mxu0 0
  %586 = vmatpush2.bf16.xpose.msra.mxu0 0
  %587 = vmatprep.subr.bf16.mxu0 0
  %588 = vmatpush2.bf16.xpose.msra.mxu0 0
  %589 = vmatprep.subr.bf16.mxu0 0
  %590 = vmatpush2.bf16.xpose.msra.mxu0 0
  %591 = vmatprep.subr.bf16.mxu0 0
  %592 = vmatpush2.bf16.xpose.msra.mxu0 0
  %593 = vmatprep.mubr.bf16.mxu0 0
  %594 = vmatmul.mubr.bf16.gmra.mxu0 %v556
  %v595 = vpop.f32.mrf.mxu0
  %v596 = vadd.f32 0.0, %v595
  %v597 = vpop.f32.mrf.mxu0
  %v598 = vpop.f32.mrf.mxu0
  %v599 = vadd.f32 0.0, %v598
  %v600 = vpop.f32.mrf.mxu0
  %601 = vdwg.mxu0
  %s602 = scalar_lea.vmem [#allocation2], 16
  %603 = vst.msk [vmem:[%s602] sm:$0xff] %vm75, %v596
  %604 = vst.msk [vmem:[%s602 + $0x8] sm:$0xff] %vm75, %v599
  %s605 = scalar_lea.vmem %s7, 32
  %v606 = vld [vmem:[%s605] sm:$0xf]
  %v607 = vld [vmem:[%s605 + $0x4] sm:$0xf]
  %v608 = vld [vmem:[%s605 + $0x8] sm:$0xf]
  %v609 = vld [vmem:[%s605 + $0xc] sm:$0xf]
  %s610 = scalar_lea.vmem %s8, 2
  %v611 = vld [vmem:[%s610] sm:$0x1]
  %v613 = vlaneseq
  %v614 = vshrl.u32 %v613, 7
  %v615 = vsub.s32 0, %v614
  %v616 = vrot.slane %v611, %v615
  %v622 = vunpack.c.l.b16 %v606
  %v623 = vunpack.c.l.b16 %v607
  %v624 = vunpack.c.l.b16 %v608
  %v625 = vunpack.c.l.b16 %v609
  %v626 = vpack.c.b16 %v623, %v622
  %v627 = vpack.c.b16 %v625, %v624
  %630 = vmatprep.subr.bf16.mxu0 0
  %631 = vmatpush1.bf16.msra.mxu0 0
  %632 = vmatprep.subr.bf16.mxu0 0
  %633 = vmatpush1.bf16.msra.mxu0 0
  %634 = vmatprep.subr.bf16.mxu0 0
  %635 = vmatpush1.bf16.msra.mxu0 0
  %636 = vmatprep.subr.bf16.mxu0 0
  %637 = vmatpush1.bf16.msra.mxu0 0
  %638 = vmatprep.subr.bf16.mxu0 0
  %639 = vmatpush1.bf16.msra.mxu0 0
  %640 = vmatprep.subr.bf16.mxu0 0
  %641 = vmatpush1.bf16.msra.mxu0 0
  %642 = vmatprep.subr.bf16.mxu0 0
  %643 = vmatpush1.bf16.msra.mxu0 %v627
  %644 = vmatprep.subr.bf16.mxu0 0
  %645 = vmatpush1.bf16.msra.mxu0 %v626
  %646 = vmatprep.subr.bf16.mxu0 0
  %647 = vmatpush2.bf16.msra.mxu0 0
  %648 = vmatprep.subr.bf16.mxu0 0
  %649 = vmatpush2.bf16.msra.mxu0 0
  %650 = vmatprep.subr.bf16.mxu0 0
  %651 = vmatpush2.bf16.msra.mxu0 0
  %652 = vmatprep.subr.bf16.mxu0 0
  %653 = vmatpush2.bf16.msra.mxu0 0
  %654 = vmatprep.subr.bf16.mxu0 0
  %655 = vmatpush2.bf16.msra.mxu0 0
  %656 = vmatprep.subr.bf16.mxu0 0
  %657 = vmatpush2.bf16.msra.mxu0 0
  %658 = vmatprep.subr.bf16.mxu0 0
  %659 = vmatpush2.bf16.msra.mxu0 0
  %660 = vmatprep.subr.bf16.mxu0 0
  %661 = vmatpush2.bf16.msra.mxu0 0
  %662 = vmatprep.mubr.bf16.mxu0 0
  %663 = vmatmul.mubr.bf16.gmra.mxu0 %v193
  %v664 = vpop.f32.mrf.mxu0
  %v665 = vadd.f32 %v616, %v664
  %v666 = vpop.f32.mrf.mxu0
  %v667 = vpop.f32.mrf.mxu0
  %v668 = vadd.f32 %v616, %v667
  %v669 = vpop.f32.mrf.mxu0
  %670 = vdwg.mxu0
  %v671 = vmul.f32 %v665, 0.35355338
  %v672 = vmul.f32 %v668, 0.35355338
  %s673 = scalar_lea.vmem %s9, 32
  %v674 = vld [vmem:[%s673] sm:$0xf]
  %v675 = vld [vmem:[%s673 + $0x4] sm:$0xf]
  %v676 = vld [vmem:[%s673 + $0x8] sm:$0xf]
  %v677 = vld [vmem:[%s673 + $0xc] sm:$0xf]
  %s678 = scalar_lea.vmem %s10, 2
  %v679 = vld [vmem:[%s678] sm:$0x1]
  %v681 = vlaneseq
  %v682 = vshrl.u32 %v681, 7
  %v683 = vsub.s32 0, %v682
  %v684 = vrot.slane %v679, %v683
  %v690 = vunpack.c.l.b16 %v674
  %v691 = vunpack.c.l.b16 %v675
  %v692 = vunpack.c.l.b16 %v676
  %v693 = vunpack.c.l.b16 %v677
  %v694 = vpack.c.b16 %v691, %v690
  %v695 = vpack.c.b16 %v693, %v692
  %698 = vmatprep.subr.bf16.mxu0 0
  %699 = vmatpush1.bf16.msra.mxu0 0
  %700 = vmatprep.subr.bf16.mxu0 0
  %701 = vmatpush1.bf16.msra.mxu0 0
  %702 = vmatprep.subr.bf16.mxu0 0
  %703 = vmatpush1.bf16.msra.mxu0 0
  %704 = vmatprep.subr.bf16.mxu0 0
  %705 = vmatpush1.bf16.msra.mxu0 0
  %706 = vmatprep.subr.bf16.mxu0 0
  %707 = vmatpush1.bf16.msra.mxu0 0
  %708 = vmatprep.subr.bf16.mxu0 0
  %709 = vmatpush1.bf16.msra.mxu0 0
  %710 = vmatprep.subr.bf16.mxu0 0
  %711 = vmatpush1.bf16.msra.mxu0 %v695
  %712 = vmatprep.subr.bf16.mxu0 0
  %713 = vmatpush1.bf16.msra.mxu0 %v694
  %714 = vmatprep.subr.bf16.mxu0 0
  %715 = vmatpush2.bf16.msra.mxu0 0
  %716 = vmatprep.subr.bf16.mxu0 0
  %717 = vmatpush2.bf16.msra.mxu0 0
  %718 = vmatprep.subr.bf16.mxu0 0
  %719 = vmatpush2.bf16.msra.mxu0 0
  %720 = vmatprep.subr.bf16.mxu0 0
  %721 = vmatpush2.bf16.msra.mxu0 0
  %722 = vmatprep.subr.bf16.mxu0 0
  %723 = vmatpush2.bf16.msra.mxu0 0
  %724 = vmatprep.subr.bf16.mxu0 0
  %725 = vmatpush2.bf16.msra.mxu0 0
  %726 = vmatprep.subr.bf16.mxu0 0
  %727 = vmatpush2.bf16.msra.mxu0 0
  %728 = vmatprep.subr.bf16.mxu0 0
  %729 = vmatpush2.bf16.msra.mxu0 0
  %730 = vmatprep.mubr.bf16.mxu0 0
  %731 = vmatmul.mubr.bf16.gmra.mxu0 %v193
  %v732 = vpop.f32.mrf.mxu0
  %v733 = vadd.f32 %v684, %v732
  %v734 = vpop.f32.mrf.mxu0
  %v735 = vpop.f32.mrf.mxu0
  %v736 = vadd.f32 %v684, %v735
  %v737 = vpop.f32.mrf.mxu0
  %738 = vdwg.mxu0
  %v739 = vpack.c.bf16 %v672, %v671
  %v740 = vpack.c.bf16 %v736, %v733
  %v742 = vsel %vm369, %v739, 0
  %v745 = vsel %vm369, %v740, 0
  %747 = vmatprep.subr.bf16.mxu0 0
  %748 = vmatpush1.bf16.xpose.msra.mxu0 0
  %749 = vmatprep.subr.bf16.mxu0 0
  %750 = vmatpush1.bf16.xpose.msra.mxu0 0
  %751 = vmatprep.subr.bf16.mxu0 0
  %752 = vmatpush1.bf16.xpose.msra.mxu0 0
  %753 = vmatprep.subr.bf16.mxu0 0
  %754 = vmatpush1.bf16.xpose.msra.mxu0 0
  %755 = vmatprep.subr.bf16.mxu0 0
  %756 = vmatpush1.bf16.xpose.msra.mxu0 0
  %757 = vmatprep.subr.bf16.mxu0 0
  %758 = vmatpush1.bf16.xpose.msra.mxu0 0
  %759 = vmatprep.subr.bf16.mxu0 0
  %760 = vmatpush1.bf16.xpose.msra.mxu0 0
  %761 = vmatprep.subr.bf16.mxu0 0
  %762 = vmatpush1.bf16.xpose.msra.mxu0 %v745
  %763 = vmatprep.subr.bf16.mxu0 0
  %764 = vmatpush2.bf16.xpose.msra.mxu0 0
  %765 = vmatprep.subr.bf16.mxu0 0
  %766 = vmatpush2.bf16.xpose.msra.mxu0 0
  %767 = vmatprep.subr.bf16.mxu0 0
  %768 = vmatpush2.bf16.xpose.msra.mxu0 0
  %769 = vmatprep.subr.bf16.mxu0 0
  %770 = vmatpush2.bf16.xpose.msra.mxu0 0
  %771 = vmatprep.subr.bf16.mxu0 0
  %772 = vmatpush2.bf16.xpose.msra.mxu0 0
  %773 = vmatprep.subr.bf16.mxu0 0
  %774 = vmatpush2.bf16.xpose.msra.mxu0 0
  %775 = vmatprep.subr.bf16.mxu0 0
  %776 = vmatpush2.bf16.xpose.msra.mxu0 0
  %777 = vmatprep.subr.bf16.mxu0 0
  %778 = vmatpush2.bf16.xpose.msra.mxu0 0
  %779 = vmatprep.mubr.bf16.mxu0 0
  %780 = vmatmul.mubr.bf16.gmra.mxu0 %v742
  %v781 = vpop.f32.mrf.mxu0
  %v782 = vadd.f32 0.0, %v781
  %v783 = vpop.f32.mrf.mxu0
  %v784 = vpop.f32.mrf.mxu0
  %v785 = vadd.f32 0.0, %v784
  %v786 = vpop.f32.mrf.mxu0
  %787 = vdwg.mxu0
  %s788 = scalar_lea.vmem [#allocation2], 32
  %789 = vst.msk [vmem:[%s788] sm:$0xff] %vm75, %v782
  %790 = vst.msk [vmem:[%s788 + $0x8] sm:$0xff] %vm75, %v785
  %s791 = scalar_lea.vmem %s7, 48
  %v792 = vld [vmem:[%s791] sm:$0xf]
  %v793 = vld [vmem:[%s791 + $0x4] sm:$0xf]
  %v794 = vld [vmem:[%s791 + $0x8] sm:$0xf]
  %v795 = vld [vmem:[%s791 + $0xc] sm:$0xf]
  %s796 = scalar_lea.vmem %s8, 3
  %v797 = vld [vmem:[%s796] sm:$0x1]
  %v799 = vlaneseq
  %v800 = vshrl.u32 %v799, 7
  %v801 = vsub.s32 0, %v800
  %v802 = vrot.slane %v797, %v801
  %v808 = vunpack.c.l.b16 %v792
  %v809 = vunpack.c.l.b16 %v793
  %v810 = vunpack.c.l.b16 %v794
  %v811 = vunpack.c.l.b16 %v795
  %v812 = vpack.c.b16 %v809, %v808
  %v813 = vpack.c.b16 %v811, %v810
  %816 = vmatprep.subr.bf16.mxu0 0
  %817 = vmatpush1.bf16.msra.mxu0 0
  %818 = vmatprep.subr.bf16.mxu0 0
  %819 = vmatpush1.bf16.msra.mxu0 0
  %820 = vmatprep.subr.bf16.mxu0 0
  %821 = vmatpush1.bf16.msra.mxu0 0
  %822 = vmatprep.subr.bf16.mxu0 0
  %823 = vmatpush1.bf16.msra.mxu0 0
  %824 = vmatprep.subr.bf16.mxu0 0
  %825 = vmatpush1.bf16.msra.mxu0 0
  %826 = vmatprep.subr.bf16.mxu0 0
  %827 = vmatpush1.bf16.msra.mxu0 0
  %828 = vmatprep.subr.bf16.mxu0 0
  %829 = vmatpush1.bf16.msra.mxu0 %v813
  %830 = vmatprep.subr.bf16.mxu0 0
  %831 = vmatpush1.bf16.msra.mxu0 %v812
  %832 = vmatprep.subr.bf16.mxu0 0
  %833 = vmatpush2.bf16.msra.mxu0 0
  %834 = vmatprep.subr.bf16.mxu0 0
  %835 = vmatpush2.bf16.msra.mxu0 0
  %836 = vmatprep.subr.bf16.mxu0 0
  %837 = vmatpush2.bf16.msra.mxu0 0
  %838 = vmatprep.subr.bf16.mxu0 0
  %839 = vmatpush2.bf16.msra.mxu0 0
  %840 = vmatprep.subr.bf16.mxu0 0
  %841 = vmatpush2.bf16.msra.mxu0 0
  %842 = vmatprep.subr.bf16.mxu0 0
  %843 = vmatpush2.bf16.msra.mxu0 0
  %844 = vmatprep.subr.bf16.mxu0 0
  %845 = vmatpush2.bf16.msra.mxu0 0
  %846 = vmatprep.subr.bf16.mxu0 0
  %847 = vmatpush2.bf16.msra.mxu0 0
  %848 = vmatprep.mubr.bf16.mxu0 0
  %849 = vmatmul.mubr.bf16.gmra.mxu0 %v193
  %v850 = vpop.f32.mrf.mxu0
  %v851 = vadd.f32 %v802, %v850
  %v852 = vpop.f32.mrf.mxu0
  %v853 = vpop.f32.mrf.mxu0
  %v854 = vadd.f32 %v802, %v853
  %v855 = vpop.f32.mrf.mxu0
  %856 = vdwg.mxu0
  %v857 = vmul.f32 %v851, 0.35355338
  %v858 = vmul.f32 %v854, 0.35355338
  %s859 = scalar_lea.vmem %s9, 48
  %v860 = vld [vmem:[%s859] sm:$0xf]
  %v861 = vld [vmem:[%s859 + $0x4] sm:$0xf]
  %v862 = vld [vmem:[%s859 + $0x8] sm:$0xf]
  %v863 = vld [vmem:[%s859 + $0xc] sm:$0xf]
  %s864 = scalar_lea.vmem %s10, 3
  %v865 = vld [vmem:[%s864] sm:$0x1]
  %v867 = vlaneseq
  %v868 = vshrl.u32 %v867, 7
  %v869 = vsub.s32 0, %v868
  %v870 = vrot.slane %v865, %v869
  %v876 = vunpack.c.l.b16 %v860
  %v877 = vunpack.c.l.b16 %v861
  %v878 = vunpack.c.l.b16 %v862
  %v879 = vunpack.c.l.b16 %v863
  %v880 = vpack.c.b16 %v877, %v876
  %v881 = vpack.c.b16 %v879, %v878
  %884 = vmatprep.subr.bf16.mxu0 0
  %885 = vmatpush1.bf16.msra.mxu0 0
  %886 = vmatprep.subr.bf16.mxu0 0
  %887 = vmatpush1.bf16.msra.mxu0 0
  %888 = vmatprep.subr.bf16.mxu0 0
  %889 = vmatpush1.bf16.msra.mxu0 0
  %890 = vmatprep.subr.bf16.mxu0 0
  %891 = vmatpush1.bf16.msra.mxu0 0
  %892 = vmatprep.subr.bf16.mxu0 0
  %893 = vmatpush1.bf16.msra.mxu0 0
  %894 = vmatprep.subr.bf16.mxu0 0
  %895 = vmatpush1.bf16.msra.mxu0 0
  %896 = vmatprep.subr.bf16.mxu0 0
  %897 = vmatpush1.bf16.msra.mxu0 %v881
  %898 = vmatprep.subr.bf16.mxu0 0
  %899 = vmatpush1.bf16.msra.mxu0 %v880
  %900 = vmatprep.subr.bf16.mxu0 0
  %901 = vmatpush2.bf16.msra.mxu0 0
  %902 = vmatprep.subr.bf16.mxu0 0
  %903 = vmatpush2.bf16.msra.mxu0 0
  %904 = vmatprep.subr.bf16.mxu0 0
  %905 = vmatpush2.bf16.msra.mxu0 0
  %906 = vmatprep.subr.bf16.mxu0 0
  %907 = vmatpush2.bf16.msra.mxu0 0
  %908 = vmatprep.subr.bf16.mxu0 0
  %909 = vmatpush2.bf16.msra.mxu0 0
  %910 = vmatprep.subr.bf16.mxu0 0
  %911 = vmatpush2.bf16.msra.mxu0 0
  %912 = vmatprep.subr.bf16.mxu0 0
  %913 = vmatpush2.bf16.msra.mxu0 0
  %914 = vmatprep.subr.bf16.mxu0 0
  %915 = vmatpush2.bf16.msra.mxu0 0
  %916 = vmatprep.mubr.bf16.mxu0 0
  %917 = vmatmul.mubr.bf16.gmra.mxu0 %v193
  %v918 = vpop.f32.mrf.mxu0
  %v919 = vadd.f32 %v870, %v918
  %v920 = vpop.f32.mrf.mxu0
  %v921 = vpop.f32.mrf.mxu0
  %v922 = vadd.f32 %v870, %v921
  %v923 = vpop.f32.mrf.mxu0
  %924 = vdwg.mxu0
  %v925 = vpack.c.bf16 %v858, %v857
  %v926 = vpack.c.bf16 %v922, %v919
  %v928 = vsel %vm369, %v925, 0
  %v931 = vsel %vm369, %v926, 0
  %933 = vmatprep.subr.bf16.mxu0 0
  %934 = vmatpush1.bf16.xpose.msra.mxu0 0
  %935 = vmatprep.subr.bf16.mxu0 0
  %936 = vmatpush1.bf16.xpose.msra.mxu0 0
  %937 = vmatprep.subr.bf16.mxu0 0
  %938 = vmatpush1.bf16.xpose.msra.mxu0 0
  %939 = vmatprep.subr.bf16.mxu0 0
  %940 = vmatpush1.bf16.xpose.msra.mxu0 0
  %941 = vmatprep.subr.bf16.mxu0 0
  %942 = vmatpush1.bf16.xpose.msra.mxu0 0
  %943 = vmatprep.subr.bf16.mxu0 0
  %944 = vmatpush1.bf16.xpose.msra.mxu0 0
  %945 = vmatprep.subr.bf16.mxu0 0
  %946 = vmatpush1.bf16.xpose.msra.mxu0 0
  %947 = vmatprep.subr.bf16.mxu0 0
  %948 = vmatpush1.bf16.xpose.msra.mxu0 %v931
  %949 = vmatprep.subr.bf16.mxu0 0
  %950 = vmatpush2.bf16.xpose.msra.mxu0 0
  %951 = vmatprep.subr.bf16.mxu0 0
  %952 = vmatpush2.bf16.xpose.msra.mxu0 0
  %953 = vmatprep.subr.bf16.mxu0 0
  %954 = vmatpush2.bf16.xpose.msra.mxu0 0
  %955 = vmatprep.subr.bf16.mxu0 0
  %956 = vmatpush2.bf16.xpose.msra.mxu0 0
  %957 = vmatprep.subr.bf16.mxu0 0
  %958 = vmatpush2.bf16.xpose.msra.mxu0 0
  %959 = vmatprep.subr.bf16.mxu0 0
  %960 = vmatpush2.bf16.xpose.msra.mxu0 0
  %961 = vmatprep.subr.bf16.mxu0 0
  %962 = vmatpush2.bf16.xpose.msra.mxu0 0
  %963 = vmatprep.subr.bf16.mxu0 0
  %964 = vmatpush2.bf16.xpose.msra.mxu0 0
  %965 = vmatprep.mubr.bf16.mxu0 0
  %966 = vmatmul.mubr.bf16.gmra.mxu0 %v928
  %v967 = vpop.f32.mrf.mxu0
  %v968 = vadd.f32 0.0, %v967
  %v969 = vpop.f32.mrf.mxu0
  %v970 = vpop.f32.mrf.mxu0
  %v971 = vadd.f32 0.0, %v970
  %v972 = vpop.f32.mrf.mxu0
  %973 = vdwg.mxu0
  %s974 = scalar_lea.vmem [#allocation2], 48
  %975 = vst.msk [vmem:[%s974] sm:$0xff] %vm75, %v968
  %976 = vst.msk [vmem:[%s974 + $0x8] sm:$0xff] %vm75, %v971
  %v977 = vld [vmem:[#allocation2] sm:$0xff]
  %v978 = vld [vmem:[#allocation2 + $0x8] sm:$0xff]
  %v979 = vld [vmem:[#allocation2 + $0x10] sm:$0xff]
  %v980 = vld [vmem:[#allocation2 + $0x18] sm:$0xff]
  %v981 = vld [vmem:[#allocation2 + $0x20] sm:$0xff]
  %v982 = vld [vmem:[#allocation2 + $0x28] sm:$0xff]
  %v983 = vld [vmem:[#allocation2 + $0x30] sm:$0xff]
  %v984 = vld [vmem:[#allocation2 + $0x38] sm:$0xff]
  %v985 = vsel %vm75, %v977, -inf
  %v986 = vsel %vm75, %v979, -inf
  %v987 = vsel %vm75, %v981, -inf
  %v988 = vmax.f32 %v985, %v987
  %v989 = vsel %vm75, %v983, -inf
  %v990 = vmax.f32 %v986, %v989
  %v991 = vmax.f32 %v988, %v990
  %v992 = vsel %vm75, %v978, -inf
  %v993 = vsel %vm75, %v980, -inf
  %v994 = vsel %vm75, %v982, -inf
  %v995 = vmax.f32 %v992, %v994
  %v996 = vsel %vm75, %v984, -inf
  %v997 = vmax.f32 %v993, %v996
  %v998 = vmax.f32 %v995, %v997
  %v999 = vsub.f32 %v977, %v991
  %v1000 = vsub.f32 %v978, %v998
  %v1001 = vsub.f32 %v979, %v991
  %v1002 = vsub.f32 %v980, %v998
  %v1003 = vsub.f32 %v981, %v991
  %v1004 = vsub.f32 %v982, %v998
  %v1005 = vsub.f32 %v983, %v991
  %v1006 = vsub.f32 %v984, %v998
  %v1007 = vmul.f32 %v999, 1.442695
  %v1008 = vpow.pop %v1007
  %v1009 = vmul.f32 %v1000, 1.442695
  %v1010 = vpow.pop %v1009
  %v1011 = vmul.f32 %v1001, 1.442695
  %v1012 = vpow.pop %v1011
  %v1013 = vmul.f32 %v1002, 1.442695
  %v1014 = vpow.pop %v1013
  %v1015 = vmul.f32 %v1003, 1.442695
  %v1016 = vpow.pop %v1015
  %v1017 = vmul.f32 %v1004, 1.442695
  %v1018 = vpow.pop %v1017
  %v1019 = vmul.f32 %v1005, 1.442695
  %v1020 = vpow.pop %v1019
  %v1021 = vmul.f32 %v1006, 1.442695
  %v1022 = vpow.pop %v1021
  %v1023 = vsel %vm75, %v1008, 0.0
  %v1024 = vsel %vm75, %v1012, 0.0
  %v1025 = vadd.f32 %v1023, %v1024
  %v1026 = vsel %vm75, %v1016, 0.0
  %v1027 = vadd.f32 %v1025, %v1026
  %v1028 = vsel %vm75, %v1020, 0.0
  %v1029 = vadd.f32 %v1027, %v1028
  %v1030 = vsel %vm75, %v1010, 0.0
  %v1031 = vsel %vm75, %v1014, 0.0
  %v1032 = vadd.f32 %v1030, %v1031
  %v1033 = vsel %vm75, %v1018, 0.0
  %v1034 = vadd.f32 %v1032, %v1033
  %v1035 = vsel %vm75, %v1022, 0.0
  %v1036 = vadd.f32 %v1034, %v1035
  %v1037 = vrcp.pop %v1029
  %v1038 = vrcp.pop %v1036
  %v1039 = vmul.f32 %v1008, %v1037
  %v1040 = vmul.f32 %v1010, %v1038
  %v1041 = vmul.f32 %v1012, %v1037
  %v1042 = vmul.f32 %v1014, %v1038
  %v1043 = vmul.f32 %v1016, %v1037
  %v1044 = vmul.f32 %v1018, %v1038
  %v1045 = vmul.f32 %v1020, %v1037
  %v1046 = vmul.f32 %v1022, %v1038
  %v1047 = vld [vmem:[%s11] sm:$0xf]
  %v1048 = vld [vmem:[%s11 + $0x4] sm:$0xf]
  %v1049 = vld [vmem:[%s11 + $0x8] sm:$0xf]
  %v1050 = vld [vmem:[%s11 + $0xc] sm:$0xf]
  %v1051 = vld [vmem:[%s12] sm:$0x1]
  %v1053 = vlaneseq
  %v1054 = vshrl.u32 %v1053, 7
  %v1055 = vsub.s32 0, %v1054
  %v1056 = vrot.slane %v1051, %v1055
  %v1062 = vunpack.c.l.b16 %v1047
  %v1063 = vunpack.c.l.b16 %v1048
  %v1064 = vunpack.c.l.b16 %v1049
  %v1065 = vunpack.c.l.b16 %v1050
  %v1066 = vpack.c.b16 %v1063, %v1062
  %v1067 = vpack.c.b16 %v1065, %v1064
  %v1071 = vsel %vm122, %v236, 0
  %1073 = vmatprep.subr.bf16.mxu0 0
  %1074 = vmatpush1.bf16.msra.mxu0 0
  %1075 = vmatprep.subr.bf16.mxu0 0
  %1076 = vmatpush1.bf16.msra.mxu0 0
  %1077 = vmatprep.subr.bf16.mxu0 0
  %1078 = vmatpush1.bf16.msra.mxu0 0
  %1079 = vmatprep.subr.bf16.mxu0 0
  %1080 = vmatpush1.bf16.msra.mxu0 0
  %1081 = vmatprep.subr.bf16.mxu0 0
  %1082 = vmatpush1.bf16.msra.mxu0 0
  %1083 = vmatprep.subr.bf16.mxu0 0
  %1084 = vmatpush1.bf16.msra.mxu0 0
  %1085 = vmatprep.subr.bf16.mxu0 0
  %1086 = vmatpush1.bf16.msra.mxu0 %v1067
  %1087 = vmatprep.subr.bf16.mxu0 0
  %1088 = vmatpush1.bf16.msra.mxu0 %v1066
  %1089 = vmatprep.subr.bf16.mxu0 0
  %1090 = vmatpush2.bf16.msra.mxu0 0
  %1091 = vmatprep.subr.bf16.mxu0 0
  %1092 = vmatpush2.bf16.msra.mxu0 0
  %1093 = vmatprep.subr.bf16.mxu0 0
  %1094 = vmatpush2.bf16.msra.mxu0 0
  %1095 = vmatprep.subr.bf16.mxu0 0
  %1096 = vmatpush2.bf16.msra.mxu0 0
  %1097 = vmatprep.subr.bf16.mxu0 0
  %1098 = vmatpush2.bf16.msra.mxu0 0
  %1099 = vmatprep.subr.bf16.mxu0 0
  %1100 = vmatpush2.bf16.msra.mxu0 0
  %1101 = vmatprep.subr.bf16.mxu0 0
  %1102 = vmatpush2.bf16.msra.mxu0 0
  %1103 = vmatprep.subr.bf16.mxu0 0
  %1104 = vmatpush2.bf16.msra.mxu0 0
  %1105 = vmatprep.mubr.bf16.mxu0 0
  %1106 = vmatmul.mubr.bf16.gmra.mxu0 %v1071
  %v1107 = vpop.f32.mrf.mxu0
  %v1108 = vadd.f32 %v1056, %v1107
  %v1109 = vpop.f32.mrf.mxu0
  %v1110 = vpop.f32.mrf.mxu0
  %v1111 = vadd.f32 %v1056, %v1110
  %v1112 = vpop.f32.mrf.mxu0
  %1113 = vdwg.mxu0
  %v1114 = vpack.c.bf16 %v1040, %v1039
  %v1115 = vpack.c.bf16 %v1111, %v1108
  %s1116 = scalar_lea.vmem %s11, 16
  %v1117 = vld [vmem:[%s1116] sm:$0xf]
  %v1118 = vld [vmem:[%s1116 + $0x4] sm:$0xf]
  %v1119 = vld [vmem:[%s1116 + $0x8] sm:$0xf]
  %v1120 = vld [vmem:[%s1116 + $0xc] sm:$0xf]
  %s1121 = scalar_lea.vmem %s12, 1
  %v1122 = vld [vmem:[%s1121] sm:$0x1]
  %v1124 = vlaneseq
  %v1125 = vshrl.u32 %v1124, 7
  %v1126 = vsub.s32 0, %v1125
  %v1127 = vrot.slane %v1122, %v1126
  %v1133 = vunpack.c.l.b16 %v1117
  %v1134 = vunpack.c.l.b16 %v1118
  %v1135 = vunpack.c.l.b16 %v1119
  %v1136 = vunpack.c.l.b16 %v1120
  %v1137 = vpack.c.b16 %v1134, %v1133
  %v1138 = vpack.c.b16 %v1136, %v1135
  %1141 = vmatprep.subr.bf16.mxu0 0
  %1142 = vmatpush1.bf16.msra.mxu0 0
  %1143 = vmatprep.subr.bf16.mxu0 0
  %1144 = vmatpush1.bf16.msra.mxu0 0
  %1145 = vmatprep.subr.bf16.mxu0 0
  %1146 = vmatpush1.bf16.msra.mxu0 0
  %1147 = vmatprep.subr.bf16.mxu0 0
  %1148 = vmatpush1.bf16.msra.mxu0 0
  %1149 = vmatprep.subr.bf16.mxu0 0
  %1150 = vmatpush1.bf16.msra.mxu0 0
  %1151 = vmatprep.subr.bf16.mxu0 0
  %1152 = vmatpush1.bf16.msra.mxu0 0
  %1153 = vmatprep.subr.bf16.mxu0 0
  %1154 = vmatpush1.bf16.msra.mxu0 %v1138
  %1155 = vmatprep.subr.bf16.mxu0 0
  %1156 = vmatpush1.bf16.msra.mxu0 %v1137
  %1157 = vmatprep.subr.bf16.mxu0 0
  %1158 = vmatpush2.bf16.msra.mxu0 0
  %1159 = vmatprep.subr.bf16.mxu0 0
  %1160 = vmatpush2.bf16.msra.mxu0 0
  %1161 = vmatprep.subr.bf16.mxu0 0
  %1162 = vmatpush2.bf16.msra.mxu0 0
  %1163 = vmatprep.subr.bf16.mxu0 0
  %1164 = vmatpush2.bf16.msra.mxu0 0
  %1165 = vmatprep.subr.bf16.mxu0 0
  %1166 = vmatpush2.bf16.msra.mxu0 0
  %1167 = vmatprep.subr.bf16.mxu0 0
  %1168 = vmatpush2.bf16.msra.mxu0 0
  %1169 = vmatprep.subr.bf16.mxu0 0
  %1170 = vmatpush2.bf16.msra.mxu0 0
  %1171 = vmatprep.subr.bf16.mxu0 0
  %1172 = vmatpush2.bf16.msra.mxu0 0
  %1173 = vmatprep.mubr.bf16.mxu0 0
  %1174 = vmatmul.mubr.bf16.gmra.mxu0 %v1071
  %v1175 = vpop.f32.mrf.mxu0
  %v1176 = vadd.f32 %v1127, %v1175
  %v1177 = vpop.f32.mrf.mxu0
  %v1178 = vpop.f32.mrf.mxu0
  %v1179 = vadd.f32 %v1127, %v1178
  %v1180 = vpop.f32.mrf.mxu0
  %1181 = vdwg.mxu0
  %v1182 = vpack.c.bf16 %v1042, %v1041
  %v1183 = vpack.c.bf16 %v1179, %v1176
  %v1185 = vsel %vm75, %v1182, 0
  %1187 = vmatprep.subr.bf16.mxu0 0
  %1188 = vmatpush1.bf16.msra.mxu0 0
  %1189 = vmatprep.subr.bf16.mxu0 0
  %1190 = vmatpush1.bf16.msra.mxu0 0
  %1191 = vmatprep.subr.bf16.mxu0 0
  %1192 = vmatpush1.bf16.msra.mxu0 0
  %1193 = vmatprep.subr.bf16.mxu0 0
  %1194 = vmatpush1.bf16.msra.mxu0 0
  %1195 = vmatprep.subr.bf16.mxu0 0
  %1196 = vmatpush1.bf16.msra.mxu0 0
  %1197 = vmatprep.subr.bf16.mxu0 0
  %1198 = vmatpush1.bf16.msra.mxu0 0
  %1199 = vmatprep.subr.bf16.mxu0 0
  %1200 = vmatpush1.bf16.msra.mxu0 0
  %1201 = vmatprep.subr.bf16.mxu0 0
  %1202 = vmatpush1.bf16.msra.mxu0 %v1183
  %1203 = vmatprep.subr.bf16.mxu0 0
  %1204 = vmatpush2.bf16.msra.mxu0 0
  %1205 = vmatprep.subr.bf16.mxu0 0
  %1206 = vmatpush2.bf16.msra.mxu0 0
  %1207 = vmatprep.subr.bf16.mxu0 0
  %1208 = vmatpush2.bf16.msra.mxu0 0
  %1209 = vmatprep.subr.bf16.mxu0 0
  %1210 = vmatpush2.bf16.msra.mxu0 0
  %1211 = vmatprep.subr.bf16.mxu0 0
  %1212 = vmatpush2.bf16.msra.mxu0 0
  %1213 = vmatprep.subr.bf16.mxu0 0
  %1214 = vmatpush2.bf16.msra.mxu0 0
  %1215 = vmatprep.subr.bf16.mxu0 0
  %1216 = vmatpush2.bf16.msra.mxu0 0
  %1217 = vmatprep.subr.bf16.mxu0 0
  %1218 = vmatpush2.bf16.msra.mxu0 0
  %1219 = vmatprep.mubr.bf16.mxu0 0
  %1220 = vmatmul.mubr.bf16.gmra.mxu0 %v1185
  %v1221 = vpop.f32.mrf.mxu0
  %v1222 = vadd.f32 0.0, %v1221
  %v1223 = vpop.f32.mrf.mxu0
  %v1224 = vpop.f32.mrf.mxu0
  %v1225 = vadd.f32 0.0, %v1224
  %v1226 = vpop.f32.mrf.mxu0
  %1227 = vdwg.mxu0
  %v1229 = vsel %vm75, %v1114, 0
  %1231 = vmatprep.subr.bf16.mxu0 0
  %1232 = vmatpush1.bf16.msra.mxu0 0
  %1233 = vmatprep.subr.bf16.mxu0 0
  %1234 = vmatpush1.bf16.msra.mxu0 0
  %1235 = vmatprep.subr.bf16.mxu0 0
  %1236 = vmatpush1.bf16.msra.mxu0 0
  %1237 = vmatprep.subr.bf16.mxu0 0
  %1238 = vmatpush1.bf16.msra.mxu0 0
  %1239 = vmatprep.subr.bf16.mxu0 0
  %1240 = vmatpush1.bf16.msra.mxu0 0
  %1241 = vmatprep.subr.bf16.mxu0 0
  %1242 = vmatpush1.bf16.msra.mxu0 0
  %1243 = vmatprep.subr.bf16.mxu0 0
  %1244 = vmatpush1.bf16.msra.mxu0 0
  %1245 = vmatprep.subr.bf16.mxu0 0
  %1246 = vmatpush1.bf16.msra.mxu0 %v1115
  %1247 = vmatprep.subr.bf16.mxu0 0
  %1248 = vmatpush2.bf16.msra.mxu0 0
  %1249 = vmatprep.subr.bf16.mxu0 0
  %1250 = vmatpush2.bf16.msra.mxu0 0
  %1251 = vmatprep.subr.bf16.mxu0 0
  %1252 = vmatpush2.bf16.msra.mxu0 0
  %1253 = vmatprep.subr.bf16.mxu0 0
  %1254 = vmatpush2.bf16.msra.mxu0 0
  %1255 = vmatprep.subr.bf16.mxu0 0
  %1256 = vmatpush2.bf16.msra.mxu0 0
  %1257 = vmatprep.subr.bf16.mxu0 0
  %1258 = vmatpush2.bf16.msra.mxu0 0
  %1259 = vmatprep.subr.bf16.mxu0 0
  %1260 = vmatpush2.bf16.msra.mxu0 0
  %1261 = vmatprep.subr.bf16.mxu0 0
  %1262 = vmatpush2.bf16.msra.mxu0 0
  %1263 = vmatprep.mubr.bf16.mxu0 0
  %1264 = vmatmul.mubr.bf16.gmra.mxu0 %v1229
  %v1265 = vpop.f32.mrf.mxu0
  %v1266 = vadd.f32 %v1222, %v1265
  %v1267 = vpop.f32.mrf.mxu0
  %v1268 = vpop.f32.mrf.mxu0
  %v1269 = vadd.f32 %v1225, %v1268
  %v1270 = vpop.f32.mrf.mxu0
  %1271 = vdwg.mxu0
  %s1272 = scalar_lea.vmem %s11, 32
  %v1273 = vld [vmem:[%s1272] sm:$0xf]
  %v1274 = vld [vmem:[%s1272 + $0x4] sm:$0xf]
  %v1275 = vld [vmem:[%s1272 + $0x8] sm:$0xf]
  %v1276 = vld [vmem:[%s1272 + $0xc] sm:$0xf]
  %s1277 = scalar_lea.vmem %s12, 2
  %v1278 = vld [vmem:[%s1277] sm:$0x1]
  %v1280 = vlaneseq
  %v1281 = vshrl.u32 %v1280, 7
  %v1282 = vsub.s32 0, %v1281
  %v1283 = vrot.slane %v1278, %v1282
  %v1289 = vunpack.c.l.b16 %v1273
  %v1290 = vunpack.c.l.b16 %v1274
  %v1291 = vunpack.c.l.b16 %v1275
  %v1292 = vunpack.c.l.b16 %v1276
  %v1293 = vpack.c.b16 %v1290, %v1289
  %v1294 = vpack.c.b16 %v1292, %v1291
  %1297 = vmatprep.subr.bf16.mxu0 0
  %1298 = vmatpush1.bf16.msra.mxu0 0
  %1299 = vmatprep.subr.bf16.mxu0 0
  %1300 = vmatpush1.bf16.msra.mxu0 0
  %1301 = vmatprep.subr.bf16.mxu0 0
  %1302 = vmatpush1.bf16.msra.mxu0 0
  %1303 = vmatprep.subr.bf16.mxu0 0
  %1304 = vmatpush1.bf16.msra.mxu0 0
  %1305 = vmatprep.subr.bf16.mxu0 0
  %1306 = vmatpush1.bf16.msra.mxu0 0
  %1307 = vmatprep.subr.bf16.mxu0 0
  %1308 = vmatpush1.bf16.msra.mxu0 0
  %1309 = vmatprep.subr.bf16.mxu0 0
  %1310 = vmatpush1.bf16.msra.mxu0 %v1294
  %1311 = vmatprep.subr.bf16.mxu0 0
  %1312 = vmatpush1.bf16.msra.mxu0 %v1293
  %1313 = vmatprep.subr.bf16.mxu0 0
  %1314 = vmatpush2.bf16.msra.mxu0 0
  %1315 = vmatprep.subr.bf16.mxu0 0
  %1316 = vmatpush2.bf16.msra.mxu0 0
  %1317 = vmatprep.subr.bf16.mxu0 0
  %1318 = vmatpush2.bf16.msra.mxu0 0
  %1319 = vmatprep.subr.bf16.mxu0 0
  %1320 = vmatpush2.bf16.msra.mxu0 0
  %1321 = vmatprep.subr.bf16.mxu0 0
  %1322 = vmatpush2.bf16.msra.mxu0 0
  %1323 = vmatprep.subr.bf16.mxu0 0
  %1324 = vmatpush2.bf16.msra.mxu0 0
  %1325 = vmatprep.subr.bf16.mxu0 0
  %1326 = vmatpush2.bf16.msra.mxu0 0
  %1327 = vmatprep.subr.bf16.mxu0 0
  %1328 = vmatpush2.bf16.msra.mxu0 0
  %1329 = vmatprep.mubr.bf16.mxu0 0
  %1330 = vmatmul.mubr.bf16.gmra.mxu0 %v1071
  %v1331 = vpop.f32.mrf.mxu0
  %v1332 = vadd.f32 %v1283, %v1331
  %v1333 = vpop.f32.mrf.mxu0
  %v1334 = vpop.f32.mrf.mxu0
  %v1335 = vadd.f32 %v1283, %v1334
  %v1336 = vpop.f32.mrf.mxu0
  %1337 = vdwg.mxu0
  %v1338 = vpack.c.bf16 %v1044, %v1043
  %v1339 = vpack.c.bf16 %v1335, %v1332
  %v1341 = vsel %vm75, %v1338, 0
  %1343 = vmatprep.subr.bf16.mxu0 0
  %1344 = vmatpush1.bf16.msra.mxu0 0
  %1345 = vmatprep.subr.bf16.mxu0 0
  %1346 = vmatpush1.bf16.msra.mxu0 0
  %1347 = vmatprep.subr.bf16.mxu0 0
  %1348 = vmatpush1.bf16.msra.mxu0 0
  %1349 = vmatprep.subr.bf16.mxu0 0
  %1350 = vmatpush1.bf16.msra.mxu0 0
  %1351 = vmatprep.subr.bf16.mxu0 0
  %1352 = vmatpush1.bf16.msra.mxu0 0
  %1353 = vmatprep.subr.bf16.mxu0 0
  %1354 = vmatpush1.bf16.msra.mxu0 0
  %1355 = vmatprep.subr.bf16.mxu0 0
  %1356 = vmatpush1.bf16.msra.mxu0 0
  %1357 = vmatprep.subr.bf16.mxu0 0
  %1358 = vmatpush1.bf16.msra.mxu0 %v1339
  %1359 = vmatprep.subr.bf16.mxu0 0
  %1360 = vmatpush2.bf16.msra.mxu0 0
  %1361 = vmatprep.subr.bf16.mxu0 0
  %1362 = vmatpush2.bf16.msra.mxu0 0
  %1363 = vmatprep.subr.bf16.mxu0 0
  %1364 = vmatpush2.bf16.msra.mxu0 0
  %1365 = vmatprep.subr.bf16.mxu0 0
  %1366 = vmatpush2.bf16.msra.mxu0 0
  %1367 = vmatprep.subr.bf16.mxu0 0
  %1368 = vmatpush2.bf16.msra.mxu0 0
  %1369 = vmatprep.subr.bf16.mxu0 0
  %1370 = vmatpush2.bf16.msra.mxu0 0
  %1371 = vmatprep.subr.bf16.mxu0 0
  %1372 = vmatpush2.bf16.msra.mxu0 0
  %1373 = vmatprep.subr.bf16.mxu0 0
  %1374 = vmatpush2.bf16.msra.mxu0 0
  %1375 = vmatprep.mubr.bf16.mxu0 0
  %1376 = vmatmul.mubr.bf16.gmra.mxu0 %v1341
  %v1377 = vpop.f32.mrf.mxu0
  %v1378 = vadd.f32 0.0, %v1377
  %v1379 = vpop.f32.mrf.mxu0
  %v1380 = vpop.f32.mrf.mxu0
  %v1381 = vadd.f32 0.0, %v1380
  %v1382 = vpop.f32.mrf.mxu0
  %1383 = vdwg.mxu0
  %v1384 = vadd.f32 %v1266, %v1378
  %v1385 = vadd.f32 %v1269, %v1381
  %s1386 = scalar_lea.vmem %s11, 48
  %v1387 = vld [vmem:[%s1386] sm:$0xf]
  %v1388 = vld [vmem:[%s1386 + $0x4] sm:$0xf]
  %v1389 = vld [vmem:[%s1386 + $0x8] sm:$0xf]
  %v1390 = vld [vmem:[%s1386 + $0xc] sm:$0xf]
  %s1391 = scalar_lea.vmem %s12, 3
  %v1392 = vld [vmem:[%s1391] sm:$0x1]
  %v1394 = vlaneseq
  %v1395 = vshrl.u32 %v1394, 7
  %v1396 = vsub.s32 0, %v1395
  %v1397 = vrot.slane %v1392, %v1396
  %v1403 = vunpack.c.l.b16 %v1387
  %v1404 = vunpack.c.l.b16 %v1388
  %v1405 = vunpack.c.l.b16 %v1389
  %v1406 = vunpack.c.l.b16 %v1390
  %v1407 = vpack.c.b16 %v1404, %v1403
  %v1408 = vpack.c.b16 %v1406, %v1405
  %1411 = vmatprep.subr.bf16.mxu0 0
  %1412 = vmatpush1.bf16.msra.mxu0 0
  %1413 = vmatprep.subr.bf16.mxu0 0
  %1414 = vmatpush1.bf16.msra.mxu0 0
  %1415 = vmatprep.subr.bf16.mxu0 0
  %1416 = vmatpush1.bf16.msra.mxu0 0
  %1417 = vmatprep.subr.bf16.mxu0 0
  %1418 = vmatpush1.bf16.msra.mxu0 0
  %1419 = vmatprep.subr.bf16.mxu0 0
  %1420 = vmatpush1.bf16.msra.mxu0 0
  %1421 = vmatprep.subr.bf16.mxu0 0
  %1422 = vmatpush1.bf16.msra.mxu0 0
  %1423 = vmatprep.subr.bf16.mxu0 0
  %1424 = vmatpush1.bf16.msra.mxu0 %v1408
  %1425 = vmatprep.subr.bf16.mxu0 0
  %1426 = vmatpush1.bf16.msra.mxu0 %v1407
  %1427 = vmatprep.subr.bf16.mxu0 0
  %1428 = vmatpush2.bf16.msra.mxu0 0
  %1429 = vmatprep.subr.bf16.mxu0 0
  %1430 = vmatpush2.bf16.msra.mxu0 0
  %1431 = vmatprep.subr.bf16.mxu0 0
  %1432 = vmatpush2.bf16.msra.mxu0 0
  %1433 = vmatprep.subr.bf16.mxu0 0
  %1434 = vmatpush2.bf16.msra.mxu0 0
  %1435 = vmatprep.subr.bf16.mxu0 0
  %1436 = vmatpush2.bf16.msra.mxu0 0
  %1437 = vmatprep.subr.bf16.mxu0 0
  %1438 = vmatpush2.bf16.msra.mxu0 0
  %1439 = vmatprep.subr.bf16.mxu0 0
  %1440 = vmatpush2.bf16.msra.mxu0 0
  %1441 = vmatprep.subr.bf16.mxu0 0
  %1442 = vmatpush2.bf16.msra.mxu0 0
  %1443 = vmatprep.mubr.bf16.mxu0 0
  %1444 = vmatmul.mubr.bf16.gmra.mxu0 %v1071
  %v1445 = vpop.f32.mrf.mxu0
  %v1446 = vadd.f32 %v1397, %v1445
  %v1447 = vpop.f32.mrf.mxu0
  %v1448 = vpop.f32.mrf.mxu0
  %v1449 = vadd.f32 %v1397, %v1448
  %v1450 = vpop.f32.mrf.mxu0
  %1451 = vdwg.mxu0
  %v1452 = vpack.c.bf16 %v1046, %v1045
  %v1453 = vpack.c.bf16 %v1449, %v1446
  %v1455 = vsel %vm75, %v1452, 0
  %1457 = vmatprep.subr.bf16.mxu0 0
  %1458 = vmatpush1.bf16.msra.mxu0 0
  %1459 = vmatprep.subr.bf16.mxu0 0
  %1460 = vmatpush1.bf16.msra.mxu0 0
  %1461 = vmatprep.subr.bf16.mxu0 0
  %1462 = vmatpush1.bf16.msra.mxu0 0
  %1463 = vmatprep.subr.bf16.mxu0 0
  %1464 = vmatpush1.bf16.msra.mxu0 0
  %1465 = vmatprep.subr.bf16.mxu0 0
  %1466 = vmatpush1.bf16.msra.mxu0 0
  %1467 = vmatprep.subr.bf16.mxu0 0
  %1468 = vmatpush1.bf16.msra.mxu0 0
  %1469 = vmatprep.subr.bf16.mxu0 0
  %1470 = vmatpush1.bf16.msra.mxu0 0
  %1471 = vmatprep.subr.bf16.mxu0 0
  %1472 = vmatpush1.bf16.msra.mxu0 %v1453
  %1473 = vmatprep.subr.bf16.mxu0 0
  %1474 = vmatpush2.bf16.msra.mxu0 0
  %1475 = vmatprep.subr.bf16.mxu0 0
  %1476 = vmatpush2.bf16.msra.mxu0 0
  %1477 = vmatprep.subr.bf16.mxu0 0
  %1478 = vmatpush2.bf16.msra.mxu0 0
  %1479 = vmatprep.subr.bf16.mxu0 0
  %1480 = vmatpush2.bf16.msra.mxu0 0
  %1481 = vmatprep.subr.bf16.mxu0 0
  %1482 = vmatpush2.bf16.msra.mxu0 0
  %1483 = vmatprep.subr.bf16.mxu0 0
  %1484 = vmatpush2.bf16.msra.mxu0 0
  %1485 = vmatprep.subr.bf16.mxu0 0
  %1486 = vmatpush2.bf16.msra.mxu0 0
  %1487 = vmatprep.subr.bf16.mxu0 0
  %1488 = vmatpush2.bf16.msra.mxu0 0
  %1489 = vmatprep.mubr.bf16.mxu0 0
  %1490 = vmatmul.mubr.bf16.gmra.mxu0 %v1455
  %v1491 = vpop.f32.mrf.mxu0
  %v1492 = vadd.f32 0.0, %v1491
  %v1493 = vpop.f32.mrf.mxu0
  %v1494 = vpop.f32.mrf.mxu0
  %v1495 = vadd.f32 0.0, %v1494
  %v1496 = vpop.f32.mrf.mxu0
  %1497 = vdwg.mxu0
  %v1498 = vadd.f32 %v1384, %v1492
  %v1499 = vadd.f32 %v1385, %v1495
  %v1500 = vmul.f32 %v1498, 0.25
  %v1501 = vmul.f32 %v1499, 0.25
  %v1502 = vmul.f32 %v1500, 0.5
  %v1503 = vmul.f32 %v1501, 0.5
  %v1504 = vmul.f32 %v166, 0.5
  %v1505 = vmul.f32 %v167, 0.5
  %v1506 = vadd.f32 %v1502, %v1504
  %v1507 = vadd.f32 %v1503, %v1505
  %v1508 = vld [vmem:[%s13] sm:$0x1]
  %v1509 = vld [vmem:[%s14] sm:$0x1]
  %v1510 = vsel %vm122, %v1506, 0.0
  %1511 = vadd.xlane.f32.xlu0 %v1510
  %v1512 = vpop.xlane.xlu0 %1511
  %v1513 = vsel %vm122, %v1507, 0.0
  %1514 = vadd.xlane.f32.xlu0 %v1513
  %v1515 = vpop.xlane.xlu0 %1514
  %v1516 = vmul.f32 %v1512, %v129
  %v1517 = vmul.f32 %v1515, %v129
  %v1518 = vsub.f32 %v1506, %v1516
  %v1519 = vsub.f32 %v1507, %v1517
  %v1520 = vmul.f32 %v1518, %v1518
  %v1521 = vmul.f32 %v1519, %v1519
  %v1522 = vsel %vm122, %v1520, 0.0
  %1523 = vadd.xlane.f32.xlu0 %v1522
  %v1524 = vpop.xlane.xlu0 %1523
  %v1525 = vsel %vm122, %v1521, 0.0
  %1526 = vadd.xlane.f32.xlu0 %v1525
  %v1527 = vpop.xlane.xlu0 %1526
  %v1528 = vmul.f32 %v1524, %v129
  %v1529 = vmul.f32 %v1527, %v129
  %v1530 = vadd.f32 %v1528, 1e-05
  %v1531 = vadd.f32 %v1529, 1e-05
  %v1532 = vrsqrt.pop %v1530
  %v1533 = vrsqrt.pop %v1531
  %v1534 = vmul.f32 %v1518, %v1532
  %v1535 = vmul.f32 %v1519, %v1533
  %v1537 = vlaneseq
  %v1538 = vshrl.u32 %v1537, 7
  %v1539 = vsub.s32 0, %v1538
  %v1540 = vrot.slane %v1508, %v1539
  %v1542 = vmul.f32 %v1534, %v1540
  %v1543 = vmul.f32 %v1535, %v1540
  %v1545 = vlaneseq
  %v1546 = vshrl.u32 %v1545, 7
  %v1547 = vsub.s32 0, %v1546
  %v1548 = vrot.slane %v1509, %v1547
  %v1550 = vadd.f32 %v1542, %v1548
  %v1551 = vadd.f32 %v1543, %v1548
  %v1552 = vpack.c.bf16 %v1551, %v1550
  %s1553 = scalar_lea.vmem %s5, 16
  %v1554 = vld [vmem:[%s1553] sm:$0xf]
  %v1555 = vld [vmem:[%s1553 + $0x4] sm:$0xf]
  %v1556 = vld [vmem:[%s1553 + $0x8] sm:$0xf]
  %v1557 = vld [vmem:[%s1553 + $0xc] sm:$0xf]
  %s1558 = scalar_lea.vmem %s6, 1
  %v1559 = vld [vmem:[%s1558] sm:$0x1]
  %v1561 = vlaneseq
  %v1562 = vshrl.u32 %v1561, 7
  %v1563 = vsub.s32 0, %v1562
  %v1564 = vrot.slane %v1559, %v1563
  %v1570 = vunpack.c.l.b16 %v1554
  %v1571 = vunpack.c.l.b16 %v1555
  %v1572 = vunpack.c.l.b16 %v1556
  %v1573 = vunpack.c.l.b16 %v1557
  %v1574 = vpack.c.b16 %v1571, %v1570
  %v1575 = vpack.c.b16 %v1573, %v1572
  %v1579 = vsel %vm122, %v1552, 0
  %1581 = vmatprep.subr.bf16.mxu0 0
  %1582 = vmatpush1.bf16.msra.mxu0 0
  %1583 = vmatprep.subr.bf16.mxu0 0
  %1584 = vmatpush1.bf16.msra.mxu0 0
  %1585 = vmatprep.subr.bf16.mxu0 0
  %1586 = vmatpush1.bf16.msra.mxu0 0
  %1587 = vmatprep.subr.bf16.mxu0 0
  %1588 = vmatpush1.bf16.msra.mxu0 0
  %1589 = vmatprep.subr.bf16.mxu0 0
  %1590 = vmatpush1.bf16.msra.mxu0 0
  %1591 = vmatprep.subr.bf16.mxu0 0
  %1592 = vmatpush1.bf16.msra.mxu0 0
  %1593 = vmatprep.subr.bf16.mxu0 0
  %1594 = vmatpush1.bf16.msra.mxu0 %v1575
  %1595 = vmatprep.subr.bf16.mxu0 0
  %1596 = vmatpush1.bf16.msra.mxu0 %v1574
  %1597 = vmatprep.subr.bf16.mxu0 0
  %1598 = vmatpush2.bf16.msra.mxu0 0
  %1599 = vmatprep.subr.bf16.mxu0 0
  %1600 = vmatpush2.bf16.msra.mxu0 0
  %1601 = vmatprep.subr.bf16.mxu0 0
  %1602 = vmatpush2.bf16.msra.mxu0 0
  %1603 = vmatprep.subr.bf16.mxu0 0
  %1604 = vmatpush2.bf16.msra.mxu0 0
  %1605 = vmatprep.subr.bf16.mxu0 0
  %1606 = vmatpush2.bf16.msra.mxu0 0
  %1607 = vmatprep.subr.bf16.mxu0 0
  %1608 = vmatpush2.bf16.msra.mxu0 0
  %1609 = vmatprep.subr.bf16.mxu0 0
  %1610 = vmatpush2.bf16.msra.mxu0 0
  %1611 = vmatprep.subr.bf16.mxu0 0
  %1612 = vmatpush2.bf16.msra.mxu0 0
  %1613 = vmatprep.mubr.bf16.mxu0 0
  %1614 = vmatmul.mubr.bf16.gmra.mxu0 %v1579
  %v1615 = vpop.f32.mrf.mxu0
  %v1616 = vadd.f32 %v1564, %v1615
  %v1617 = vpop.f32.mrf.mxu0
  %v1618 = vpop.f32.mrf.mxu0
  %v1619 = vadd.f32 %v1564, %v1618
  %v1620 = vpop.f32.mrf.mxu0
  %1621 = vdwg.mxu0
  %v1622 = vpack.c.bf16 %v1619, %v1616
  %s1623 = scalar_lea.vmem %s7, 64
  %v1624 = vld [vmem:[%s1623] sm:$0xf]
  %v1625 = vld [vmem:[%s1623 + $0x4] sm:$0xf]
  %v1626 = vld [vmem:[%s1623 + $0x8] sm:$0xf]
  %v1627 = vld [vmem:[%s1623 + $0xc] sm:$0xf]
  %s1628 = scalar_lea.vmem %s8, 4
  %v1629 = vld [vmem:[%s1628] sm:$0x1]
  %v1631 = vlaneseq
  %v1632 = vshrl.u32 %v1631, 7
  %v1633 = vsub.s32 0, %v1632
  %v1634 = vrot.slane %v1629, %v1633
  %v1640 = vunpack.c.l.b16 %v1624
  %v1641 = vunpack.c.l.b16 %v1625
  %v1642 = vunpack.c.l.b16 %v1626
  %v1643 = vunpack.c.l.b16 %v1627
  %v1644 = vpack.c.b16 %v1641, %v1640
  %v1645 = vpack.c.b16 %v1643, %v1642
  %1648 = vmatprep.subr.bf16.mxu0 0
  %1649 = vmatpush1.bf16.msra.mxu0 0
  %1650 = vmatprep.subr.bf16.mxu0 0
  %1651 = vmatpush1.bf16.msra.mxu0 0
  %1652 = vmatprep.subr.bf16.mxu0 0
  %1653 = vmatpush1.bf16.msra.mxu0 0
  %1654 = vmatprep.subr.bf16.mxu0 0
  %1655 = vmatpush1.bf16.msra.mxu0 0
  %1656 = vmatprep.subr.bf16.mxu0 0
  %1657 = vmatpush1.bf16.msra.mxu0 0
  %1658 = vmatprep.subr.bf16.mxu0 0
  %1659 = vmatpush1.bf16.msra.mxu0 0
  %1660 = vmatprep.subr.bf16.mxu0 0
  %1661 = vmatpush1.bf16.msra.mxu0 %v1645
  %1662 = vmatprep.subr.bf16.mxu0 0
  %1663 = vmatpush1.bf16.msra.mxu0 %v1644
  %1664 = vmatprep.subr.bf16.mxu0 0
  %1665 = vmatpush2.bf16.msra.mxu0 0
  %1666 = vmatprep.subr.bf16.mxu0 0
  %1667 = vmatpush2.bf16.msra.mxu0 0
  %1668 = vmatprep.subr.bf16.mxu0 0
  %1669 = vmatpush2.bf16.msra.mxu0 0
  %1670 = vmatprep.subr.bf16.mxu0 0
  %1671 = vmatpush2.bf16.msra.mxu0 0
  %1672 = vmatprep.subr.bf16.mxu0 0
  %1673 = vmatpush2.bf16.msra.mxu0 0
  %1674 = vmatprep.subr.bf16.mxu0 0
  %1675 = vmatpush2.bf16.msra.mxu0 0
  %1676 = vmatprep.subr.bf16.mxu0 0
  %1677 = vmatpush2.bf16.msra.mxu0 0
  %1678 = vmatprep.subr.bf16.mxu0 0
  %1679 = vmatpush2.bf16.msra.mxu0 0
  %1680 = vmatprep.mubr.bf16.mxu0 0
  %1681 = vmatmul.mubr.bf16.gmra.mxu0 %v1579
  %v1682 = vpop.f32.mrf.mxu0
  %v1683 = vadd.f32 %v1634, %v1682
  %v1684 = vpop.f32.mrf.mxu0
  %v1685 = vpop.f32.mrf.mxu0
  %v1686 = vadd.f32 %v1634, %v1685
  %v1687 = vpop.f32.mrf.mxu0
  %1688 = vdwg.mxu0
  %v1689 = vmul.f32 %v1683, 0.35355338
  %v1690 = vmul.f32 %v1686, 0.35355338
  %s1691 = scalar_lea.vmem %s9, 64
  %v1692 = vld [vmem:[%s1691] sm:$0xf]
  %v1693 = vld [vmem:[%s1691 + $0x4] sm:$0xf]
  %v1694 = vld [vmem:[%s1691 + $0x8] sm:$0xf]
  %v1695 = vld [vmem:[%s1691 + $0xc] sm:$0xf]
  %s1696 = scalar_lea.vmem %s10, 4
  %v1697 = vld [vmem:[%s1696] sm:$0x1]
  %v1699 = vlaneseq
  %v1700 = vshrl.u32 %v1699, 7
  %v1701 = vsub.s32 0, %v1700
  %v1702 = vrot.slane %v1697, %v1701
  %v1708 = vunpack.c.l.b16 %v1692
  %v1709 = vunpack.c.l.b16 %v1693
  %v1710 = vunpack.c.l.b16 %v1694
  %v1711 = vunpack.c.l.b16 %v1695
  %v1712 = vpack.c.b16 %v1709, %v1708
  %v1713 = vpack.c.b16 %v1711, %v1710
  %1716 = vmatprep.subr.bf16.mxu0 0
  %1717 = vmatpush1.bf16.msra.mxu0 0
  %1718 = vmatprep.subr.bf16.mxu0 0
  %1719 = vmatpush1.bf16.msra.mxu0 0
  %1720 = vmatprep.subr.bf16.mxu0 0
  %1721 = vmatpush1.bf16.msra.mxu0 0
  %1722 = vmatprep.subr.bf16.mxu0 0
  %1723 = vmatpush1.bf16.msra.mxu0 0
  %1724 = vmatprep.subr.bf16.mxu0 0
  %1725 = vmatpush1.bf16.msra.mxu0 0
  %1726 = vmatprep.subr.bf16.mxu0 0
  %1727 = vmatpush1.bf16.msra.mxu0 0
  %1728 = vmatprep.subr.bf16.mxu0 0
  %1729 = vmatpush1.bf16.msra.mxu0 %v1713
  %1730 = vmatprep.subr.bf16.mxu0 0
  %1731 = vmatpush1.bf16.msra.mxu0 %v1712
  %1732 = vmatprep.subr.bf16.mxu0 0
  %1733 = vmatpush2.bf16.msra.mxu0 0
  %1734 = vmatprep.subr.bf16.mxu0 0
  %1735 = vmatpush2.bf16.msra.mxu0 0
  %1736 = vmatprep.subr.bf16.mxu0 0
  %1737 = vmatpush2.bf16.msra.mxu0 0
  %1738 = vmatprep.subr.bf16.mxu0 0
  %1739 = vmatpush2.bf16.msra.mxu0 0
  %1740 = vmatprep.subr.bf16.mxu0 0
  %1741 = vmatpush2.bf16.msra.mxu0 0
  %1742 = vmatprep.subr.bf16.mxu0 0
  %1743 = vmatpush2.bf16.msra.mxu0 0
  %1744 = vmatprep.subr.bf16.mxu0 0
  %1745 = vmatpush2.bf16.msra.mxu0 0
  %1746 = vmatprep.subr.bf16.mxu0 0
  %1747 = vmatpush2.bf16.msra.mxu0 0
  %1748 = vmatprep.mubr.bf16.mxu0 0
  %1749 = vmatmul.mubr.bf16.gmra.mxu0 %v1579
  %v1750 = vpop.f32.mrf.mxu0
  %v1751 = vadd.f32 %v1702, %v1750
  %v1752 = vpop.f32.mrf.mxu0
  %v1753 = vpop.f32.mrf.mxu0
  %v1754 = vadd.f32 %v1702, %v1753
  %v1755 = vpop.f32.mrf.mxu0
  %1756 = vdwg.mxu0
  %v1757 = vpack.c.bf16 %v1690, %v1689
  %v1758 = vpack.c.bf16 %v1754, %v1751
  %v1760 = vsel %vm369, %v1757, 0
  %v1763 = vsel %vm369, %v1758, 0
  %1765 = vmatprep.subr.bf16.mxu0 0
  %1766 = vmatpush1.bf16.xpose.msra.mxu0 0
  %1767 = vmatprep.subr.bf16.mxu0 0
  %1768 = vmatpush1.bf16.xpose.msra.mxu0 0
  %1769 = vmatprep.subr.bf16.mxu0 0
  %1770 = vmatpush1.bf16.xpose.msra.mxu0 0
  %1771 = vmatprep.subr.bf16.mxu0 0
  %1772 = vmatpush1.bf16.xpose.msra.mxu0 0
  %1773 = vmatprep.subr.bf16.mxu0 0
  %1774 = vmatpush1.bf16.xpose.msra.mxu0 0
  %1775 = vmatprep.subr.bf16.mxu0 0
  %1776 = vmatpush1.bf16.xpose.msra.mxu0 0
  %1777 = vmatprep.subr.bf16.mxu0 0
  %1778 = vmatpush1.bf16.xpose.msra.mxu0 0
  %1779 = vmatprep.subr.bf16.mxu0 0
  %1780 = vmatpush1.bf16.xpose.msra.mxu0 %v1763
  %1781 = vmatprep.subr.bf16.mxu0 0
  %1782 = vmatpush2.bf16.xpose.msra.mxu0 0
  %1783 = vmatprep.subr.bf16.mxu0 0
  %1784 = vmatpush2.bf16.xpose.msra.mxu0 0
  %1785 = vmatprep.subr.bf16.mxu0 0
  %1786 = vmatpush2.bf16.xpose.msra.mxu0 0
  %1787 = vmatprep.subr.bf16.mxu0 0
  %1788 = vmatpush2.bf16.xpose.msra.mxu0 0
  %1789 = vmatprep.subr.bf16.mxu0 0
  %1790 = vmatpush2.bf16.xpose.msra.mxu0 0
  %1791 = vmatprep.subr.bf16.mxu0 0
  %1792 = vmatpush2.bf16.xpose.msra.mxu0 0
  %1793 = vmatprep.subr.bf16.mxu0 0
  %1794 = vmatpush2.bf16.xpose.msra.mxu0 0
  %1795 = vmatprep.subr.bf16.mxu0 0
  %1796 = vmatpush2.bf16.xpose.msra.mxu0 0
  %1797 = vmatprep.mubr.bf16.mxu0 0
  %1798 = vmatmul.mubr.bf16.gmra.mxu0 %v1760
  %v1799 = vpop.f32.mrf.mxu0
  %v1800 = vadd.f32 0.0, %v1799
  %v1801 = vpop.f32.mrf.mxu0
  %v1802 = vpop.f32.mrf.mxu0
  %v1803 = vadd.f32 0.0, %v1802
  %v1804 = vpop.f32.mrf.mxu0
  %1805 = vdwg.mxu0
  %1806 = vst.msk [vmem:[#allocation2] sm:$0xff] %vm75, %v1800
  %1807 = vst.msk [vmem:[#allocation2 + $0x8] sm:$0xff] %vm75, %v1803
  %s1808 = scalar_lea.vmem %s7, 80
  %v1809 = vld [vmem:[%s1808] sm:$0xf]
  %v1810 = vld [vmem:[%s1808 + $0x4] sm:$0xf]
  %v1811 = vld [vmem:[%s1808 + $0x8] sm:$0xf]
  %v1812 = vld [vmem:[%s1808 + $0xc] sm:$0xf]
  %s1813 = scalar_lea.vmem %s8, 5
  %v1814 = vld [vmem:[%s1813] sm:$0x1]
  %v1816 = vlaneseq
  %v1817 = vshrl.u32 %v1816, 7
  %v1818 = vsub.s32 0, %v1817
  %v1819 = vrot.slane %v1814, %v1818
  %v1825 = vunpack.c.l.b16 %v1809
  %v1826 = vunpack.c.l.b16 %v1810
  %v1827 = vunpack.c.l.b16 %v1811
  %v1828 = vunpack.c.l.b16 %v1812
  %v1829 = vpack.c.b16 %v1826, %v1825
  %v1830 = vpack.c.b16 %v1828, %v1827
  %1833 = vmatprep.subr.bf16.mxu0 0
  %1834 = vmatpush1.bf16.msra.mxu0 0
  %1835 = vmatprep.subr.bf16.mxu0 0
  %1836 = vmatpush1.bf16.msra.mxu0 0
  %1837 = vmatprep.subr.bf16.mxu0 0
  %1838 = vmatpush1.bf16.msra.mxu0 0
  %1839 = vmatprep.subr.bf16.mxu0 0
  %1840 = vmatpush1.bf16.msra.mxu0 0
  %1841 = vmatprep.subr.bf16.mxu0 0
  %1842 = vmatpush1.bf16.msra.mxu0 0
  %1843 = vmatprep.subr.bf16.mxu0 0
  %1844 = vmatpush1.bf16.msra.mxu0 0
  %1845 = vmatprep.subr.bf16.mxu0 0
  %1846 = vmatpush1.bf16.msra.mxu0 %v1830
  %1847 = vmatprep.subr.bf16.mxu0 0
  %1848 = vmatpush1.bf16.msra.mxu0 %v1829
  %1849 = vmatprep.subr.bf16.mxu0 0
  %1850 = vmatpush2.bf16.msra.mxu0 0
  %1851 = vmatprep.subr.bf16.mxu0 0
  %1852 = vmatpush2.bf16.msra.mxu0 0
  %1853 = vmatprep.subr.bf16.mxu0 0
  %1854 = vmatpush2.bf16.msra.mxu0 0
  %1855 = vmatprep.subr.bf16.mxu0 0
  %1856 = vmatpush2.bf16.msra.mxu0 0
  %1857 = vmatprep.subr.bf16.mxu0 0
  %1858 = vmatpush2.bf16.msra.mxu0 0
  %1859 = vmatprep.subr.bf16.mxu0 0
  %1860 = vmatpush2.bf16.msra.mxu0 0
  %1861 = vmatprep.subr.bf16.mxu0 0
  %1862 = vmatpush2.bf16.msra.mxu0 0
  %1863 = vmatprep.subr.bf16.mxu0 0
  %1864 = vmatpush2.bf16.msra.mxu0 0
  %1865 = vmatprep.mubr.bf16.mxu0 0
  %1866 = vmatmul.mubr.bf16.gmra.mxu0 %v1579
  %v1867 = vpop.f32.mrf.mxu0
  %v1868 = vadd.f32 %v1819, %v1867
  %v1869 = vpop.f32.mrf.mxu0
  %v1870 = vpop.f32.mrf.mxu0
  %v1871 = vadd.f32 %v1819, %v1870
  %v1872 = vpop.f32.mrf.mxu0
  %1873 = vdwg.mxu0
  %v1874 = vmul.f32 %v1868, 0.35355338
  %v1875 = vmul.f32 %v1871, 0.35355338
  %s1876 = scalar_lea.vmem %s9, 80
  %v1877 = vld [vmem:[%s1876] sm:$0xf]
  %v1878 = vld [vmem:[%s1876 + $0x4] sm:$0xf]
  %v1879 = vld [vmem:[%s1876 + $0x8] sm:$0xf]
  %v1880 = vld [vmem:[%s1876 + $0xc] sm:$0xf]
  %s1881 = scalar_lea.vmem %s10, 5
  %v1882 = vld [vmem:[%s1881] sm:$0x1]
  %v1884 = vlaneseq
  %v1885 = vshrl.u32 %v1884, 7
  %v1886 = vsub.s32 0, %v1885
  %v1887 = vrot.slane %v1882, %v1886
  %v1893 = vunpack.c.l.b16 %v1877
  %v1894 = vunpack.c.l.b16 %v1878
  %v1895 = vunpack.c.l.b16 %v1879
  %v1896 = vunpack.c.l.b16 %v1880
  %v1897 = vpack.c.b16 %v1894, %v1893
  %v1898 = vpack.c.b16 %v1896, %v1895
  %1901 = vmatprep.subr.bf16.mxu0 0
  %1902 = vmatpush1.bf16.msra.mxu0 0
  %1903 = vmatprep.subr.bf16.mxu0 0
  %1904 = vmatpush1.bf16.msra.mxu0 0
  %1905 = vmatprep.subr.bf16.mxu0 0
  %1906 = vmatpush1.bf16.msra.mxu0 0
  %1907 = vmatprep.subr.bf16.mxu0 0
  %1908 = vmatpush1.bf16.msra.mxu0 0
  %1909 = vmatprep.subr.bf16.mxu0 0
  %1910 = vmatpush1.bf16.msra.mxu0 0
  %1911 = vmatprep.subr.bf16.mxu0 0
  %1912 = vmatpush1.bf16.msra.mxu0 0
  %1913 = vmatprep.subr.bf16.mxu0 0
  %1914 = vmatpush1.bf16.msra.mxu0 %v1898
  %1915 = vmatprep.subr.bf16.mxu0 0
  %1916 = vmatpush1.bf16.msra.mxu0 %v1897
  %1917 = vmatprep.subr.bf16.mxu0 0
  %1918 = vmatpush2.bf16.msra.mxu0 0
  %1919 = vmatprep.subr.bf16.mxu0 0
  %1920 = vmatpush2.bf16.msra.mxu0 0
  %1921 = vmatprep.subr.bf16.mxu0 0
  %1922 = vmatpush2.bf16.msra.mxu0 0
  %1923 = vmatprep.subr.bf16.mxu0 0
  %1924 = vmatpush2.bf16.msra.mxu0 0
  %1925 = vmatprep.subr.bf16.mxu0 0
  %1926 = vmatpush2.bf16.msra.mxu0 0
  %1927 = vmatprep.subr.bf16.mxu0 0
  %1928 = vmatpush2.bf16.msra.mxu0 0
  %1929 = vmatprep.subr.bf16.mxu0 0
  %1930 = vmatpush2.bf16.msra.mxu0 0
  %1931 = vmatprep.subr.bf16.mxu0 0
  %1932 = vmatpush2.bf16.msra.mxu0 0
  %1933 = vmatprep.mubr.bf16.mxu0 0
  %1934 = vmatmul.mubr.bf16.gmra.mxu0 %v1579
  %v1935 = vpop.f32.mrf.mxu0
  %v1936 = vadd.f32 %v1887, %v1935
  %v1937 = vpop.f32.mrf.mxu0
  %v1938 = vpop.f32.mrf.mxu0
  %v1939 = vadd.f32 %v1887, %v1938
  %v1940 = vpop.f32.mrf.mxu0
  %1941 = vdwg.mxu0
  %v1942 = vpack.c.bf16 %v1875, %v1874
  %v1943 = vpack.c.bf16 %v1939, %v1936
  %v1945 = vsel %vm369, %v1942, 0
  %v1948 = vsel %vm369, %v1943, 0
  %1950 = vmatprep.subr.bf16.mxu0 0
  %1951 = vmatpush1.bf16.xpose.msra.mxu0 0
  %1952 = vmatprep.subr.bf16.mxu0 0
  %1953 = vmatpush1.bf16.xpose.msra.mxu0 0
  %1954 = vmatprep.subr.bf16.mxu0 0
  %1955 = vmatpush1.bf16.xpose.msra.mxu0 0
  %1956 = vmatprep.subr.bf16.mxu0 0
  %1957 = vmatpush1.bf16.xpose.msra.mxu0 0
  %1958 = vmatprep.subr.bf16.mxu0 0
  %1959 = vmatpush1.bf16.xpose.msra.mxu0 0
  %1960 = vmatprep.subr.bf16.mxu0 0
  %1961 = vmatpush1.bf16.xpose.msra.mxu0 0
  %1962 = vmatprep.subr.bf16.mxu0 0
  %1963 = vmatpush1.bf16.xpose.msra.mxu0 0
  %1964 = vmatprep.subr.bf16.mxu0 0
  %1965 = vmatpush1.bf16.xpose.msra.mxu0 %v1948
  %1966 = vmatprep.subr.bf16.mxu0 0
  %1967 = vmatpush2.bf16.xpose.msra.mxu0 0
  %1968 = vmatprep.subr.bf16.mxu0 0
  %1969 = vmatpush2.bf16.xpose.msra.mxu0 0
  %1970 = vmatprep.subr.bf16.mxu0 0
  %1971 = vmatpush2.bf16.xpose.msra.mxu0 0
  %1972 = vmatprep.subr.bf16.mxu0 0
  %1973 = vmatpush2.bf16.xpose.msra.mxu0 0
  %1974 = vmatprep.subr.bf16.mxu0 0
  %1975 = vmatpush2.bf16.xpose.msra.mxu0 0
  %1976 = vmatprep.subr.bf16.mxu0 0
  %1977 = vmatpush2.bf16.xpose.msra.mxu0 0
  %1978 = vmatprep.subr.bf16.mxu0 0
  %1979 = vmatpush2.bf16.xpose.msra.mxu0 0
  %1980 = vmatprep.subr.bf16.mxu0 0
  %1981 = vmatpush2.bf16.xpose.msra.mxu0 0
  %1982 = vmatprep.mubr.bf16.mxu0 0
  %1983 = vmatmul.mubr.bf16.gmra.mxu0 %v1945
  %v1984 = vpop.f32.mrf.mxu0
  %v1985 = vadd.f32 0.0, %v1984
  %v1986 = vpop.f32.mrf.mxu0
  %v1987 = vpop.f32.mrf.mxu0
  %v1988 = vadd.f32 0.0, %v1987
  %v1989 = vpop.f32.mrf.mxu0
  %1990 = vdwg.mxu0
  %1991 = vst.msk [vmem:[%s602] sm:$0xff] %vm75, %v1985
  %1992 = vst.msk [vmem:[%s602 + $0x8] sm:$0xff] %vm75, %v1988
  %s1993 = scalar_lea.vmem %s7, 96
  %v1994 = vld [vmem:[%s1993] sm:$0xf]
  %v1995 = vld [vmem:[%s1993 + $0x4] sm:$0xf]
  %v1996 = vld [vmem:[%s1993 + $0x8] sm:$0xf]
  %v1997 = vld [vmem:[%s1993 + $0xc] sm:$0xf]
  %s1998 = scalar_lea.vmem %s8, 6
  %v1999 = vld [vmem:[%s1998] sm:$0x1]
  %v2001 = vlaneseq
  %v2002 = vshrl.u32 %v2001, 7
  %v2003 = vsub.s32 0, %v2002
  %v2004 = vrot.slane %v1999, %v2003
  %v2010 = vunpack.c.l.b16 %v1994
  %v2011 = vunpack.c.l.b16 %v1995
  %v2012 = vunpack.c.l.b16 %v1996
  %v2013 = vunpack.c.l.b16 %v1997
  %v2014 = vpack.c.b16 %v2011, %v2010
  %v2015 = vpack.c.b16 %v2013, %v2012
  %2018 = vmatprep.subr.bf16.mxu0 0
  %2019 = vmatpush1.bf16.msra.mxu0 0
  %2020 = vmatprep.subr.bf16.mxu0 0
  %2021 = vmatpush1.bf16.msra.mxu0 0
  %2022 = vmatprep.subr.bf16.mxu0 0
  %2023 = vmatpush1.bf16.msra.mxu0 0
  %2024 = vmatprep.subr.bf16.mxu0 0
  %2025 = vmatpush1.bf16.msra.mxu0 0
  %2026 = vmatprep.subr.bf16.mxu0 0
  %2027 = vmatpush1.bf16.msra.mxu0 0
  %2028 = vmatprep.subr.bf16.mxu0 0
  %2029 = vmatpush1.bf16.msra.mxu0 0
  %2030 = vmatprep.subr.bf16.mxu0 0
  %2031 = vmatpush1.bf16.msra.mxu0 %v2015
  %2032 = vmatprep.subr.bf16.mxu0 0
  %2033 = vmatpush1.bf16.msra.mxu0 %v2014
  %2034 = vmatprep.subr.bf16.mxu0 0
  %2035 = vmatpush2.bf16.msra.mxu0 0
  %2036 = vmatprep.subr.bf16.mxu0 0
  %2037 = vmatpush2.bf16.msra.mxu0 0
  %2038 = vmatprep.subr.bf16.mxu0 0
  %2039 = vmatpush2.bf16.msra.mxu0 0
  %2040 = vmatprep.subr.bf16.mxu0 0
  %2041 = vmatpush2.bf16.msra.mxu0 0
  %2042 = vmatprep.subr.bf16.mxu0 0
  %2043 = vmatpush2.bf16.msra.mxu0 0
  %2044 = vmatprep.subr.bf16.mxu0 0
  %2045 = vmatpush2.bf16.msra.mxu0 0
  %2046 = vmatprep.subr.bf16.mxu0 0
  %2047 = vmatpush2.bf16.msra.mxu0 0
  %2048 = vmatprep.subr.bf16.mxu0 0
  %2049 = vmatpush2.bf16.msra.mxu0 0
  %2050 = vmatprep.mubr.bf16.mxu0 0
  %2051 = vmatmul.mubr.bf16.gmra.mxu0 %v1579
  %v2052 = vpop.f32.mrf.mxu0
  %v2053 = vadd.f32 %v2004, %v2052
  %v2054 = vpop.f32.mrf.mxu0
  %v2055 = vpop.f32.mrf.mxu0
  %v2056 = vadd.f32 %v2004, %v2055
  %v2057 = vpop.f32.mrf.mxu0
  %2058 = vdwg.mxu0
  %v2059 = vmul.f32 %v2053, 0.35355338
  %v2060 = vmul.f32 %v2056, 0.35355338
  %s2061 = scalar_lea.vmem %s9, 96
  %v2062 = vld [vmem:[%s2061] sm:$0xf]
  %v2063 = vld [vmem:[%s2061 + $0x4] sm:$0xf]
  %v2064 = vld [vmem:[%s2061 + $0x8] sm:$0xf]
  %v2065 = vld [vmem:[%s2061 + $0xc] sm:$0xf]
  %s2066 = scalar_lea.vmem %s10, 6
  %v2067 = vld [vmem:[%s2066] sm:$0x1]
  %v2069 = vlaneseq
  %v2070 = vshrl.u32 %v2069, 7
  %v2071 = vsub.s32 0, %v2070
  %v2072 = vrot.slane %v2067, %v2071
  %v2078 = vunpack.c.l.b16 %v2062
  %v2079 = vunpack.c.l.b16 %v2063
  %v2080 = vunpack.c.l.b16 %v2064
  %v2081 = vunpack.c.l.b16 %v2065
  %v2082 = vpack.c.b16 %v2079, %v2078
  %v2083 = vpack.c.b16 %v2081, %v2080
  %2086 = vmatprep.subr.bf16.mxu0 0
  %2087 = vmatpush1.bf16.msra.mxu0 0
  %2088 = vmatprep.subr.bf16.mxu0 0
  %2089 = vmatpush1.bf16.msra.mxu0 0
  %2090 = vmatprep.subr.bf16.mxu0 0
  %2091 = vmatpush1.bf16.msra.mxu0 0
  %2092 = vmatprep.subr.bf16.mxu0 0
  %2093 = vmatpush1.bf16.msra.mxu0 0
  %2094 = vmatprep.subr.bf16.mxu0 0
  %2095 = vmatpush1.bf16.msra.mxu0 0
  %2096 = vmatprep.subr.bf16.mxu0 0
  %2097 = vmatpush1.bf16.msra.mxu0 0
  %2098 = vmatprep.subr.bf16.mxu0 0
  %2099 = vmatpush1.bf16.msra.mxu0 %v2083
  %2100 = vmatprep.subr.bf16.mxu0 0
  %2101 = vmatpush1.bf16.msra.mxu0 %v2082
  %2102 = vmatprep.subr.bf16.mxu0 0
  %2103 = vmatpush2.bf16.msra.mxu0 0
  %2104 = vmatprep.subr.bf16.mxu0 0
  %2105 = vmatpush2.bf16.msra.mxu0 0
  %2106 = vmatprep.subr.bf16.mxu0 0
  %2107 = vmatpush2.bf16.msra.mxu0 0
  %2108 = vmatprep.subr.bf16.mxu0 0
  %2109 = vmatpush2.bf16.msra.mxu0 0
  %2110 = vmatprep.subr.bf16.mxu0 0
  %2111 = vmatpush2.bf16.msra.mxu0 0
  %2112 = vmatprep.subr.bf16.mxu0 0
  %2113 = vmatpush2.bf16.msra.mxu0 0
  %2114 = vmatprep.subr.bf16.mxu0 0
  %2115 = vmatpush2.bf16.msra.mxu0 0
  %2116 = vmatprep.subr.bf16.mxu0 0
  %2117 = vmatpush2.bf16.msra.mxu0 0
  %2118 = vmatprep.mubr.bf16.mxu0 0
  %2119 = vmatmul.mubr.bf16.gmra.mxu0 %v1579
  %v2120 = vpop.f32.mrf.mxu0
  %v2121 = vadd.f32 %v2072, %v2120
  %v2122 = vpop.f32.mrf.mxu0
  %v2123 = vpop.f32.mrf.mxu0
  %v2124 = vadd.f32 %v2072, %v2123
  %v2125 = vpop.f32.mrf.mxu0
  %2126 = vdwg.mxu0
  %v2127 = vpack.c.bf16 %v2060, %v2059
  %v2128 = vpack.c.bf16 %v2124, %v2121
  %v2130 = vsel %vm369, %v2127, 0
  %v2133 = vsel %vm369, %v2128, 0
  %2135 = vmatprep.subr.bf16.mxu0 0
  %2136 = vmatpush1.bf16.xpose.msra.mxu0 0
  %2137 = vmatprep.subr.bf16.mxu0 0
  %2138 = vmatpush1.bf16.xpose.msra.mxu0 0
  %2139 = vmatprep.subr.bf16.mxu0 0
  %2140 = vmatpush1.bf16.xpose.msra.mxu0 0
  %2141 = vmatprep.subr.bf16.mxu0 0
  %2142 = vmatpush1.bf16.xpose.msra.mxu0 0
  %2143 = vmatprep.subr.bf16.mxu0 0
  %2144 = vmatpush1.bf16.xpose.msra.mxu0 0
  %2145 = vmatprep.subr.bf16.mxu0 0
  %2146 = vmatpush1.bf16.xpose.msra.mxu0 0
  %2147 = vmatprep.subr.bf16.mxu0 0
  %2148 = vmatpush1.bf16.xpose.msra.mxu0 0
  %2149 = vmatprep.subr.bf16.mxu0 0
  %2150 = vmatpush1.bf16.xpose.msra.mxu0 %v2133
  %2151 = vmatprep.subr.bf16.mxu0 0
  %2152 = vmatpush2.bf16.xpose.msra.mxu0 0
  %2153 = vmatprep.subr.bf16.mxu0 0
  %2154 = vmatpush2.bf16.xpose.msra.mxu0 0
  %2155 = vmatprep.subr.bf16.mxu0 0
  %2156 = vmatpush2.bf16.xpose.msra.mxu0 0
  %2157 = vmatprep.subr.bf16.mxu0 0
  %2158 = vmatpush2.bf16.xpose.msra.mxu0 0
  %2159 = vmatprep.subr.bf16.mxu0 0
  %2160 = vmatpush2.bf16.xpose.msra.mxu0 0
  %2161 = vmatprep.subr.bf16.mxu0 0
  %2162 = vmatpush2.bf16.xpose.msra.mxu0 0
  %2163 = vmatprep.subr.bf16.mxu0 0
  %2164 = vmatpush2.bf16.xpose.msra.mxu0 0
  %2165 = vmatprep.subr.bf16.mxu0 0
  %2166 = vmatpush2.bf16.xpose.msra.mxu0 0
  %2167 = vmatprep.mubr.bf16.mxu0 0
  %2168 = vmatmul.mubr.bf16.gmra.mxu0 %v2130
  %v2169 = vpop.f32.mrf.mxu0
  %v2170 = vadd.f32 0.0, %v2169
  %v2171 = vpop.f32.mrf.mxu0
  %v2172 = vpop.f32.mrf.mxu0
  %v2173 = vadd.f32 0.0, %v2172
  %v2174 = vpop.f32.mrf.mxu0
  %2175 = vdwg.mxu0
  %2176 = vst.msk [vmem:[%s788] sm:$0xff] %vm75, %v2170
  %2177 = vst.msk [vmem:[%s788 + $0x8] sm:$0xff] %vm75, %v2173
  %s2178 = scalar_lea.vmem %s7, 112
  %v2179 = vld [vmem:[%s2178] sm:$0xf]
  %v2180 = vld [vmem:[%s2178 + $0x4] sm:$0xf]
  %v2181 = vld [vmem:[%s2178 + $0x8] sm:$0xf]
  %v2182 = vld [vmem:[%s2178 + $0xc] sm:$0xf]
  %s2183 = scalar_lea.vmem %s8, 7
  %v2184 = vld [vmem:[%s2183] sm:$0x1]
  %v2186 = vlaneseq
  %v2187 = vshrl.u32 %v2186, 7
  %v2188 = vsub.s32 0, %v2187
  %v2189 = vrot.slane %v2184, %v2188
  %v2195 = vunpack.c.l.b16 %v2179
  %v2196 = vunpack.c.l.b16 %v2180
  %v2197 = vunpack.c.l.b16 %v2181
  %v2198 = vunpack.c.l.b16 %v2182
  %v2199 = vpack.c.b16 %v2196, %v2195
  %v2200 = vpack.c.b16 %v2198, %v2197
  %2203 = vmatprep.subr.bf16.mxu0 0
  %2204 = vmatpush1.bf16.msra.mxu0 0
  %2205 = vmatprep.subr.bf16.mxu0 0
  %2206 = vmatpush1.bf16.msra.mxu0 0
  %2207 = vmatprep.subr.bf16.mxu0 0
  %2208 = vmatpush1.bf16.msra.mxu0 0
  %2209 = vmatprep.subr.bf16.mxu0 0
  %2210 = vmatpush1.bf16.msra.mxu0 0
  %2211 = vmatprep.subr.bf16.mxu0 0
  %2212 = vmatpush1.bf16.msra.mxu0 0
  %2213 = vmatprep.subr.bf16.mxu0 0
  %2214 = vmatpush1.bf16.msra.mxu0 0
  %2215 = vmatprep.subr.bf16.mxu0 0
  %2216 = vmatpush1.bf16.msra.mxu0 %v2200
  %2217 = vmatprep.subr.bf16.mxu0 0
  %2218 = vmatpush1.bf16.msra.mxu0 %v2199
  %2219 = vmatprep.subr.bf16.mxu0 0
  %2220 = vmatpush2.bf16.msra.mxu0 0
  %2221 = vmatprep.subr.bf16.mxu0 0
  %2222 = vmatpush2.bf16.msra.mxu0 0
  %2223 = vmatprep.subr.bf16.mxu0 0
  %2224 = vmatpush2.bf16.msra.mxu0 0
  %2225 = vmatprep.subr.bf16.mxu0 0
  %2226 = vmatpush2.bf16.msra.mxu0 0
  %2227 = vmatprep.subr.bf16.mxu0 0
  %2228 = vmatpush2.bf16.msra.mxu0 0
  %2229 = vmatprep.subr.bf16.mxu0 0
  %2230 = vmatpush2.bf16.msra.mxu0 0
  %2231 = vmatprep.subr.bf16.mxu0 0
  %2232 = vmatpush2.bf16.msra.mxu0 0
  %2233 = vmatprep.subr.bf16.mxu0 0
  %2234 = vmatpush2.bf16.msra.mxu0 0
  %2235 = vmatprep.mubr.bf16.mxu0 0
  %2236 = vmatmul.mubr.bf16.gmra.mxu0 %v1579
  %v2237 = vpop.f32.mrf.mxu0
  %v2238 = vadd.f32 %v2189, %v2237
  %v2239 = vpop.f32.mrf.mxu0
  %v2240 = vpop.f32.mrf.mxu0
  %v2241 = vadd.f32 %v2189, %v2240
  %v2242 = vpop.f32.mrf.mxu0
  %2243 = vdwg.mxu0
  %v2244 = vmul.f32 %v2238, 0.35355338
  %v2245 = vmul.f32 %v2241, 0.35355338
  %s2246 = scalar_lea.vmem %s9, 112
  %v2247 = vld [vmem:[%s2246] sm:$0xf]
  %v2248 = vld [vmem:[%s2246 + $0x4] sm:$0xf]
  %v2249 = vld [vmem:[%s2246 + $0x8] sm:$0xf]
  %v2250 = vld [vmem:[%s2246 + $0xc] sm:$0xf]
  %s2251 = scalar_lea.vmem %s10, 7
  %v2252 = vld [vmem:[%s2251] sm:$0x1]
  %v2254 = vlaneseq
  %v2255 = vshrl.u32 %v2254, 7
  %v2256 = vsub.s32 0, %v2255
  %v2257 = vrot.slane %v2252, %v2256
  %v2263 = vunpack.c.l.b16 %v2247
  %v2264 = vunpack.c.l.b16 %v2248
  %v2265 = vunpack.c.l.b16 %v2249
  %v2266 = vunpack.c.l.b16 %v2250
  %v2267 = vpack.c.b16 %v2264, %v2263
  %v2268 = vpack.c.b16 %v2266, %v2265
  %2271 = vmatprep.subr.bf16.mxu0 0
  %2272 = vmatpush1.bf16.msra.mxu0 0
  %2273 = vmatprep.subr.bf16.mxu0 0
  %2274 = vmatpush1.bf16.msra.mxu0 0
  %2275 = vmatprep.subr.bf16.mxu0 0
  %2276 = vmatpush1.bf16.msra.mxu0 0
  %2277 = vmatprep.subr.bf16.mxu0 0
  %2278 = vmatpush1.bf16.msra.mxu0 0
  %2279 = vmatprep.subr.bf16.mxu0 0
  %2280 = vmatpush1.bf16.msra.mxu0 0
  %2281 = vmatprep.subr.bf16.mxu0 0
  %2282 = vmatpush1.bf16.msra.mxu0 0
  %2283 = vmatprep.subr.bf16.mxu0 0
  %2284 = vmatpush1.bf16.msra.mxu0 %v2268
  %2285 = vmatprep.subr.bf16.mxu0 0
  %2286 = vmatpush1.bf16.msra.mxu0 %v2267
  %2287 = vmatprep.subr.bf16.mxu0 0
  %2288 = vmatpush2.bf16.msra.mxu0 0
  %2289 = vmatprep.subr.bf16.mxu0 0
  %2290 = vmatpush2.bf16.msra.mxu0 0
  %2291 = vmatprep.subr.bf16.mxu0 0
  %2292 = vmatpush2.bf16.msra.mxu0 0
  %2293 = vmatprep.subr.bf16.mxu0 0
  %2294 = vmatpush2.bf16.msra.mxu0 0
  %2295 = vmatprep.subr.bf16.mxu0 0
  %2296 = vmatpush2.bf16.msra.mxu0 0
  %2297 = vmatprep.subr.bf16.mxu0 0
  %2298 = vmatpush2.bf16.msra.mxu0 0
  %2299 = vmatprep.subr.bf16.mxu0 0
  %2300 = vmatpush2.bf16.msra.mxu0 0
  %2301 = vmatprep.subr.bf16.mxu0 0
  %2302 = vmatpush2.bf16.msra.mxu0 0
  %2303 = vmatprep.mubr.bf16.mxu0 0
  %2304 = vmatmul.mubr.bf16.gmra.mxu0 %v1579
  %v2305 = vpop.f32.mrf.mxu0
  %v2306 = vadd.f32 %v2257, %v2305
  %v2307 = vpop.f32.mrf.mxu0
  %v2308 = vpop.f32.mrf.mxu0
  %v2309 = vadd.f32 %v2257, %v2308
  %v2310 = vpop.f32.mrf.mxu0
  %2311 = vdwg.mxu0
  %v2312 = vpack.c.bf16 %v2245, %v2244
  %v2313 = vpack.c.bf16 %v2309, %v2306
  %v2315 = vsel %vm369, %v2312, 0
  %v2318 = vsel %vm369, %v2313, 0
  %2320 = vmatprep.subr.bf16.mxu0 0
  %2321 = vmatpush1.bf16.xpose.msra.mxu0 0
  %2322 = vmatprep.subr.bf16.mxu0 0
  %2323 = vmatpush1.bf16.xpose.msra.mxu0 0
  %2324 = vmatprep.subr.bf16.mxu0 0
  %2325 = vmatpush1.bf16.xpose.msra.mxu0 0
  %2326 = vmatprep.subr.bf16.mxu0 0
  %2327 = vmatpush1.bf16.xpose.msra.mxu0 0
  %2328 = vmatprep.subr.bf16.mxu0 0
  %2329 = vmatpush1.bf16.xpose.msra.mxu0 0
  %2330 = vmatprep.subr.bf16.mxu0 0
  %2331 = vmatpush1.bf16.xpose.msra.mxu0 0
  %2332 = vmatprep.subr.bf16.mxu0 0
  %2333 = vmatpush1.bf16.xpose.msra.mxu0 0
  %2334 = vmatprep.subr.bf16.mxu0 0
  %2335 = vmatpush1.bf16.xpose.msra.mxu0 %v2318
  %2336 = vmatprep.subr.bf16.mxu0 0
  %2337 = vmatpush2.bf16.xpose.msra.mxu0 0
  %2338 = vmatprep.subr.bf16.mxu0 0
  %2339 = vmatpush2.bf16.xpose.msra.mxu0 0
  %2340 = vmatprep.subr.bf16.mxu0 0
  %2341 = vmatpush2.bf16.xpose.msra.mxu0 0
  %2342 = vmatprep.subr.bf16.mxu0 0
  %2343 = vmatpush2.bf16.xpose.msra.mxu0 0
  %2344 = vmatprep.subr.bf16.mxu0 0
  %2345 = vmatpush2.bf16.xpose.msra.mxu0 0
  %2346 = vmatprep.subr.bf16.mxu0 0
  %2347 = vmatpush2.bf16.xpose.msra.mxu0 0
  %2348 = vmatprep.subr.bf16.mxu0 0
  %2349 = vmatpush2.bf16.xpose.msra.mxu0 0
  %2350 = vmatprep.subr.bf16.mxu0 0
  %2351 = vmatpush2.bf16.xpose.msra.mxu0 0
  %2352 = vmatprep.mubr.bf16.mxu0 0
  %2353 = vmatmul.mubr.bf16.gmra.mxu0 %v2315
  %v2354 = vpop.f32.mrf.mxu0
  %v2355 = vadd.f32 0.0, %v2354
  %v2356 = vpop.f32.mrf.mxu0
  %v2357 = vpop.f32.mrf.mxu0
  %v2358 = vadd.f32 0.0, %v2357
  %v2359 = vpop.f32.mrf.mxu0
  %2360 = vdwg.mxu0
  %2361 = vst.msk [vmem:[%s974] sm:$0xff] %vm75, %v2355
  %2362 = vst.msk [vmem:[%s974 + $0x8] sm:$0xff] %vm75, %v2358
  %v2363 = vld [vmem:[#allocation2] sm:$0xff]
  %v2364 = vld [vmem:[#allocation2 + $0x8] sm:$0xff]
  %v2365 = vld [vmem:[#allocation2 + $0x10] sm:$0xff]
  %v2366 = vld [vmem:[#allocation2 + $0x18] sm:$0xff]
  %v2367 = vld [vmem:[#allocation2 + $0x20] sm:$0xff]
  %v2368 = vld [vmem:[#allocation2 + $0x28] sm:$0xff]
  %v2369 = vld [vmem:[#allocation2 + $0x30] sm:$0xff]
  %v2370 = vld [vmem:[#allocation2 + $0x38] sm:$0xff]
  %v2371 = vsel %vm75, %v2363, -inf
  %v2372 = vsel %vm75, %v2365, -inf
  %v2373 = vsel %vm75, %v2367, -inf
  %v2374 = vmax.f32 %v2371, %v2373
  %v2375 = vsel %vm75, %v2369, -inf
  %v2376 = vmax.f32 %v2372, %v2375
  %v2377 = vmax.f32 %v2374, %v2376
  %v2378 = vsel %vm75, %v2364, -inf
  %v2379 = vsel %vm75, %v2366, -inf
  %v2380 = vsel %vm75, %v2368, -inf
  %v2381 = vmax.f32 %v2378, %v2380
  %v2382 = vsel %vm75, %v2370, -inf
  %v2383 = vmax.f32 %v2379, %v2382
  %v2384 = vmax.f32 %v2381, %v2383
  %v2385 = vsub.f32 %v2363, %v2377
  %v2386 = vsub.f32 %v2364, %v2384
  %v2387 = vsub.f32 %v2365, %v2377
  %v2388 = vsub.f32 %v2366, %v2384
  %v2389 = vsub.f32 %v2367, %v2377
  %v2390 = vsub.f32 %v2368, %v2384
  %v2391 = vsub.f32 %v2369, %v2377
  %v2392 = vsub.f32 %v2370, %v2384
  %v2393 = vmul.f32 %v2385, 1.442695
  %v2394 = vpow.pop %v2393
  %v2395 = vmul.f32 %v2386, 1.442695
  %v2396 = vpow.pop %v2395
  %v2397 = vmul.f32 %v2387, 1.442695
  %v2398 = vpow.pop %v2397
  %v2399 = vmul.f32 %v2388, 1.442695
  %v2400 = vpow.pop %v2399
  %v2401 = vmul.f32 %v2389, 1.442695
  %v2402 = vpow.pop %v2401
  %v2403 = vmul.f32 %v2390, 1.442695
  %v2404 = vpow.pop %v2403
  %v2405 = vmul.f32 %v2391, 1.442695
  %v2406 = vpow.pop %v2405
  %v2407 = vmul.f32 %v2392, 1.442695
  %v2408 = vpow.pop %v2407
  %v2409 = vsel %vm75, %v2394, 0.0
  %v2410 = vsel %vm75, %v2398, 0.0
  %v2411 = vadd.f32 %v2409, %v2410
  %v2412 = vsel %vm75, %v2402, 0.0
  %v2413 = vadd.f32 %v2411, %v2412
  %v2414 = vsel %vm75, %v2406, 0.0
  %v2415 = vadd.f32 %v2413, %v2414
  %v2416 = vsel %vm75, %v2396, 0.0
  %v2417 = vsel %vm75, %v2400, 0.0
  %v2418 = vadd.f32 %v2416, %v2417
  %v2419 = vsel %vm75, %v2404, 0.0
  %v2420 = vadd.f32 %v2418, %v2419
  %v2421 = vsel %vm75, %v2408, 0.0
  %v2422 = vadd.f32 %v2420, %v2421
  %v2423 = vrcp.pop %v2415
  %v2424 = vrcp.pop %v2422
  %v2425 = vmul.f32 %v2394, %v2423
  %v2426 = vmul.f32 %v2396, %v2424
  %v2427 = vmul.f32 %v2398, %v2423
  %v2428 = vmul.f32 %v2400, %v2424
  %v2429 = vmul.f32 %v2402, %v2423
  %v2430 = vmul.f32 %v2404, %v2424
  %v2431 = vmul.f32 %v2406, %v2423
  %v2432 = vmul.f32 %v2408, %v2424
  %s2433 = scalar_lea.vmem %s11, 64
  %v2434 = vld [vmem:[%s2433] sm:$0xf]
  %v2435 = vld [vmem:[%s2433 + $0x4] sm:$0xf]
  %v2436 = vld [vmem:[%s2433 + $0x8] sm:$0xf]
  %v2437 = vld [vmem:[%s2433 + $0xc] sm:$0xf]
  %s2438 = scalar_lea.vmem %s12, 4
  %v2439 = vld [vmem:[%s2438] sm:$0x1]
  %v2441 = vlaneseq
  %v2442 = vshrl.u32 %v2441, 7
  %v2443 = vsub.s32 0, %v2442
  %v2444 = vrot.slane %v2439, %v2443
  %v2450 = vunpack.c.l.b16 %v2434
  %v2451 = vunpack.c.l.b16 %v2435
  %v2452 = vunpack.c.l.b16 %v2436
  %v2453 = vunpack.c.l.b16 %v2437
  %v2454 = vpack.c.b16 %v2451, %v2450
  %v2455 = vpack.c.b16 %v2453, %v2452
  %v2459 = vsel %vm122, %v1622, 0
  %2461 = vmatprep.subr.bf16.mxu0 0
  %2462 = vmatpush1.bf16.msra.mxu0 0
  %2463 = vmatprep.subr.bf16.mxu0 0
  %2464 = vmatpush1.bf16.msra.mxu0 0
  %2465 = vmatprep.subr.bf16.mxu0 0
  %2466 = vmatpush1.bf16.msra.mxu0 0
  %2467 = vmatprep.subr.bf16.mxu0 0
  %2468 = vmatpush1.bf16.msra.mxu0 0
  %2469 = vmatprep.subr.bf16.mxu0 0
  %2470 = vmatpush1.bf16.msra.mxu0 0
  %2471 = vmatprep.subr.bf16.mxu0 0
  %2472 = vmatpush1.bf16.msra.mxu0 0
  %2473 = vmatprep.subr.bf16.mxu0 0
  %2474 = vmatpush1.bf16.msra.mxu0 %v2455
  %2475 = vmatprep.subr.bf16.mxu0 0
  %2476 = vmatpush1.bf16.msra.mxu0 %v2454
  %2477 = vmatprep.subr.bf16.mxu0 0
  %2478 = vmatpush2.bf16.msra.mxu0 0
  %2479 = vmatprep.subr.bf16.mxu0 0
  %2480 = vmatpush2.bf16.msra.mxu0 0
  %2481 = vmatprep.subr.bf16.mxu0 0
  %2482 = vmatpush2.bf16.msra.mxu0 0
  %2483 = vmatprep.subr.bf16.mxu0 0
  %2484 = vmatpush2.bf16.msra.mxu0 0
  %2485 = vmatprep.subr.bf16.mxu0 0
  %2486 = vmatpush2.bf16.msra.mxu0 0
  %2487 = vmatprep.subr.bf16.mxu0 0
  %2488 = vmatpush2.bf16.msra.mxu0 0
  %2489 = vmatprep.subr.bf16.mxu0 0
  %2490 = vmatpush2.bf16.msra.mxu0 0
  %2491 = vmatprep.subr.bf16.mxu0 0
  %2492 = vmatpush2.bf16.msra.mxu0 0
  %2493 = vmatprep.mubr.bf16.mxu0 0
  %2494 = vmatmul.mubr.bf16.gmra.mxu0 %v2459
  %v2495 = vpop.f32.mrf.mxu0
  %v2496 = vadd.f32 %v2444, %v2495
  %v2497 = vpop.f32.mrf.mxu0
  %v2498 = vpop.f32.mrf.mxu0
  %v2499 = vadd.f32 %v2444, %v2498
  %v2500 = vpop.f32.mrf.mxu0
  %2501 = vdwg.mxu0
  %v2502 = vpack.c.bf16 %v2426, %v2425
  %v2503 = vpack.c.bf16 %v2499, %v2496
  %s2504 = scalar_lea.vmem %s11, 80
  %v2505 = vld [vmem:[%s2504] sm:$0xf]
  %v2506 = vld [vmem:[%s2504 + $0x4] sm:$0xf]
  %v2507 = vld [vmem:[%s2504 + $0x8] sm:$0xf]
  %v2508 = vld [vmem:[%s2504 + $0xc] sm:$0xf]
  %s2509 = scalar_lea.vmem %s12, 5
  %v2510 = vld [vmem:[%s2509] sm:$0x1]
  %v2512 = vlaneseq
  %v2513 = vshrl.u32 %v2512, 7
  %v2514 = vsub.s32 0, %v2513
  %v2515 = vrot.slane %v2510, %v2514
  %v2521 = vunpack.c.l.b16 %v2505
  %v2522 = vunpack.c.l.b16 %v2506
  %v2523 = vunpack.c.l.b16 %v2507
  %v2524 = vunpack.c.l.b16 %v2508
  %v2525 = vpack.c.b16 %v2522, %v2521
  %v2526 = vpack.c.b16 %v2524, %v2523
  %2529 = vmatprep.subr.bf16.mxu0 0
  %2530 = vmatpush1.bf16.msra.mxu0 0
  %2531 = vmatprep.subr.bf16.mxu0 0
  %2532 = vmatpush1.bf16.msra.mxu0 0
  %2533 = vmatprep.subr.bf16.mxu0 0
  %2534 = vmatpush1.bf16.msra.mxu0 0
  %2535 = vmatprep.subr.bf16.mxu0 0
  %2536 = vmatpush1.bf16.msra.mxu0 0
  %2537 = vmatprep.subr.bf16.mxu0 0
  %2538 = vmatpush1.bf16.msra.mxu0 0
  %2539 = vmatprep.subr.bf16.mxu0 0
  %2540 = vmatpush1.bf16.msra.mxu0 0
  %2541 = vmatprep.subr.bf16.mxu0 0
  %2542 = vmatpush1.bf16.msra.mxu0 %v2526
  %2543 = vmatprep.subr.bf16.mxu0 0
  %2544 = vmatpush1.bf16.msra.mxu0 %v2525
  %2545 = vmatprep.subr.bf16.mxu0 0
  %2546 = vmatpush2.bf16.msra.mxu0 0
  %2547 = vmatprep.subr.bf16.mxu0 0
  %2548 = vmatpush2.bf16.msra.mxu0 0
  %2549 = vmatprep.subr.bf16.mxu0 0
  %2550 = vmatpush2.bf16.msra.mxu0 0
  %2551 = vmatprep.subr.bf16.mxu0 0
  %2552 = vmatpush2.bf16.msra.mxu0 0
  %2553 = vmatprep.subr.bf16.mxu0 0
  %2554 = vmatpush2.bf16.msra.mxu0 0
  %2555 = vmatprep.subr.bf16.mxu0 0
  %2556 = vmatpush2.bf16.msra.mxu0 0
  %2557 = vmatprep.subr.bf16.mxu0 0
  %2558 = vmatpush2.bf16.msra.mxu0 0
  %2559 = vmatprep.subr.bf16.mxu0 0
  %2560 = vmatpush2.bf16.msra.mxu0 0
  %2561 = vmatprep.mubr.bf16.mxu0 0
  %2562 = vmatmul.mubr.bf16.gmra.mxu0 %v2459
  %v2563 = vpop.f32.mrf.mxu0
  %v2564 = vadd.f32 %v2515, %v2563
  %v2565 = vpop.f32.mrf.mxu0
  %v2566 = vpop.f32.mrf.mxu0
  %v2567 = vadd.f32 %v2515, %v2566
  %v2568 = vpop.f32.mrf.mxu0
  %2569 = vdwg.mxu0
  %v2570 = vpack.c.bf16 %v2428, %v2427
  %v2571 = vpack.c.bf16 %v2567, %v2564
  %v2573 = vsel %vm75, %v2570, 0
  %2575 = vmatprep.subr.bf16.mxu0 0
  %2576 = vmatpush1.bf16.msra.mxu0 0
  %2577 = vmatprep.subr.bf16.mxu0 0
  %2578 = vmatpush1.bf16.msra.mxu0 0
  %2579 = vmatprep.subr.bf16.mxu0 0
  %2580 = vmatpush1.bf16.msra.mxu0 0
  %2581 = vmatprep.subr.bf16.mxu0 0
  %2582 = vmatpush1.bf16.msra.mxu0 0
  %2583 = vmatprep.subr.bf16.mxu0 0
  %2584 = vmatpush1.bf16.msra.mxu0 0
  %2585 = vmatprep.subr.bf16.mxu0 0
  %2586 = vmatpush1.bf16.msra.mxu0 0
  %2587 = vmatprep.subr.bf16.mxu0 0
  %2588 = vmatpush1.bf16.msra.mxu0 0
  %2589 = vmatprep.subr.bf16.mxu0 0
  %2590 = vmatpush1.bf16.msra.mxu0 %v2571
  %2591 = vmatprep.subr.bf16.mxu0 0
  %2592 = vmatpush2.bf16.msra.mxu0 0
  %2593 = vmatprep.subr.bf16.mxu0 0
  %2594 = vmatpush2.bf16.msra.mxu0 0
  %2595 = vmatprep.subr.bf16.mxu0 0
  %2596 = vmatpush2.bf16.msra.mxu0 0
  %2597 = vmatprep.subr.bf16.mxu0 0
  %2598 = vmatpush2.bf16.msra.mxu0 0
  %2599 = vmatprep.subr.bf16.mxu0 0
  %2600 = vmatpush2.bf16.msra.mxu0 0
  %2601 = vmatprep.subr.bf16.mxu0 0
  %2602 = vmatpush2.bf16.msra.mxu0 0
  %2603 = vmatprep.subr.bf16.mxu0 0
  %2604 = vmatpush2.bf16.msra.mxu0 0
  %2605 = vmatprep.subr.bf16.mxu0 0
  %2606 = vmatpush2.bf16.msra.mxu0 0
  %2607 = vmatprep.mubr.bf16.mxu0 0
  %2608 = vmatmul.mubr.bf16.gmra.mxu0 %v2573
  %v2609 = vpop.f32.mrf.mxu0
  %v2610 = vadd.f32 0.0, %v2609
  %v2611 = vpop.f32.mrf.mxu0
  %v2612 = vpop.f32.mrf.mxu0
  %v2613 = vadd.f32 0.0, %v2612
  %v2614 = vpop.f32.mrf.mxu0
  %2615 = vdwg.mxu0
  %v2617 = vsel %vm75, %v2502, 0
  %2619 = vmatprep.subr.bf16.mxu0 0
  %2620 = vmatpush1.bf16.msra.mxu0 0
  %2621 = vmatprep.subr.bf16.mxu0 0
  %2622 = vmatpush1.bf16.msra.mxu0 0
  %2623 = vmatprep.subr.bf16.mxu0 0
  %2624 = vmatpush1.bf16.msra.mxu0 0
  %2625 = vmatprep.subr.bf16.mxu0 0
  %2626 = vmatpush1.bf16.msra.mxu0 0
  %2627 = vmatprep.subr.bf16.mxu0 0
  %2628 = vmatpush1.bf16.msra.mxu0 0
  %2629 = vmatprep.subr.bf16.mxu0 0
  %2630 = vmatpush1.bf16.msra.mxu0 0
  %2631 = vmatprep.subr.bf16.mxu0 0
  %2632 = vmatpush1.bf16.msra.mxu0 0
  %2633 = vmatprep.subr.bf16.mxu0 0
  %2634 = vmatpush1.bf16.msra.mxu0 %v2503
  %2635 = vmatprep.subr.bf16.mxu0 0
  %2636 = vmatpush2.bf16.msra.mxu0 0
  %2637 = vmatprep.subr.bf16.mxu0 0
  %2638 = vmatpush2.bf16.msra.mxu0 0
  %2639 = vmatprep.subr.bf16.mxu0 0
  %2640 = vmatpush2.bf16.msra.mxu0 0
  %2641 = vmatprep.subr.bf16.mxu0 0
  %2642 = vmatpush2.bf16.msra.mxu0 0
  %2643 = vmatprep.subr.bf16.mxu0 0
  %2644 = vmatpush2.bf16.msra.mxu0 0
  %2645 = vmatprep.subr.bf16.mxu0 0
  %2646 = vmatpush2.bf16.msra.mxu0 0
  %2647 = vmatprep.subr.bf16.mxu0 0
  %2648 = vmatpush2.bf16.msra.mxu0 0
  %2649 = vmatprep.subr.bf16.mxu0 0
  %2650 = vmatpush2.bf16.msra.mxu0 0
  %2651 = vmatprep.mubr.bf16.mxu0 0
  %2652 = vmatmul.mubr.bf16.gmra.mxu0 %v2617
  %v2653 = vpop.f32.mrf.mxu0
  %v2654 = vadd.f32 %v2610, %v2653
  %v2655 = vpop.f32.mrf.mxu0
  %v2656 = vpop.f32.mrf.mxu0
  %v2657 = vadd.f32 %v2613, %v2656
  %v2658 = vpop.f32.mrf.mxu0
  %2659 = vdwg.mxu0
  %s2660 = scalar_lea.vmem %s11, 96
  %v2661 = vld [vmem:[%s2660] sm:$0xf]
  %v2662 = vld [vmem:[%s2660 + $0x4] sm:$0xf]
  %v2663 = vld [vmem:[%s2660 + $0x8] sm:$0xf]
  %v2664 = vld [vmem:[%s2660 + $0xc] sm:$0xf]
  %s2665 = scalar_lea.vmem %s12, 6
  %v2666 = vld [vmem:[%s2665] sm:$0x1]
  %v2668 = vlaneseq
  %v2669 = vshrl.u32 %v2668, 7
  %v2670 = vsub.s32 0, %v2669
  %v2671 = vrot.slane %v2666, %v2670
  %v2677 = vunpack.c.l.b16 %v2661
  %v2678 = vunpack.c.l.b16 %v2662
  %v2679 = vunpack.c.l.b16 %v2663
  %v2680 = vunpack.c.l.b16 %v2664
  %v2681 = vpack.c.b16 %v2678, %v2677
  %v2682 = vpack.c.b16 %v2680, %v2679
  %2685 = vmatprep.subr.bf16.mxu0 0
  %2686 = vmatpush1.bf16.msra.mxu0 0
  %2687 = vmatprep.subr.bf16.mxu0 0
  %2688 = vmatpush1.bf16.msra.mxu0 0
  %2689 = vmatprep.subr.bf16.mxu0 0
  %2690 = vmatpush1.bf16.msra.mxu0 0
  %2691 = vmatprep.subr.bf16.mxu0 0
  %2692 = vmatpush1.bf16.msra.mxu0 0
  %2693 = vmatprep.subr.bf16.mxu0 0
  %2694 = vmatpush1.bf16.msra.mxu0 0
  %2695 = vmatprep.subr.bf16.mxu0 0
  %2696 = vmatpush1.bf16.msra.mxu0 0
  %2697 = vmatprep.subr.bf16.mxu0 0
  %2698 = vmatpush1.bf16.msra.mxu0 %v2682
  %2699 = vmatprep.subr.bf16.mxu0 0
  %2700 = vmatpush1.bf16.msra.mxu0 %v2681
  %2701 = vmatprep.subr.bf16.mxu0 0
  %2702 = vmatpush2.bf16.msra.mxu0 0
  %2703 = vmatprep.subr.bf16.mxu0 0
  %2704 = vmatpush2.bf16.msra.mxu0 0
  %2705 = vmatprep.subr.bf16.mxu0 0
  %2706 = vmatpush2.bf16.msra.mxu0 0
  %2707 = vmatprep.subr.bf16.mxu0 0
  %2708 = vmatpush2.bf16.msra.mxu0 0
  %2709 = vmatprep.subr.bf16.mxu0 0
  %2710 = vmatpush2.bf16.msra.mxu0 0
  %2711 = vmatprep.subr.bf16.mxu0 0
  %2712 = vmatpush2.bf16.msra.mxu0 0
  %2713 = vmatprep.subr.bf16.mxu0 0
  %2714 = vmatpush2.bf16.msra.mxu0 0
  %2715 = vmatprep.subr.bf16.mxu0 0
  %2716 = vmatpush2.bf16.msra.mxu0 0
  %2717 = vmatprep.mubr.bf16.mxu0 0
  %2718 = vmatmul.mubr.bf16.gmra.mxu0 %v2459
  %v2719 = vpop.f32.mrf.mxu0
  %v2720 = vadd.f32 %v2671, %v2719
  %v2721 = vpop.f32.mrf.mxu0
  %v2722 = vpop.f32.mrf.mxu0
  %v2723 = vadd.f32 %v2671, %v2722
  %v2724 = vpop.f32.mrf.mxu0
  %2725 = vdwg.mxu0
  %v2726 = vpack.c.bf16 %v2430, %v2429
  %v2727 = vpack.c.bf16 %v2723, %v2720
  %v2729 = vsel %vm75, %v2726, 0
  %2731 = vmatprep.subr.bf16.mxu0 0
  %2732 = vmatpush1.bf16.msra.mxu0 0
  %2733 = vmatprep.subr.bf16.mxu0 0
  %2734 = vmatpush1.bf16.msra.mxu0 0
  %2735 = vmatprep.subr.bf16.mxu0 0
  %2736 = vmatpush1.bf16.msra.mxu0 0
  %2737 = vmatprep.subr.bf16.mxu0 0
  %2738 = vmatpush1.bf16.msra.mxu0 0
  %2739 = vmatprep.subr.bf16.mxu0 0
  %2740 = vmatpush1.bf16.msra.mxu0 0
  %2741 = vmatprep.subr.bf16.mxu0 0
  %2742 = vmatpush1.bf16.msra.mxu0 0
  %2743 = vmatprep.subr.bf16.mxu0 0
  %2744 = vmatpush1.bf16.msra.mxu0 0
  %2745 = vmatprep.subr.bf16.mxu0 0
  %2746 = vmatpush1.bf16.msra.mxu0 %v2727
  %2747 = vmatprep.subr.bf16.mxu0 0
  %2748 = vmatpush2.bf16.msra.mxu0 0
  %2749 = vmatprep.subr.bf16.mxu0 0
  %2750 = vmatpush2.bf16.msra.mxu0 0
  %2751 = vmatprep.subr.bf16.mxu0 0
  %2752 = vmatpush2.bf16.msra.mxu0 0
  %2753 = vmatprep.subr.bf16.mxu0 0
  %2754 = vmatpush2.bf16.msra.mxu0 0
  %2755 = vmatprep.subr.bf16.mxu0 0
  %2756 = vmatpush2.bf16.msra.mxu0 0
  %2757 = vmatprep.subr.bf16.mxu0 0
  %2758 = vmatpush2.bf16.msra.mxu0 0
  %2759 = vmatprep.subr.bf16.mxu0 0
  %2760 = vmatpush2.bf16.msra.mxu0 0
  %2761 = vmatprep.subr.bf16.mxu0 0
  %2762 = vmatpush2.bf16.msra.mxu0 0
  %2763 = vmatprep.mubr.bf16.mxu0 0
  %2764 = vmatmul.mubr.bf16.gmra.mxu0 %v2729
  %v2765 = vpop.f32.mrf.mxu0
  %v2766 = vadd.f32 0.0, %v2765
  %v2767 = vpop.f32.mrf.mxu0
  %v2768 = vpop.f32.mrf.mxu0
  %v2769 = vadd.f32 0.0, %v2768
  %v2770 = vpop.f32.mrf.mxu0
  %2771 = vdwg.mxu0
  %v2772 = vadd.f32 %v2654, %v2766
  %v2773 = vadd.f32 %v2657, %v2769
  %s2774 = scalar_lea.vmem %s11, 112
  %v2775 = vld [vmem:[%s2774] sm:$0xf]
  %v2776 = vld [vmem:[%s2774 + $0x4] sm:$0xf]
  %v2777 = vld [vmem:[%s2774 + $0x8] sm:$0xf]
  %v2778 = vld [vmem:[%s2774 + $0xc] sm:$0xf]
  %s2779 = scalar_lea.vmem %s12, 7
  %v2780 = vld [vmem:[%s2779] sm:$0x1]
  %v2782 = vlaneseq
  %v2783 = vshrl.u32 %v2782, 7
  %v2784 = vsub.s32 0, %v2783
  %v2785 = vrot.slane %v2780, %v2784
  %v2791 = vunpack.c.l.b16 %v2775
  %v2792 = vunpack.c.l.b16 %v2776
  %v2793 = vunpack.c.l.b16 %v2777
  %v2794 = vunpack.c.l.b16 %v2778
  %v2795 = vpack.c.b16 %v2792, %v2791
  %v2796 = vpack.c.b16 %v2794, %v2793
  %2799 = vmatprep.subr.bf16.mxu0 0
  %2800 = vmatpush1.bf16.msra.mxu0 0
  %2801 = vmatprep.subr.bf16.mxu0 0
  %2802 = vmatpush1.bf16.msra.mxu0 0
  %2803 = vmatprep.subr.bf16.mxu0 0
  %2804 = vmatpush1.bf16.msra.mxu0 0
  %2805 = vmatprep.subr.bf16.mxu0 0
  %2806 = vmatpush1.bf16.msra.mxu0 0
  %2807 = vmatprep.subr.bf16.mxu0 0
  %2808 = vmatpush1.bf16.msra.mxu0 0
  %2809 = vmatprep.subr.bf16.mxu0 0
  %2810 = vmatpush1.bf16.msra.mxu0 0
  %2811 = vmatprep.subr.bf16.mxu0 0
  %2812 = vmatpush1.bf16.msra.mxu0 %v2796
  %2813 = vmatprep.subr.bf16.mxu0 0
  %2814 = vmatpush1.bf16.msra.mxu0 %v2795
  %2815 = vmatprep.subr.bf16.mxu0 0
  %2816 = vmatpush2.bf16.msra.mxu0 0
  %2817 = vmatprep.subr.bf16.mxu0 0
  %2818 = vmatpush2.bf16.msra.mxu0 0
  %2819 = vmatprep.subr.bf16.mxu0 0
  %2820 = vmatpush2.bf16.msra.mxu0 0
  %2821 = vmatprep.subr.bf16.mxu0 0
  %2822 = vmatpush2.bf16.msra.mxu0 0
  %2823 = vmatprep.subr.bf16.mxu0 0
  %2824 = vmatpush2.bf16.msra.mxu0 0
  %2825 = vmatprep.subr.bf16.mxu0 0
  %2826 = vmatpush2.bf16.msra.mxu0 0
  %2827 = vmatprep.subr.bf16.mxu0 0
  %2828 = vmatpush2.bf16.msra.mxu0 0
  %2829 = vmatprep.subr.bf16.mxu0 0
  %2830 = vmatpush2.bf16.msra.mxu0 0
  %2831 = vmatprep.mubr.bf16.mxu0 0
  %2832 = vmatmul.mubr.bf16.gmra.mxu0 %v2459
  %v2833 = vpop.f32.mrf.mxu0
  %v2834 = vadd.f32 %v2785, %v2833
  %v2835 = vpop.f32.mrf.mxu0
  %v2836 = vpop.f32.mrf.mxu0
  %v2837 = vadd.f32 %v2785, %v2836
  %v2838 = vpop.f32.mrf.mxu0
  %2839 = vdwg.mxu0
  %v2840 = vpack.c.bf16 %v2432, %v2431
  %v2841 = vpack.c.bf16 %v2837, %v2834
  %v2843 = vsel %vm75, %v2840, 0
  %2845 = vmatprep.subr.bf16.mxu0 0
  %2846 = vmatpush1.bf16.msra.mxu0 0
  %2847 = vmatprep.subr.bf16.mxu0 0
  %2848 = vmatpush1.bf16.msra.mxu0 0
  %2849 = vmatprep.subr.bf16.mxu0 0
  %2850 = vmatpush1.bf16.msra.mxu0 0
  %2851 = vmatprep.subr.bf16.mxu0 0
  %2852 = vmatpush1.bf16.msra.mxu0 0
  %2853 = vmatprep.subr.bf16.mxu0 0
  %2854 = vmatpush1.bf16.msra.mxu0 0
  %2855 = vmatprep.subr.bf16.mxu0 0
  %2856 = vmatpush1.bf16.msra.mxu0 0
  %2857 = vmatprep.subr.bf16.mxu0 0
  %2858 = vmatpush1.bf16.msra.mxu0 0
  %2859 = vmatprep.subr.bf16.mxu0 0
  %2860 = vmatpush1.bf16.msra.mxu0 %v2841
  %2861 = vmatprep.subr.bf16.mxu0 0
  %2862 = vmatpush2.bf16.msra.mxu0 0
  %2863 = vmatprep.subr.bf16.mxu0 0
  %2864 = vmatpush2.bf16.msra.mxu0 0
  %2865 = vmatprep.subr.bf16.mxu0 0
  %2866 = vmatpush2.bf16.msra.mxu0 0
  %2867 = vmatprep.subr.bf16.mxu0 0
  %2868 = vmatpush2.bf16.msra.mxu0 0
  %2869 = vmatprep.subr.bf16.mxu0 0
  %2870 = vmatpush2.bf16.msra.mxu0 0
  %2871 = vmatprep.subr.bf16.mxu0 0
  %2872 = vmatpush2.bf16.msra.mxu0 0
  %2873 = vmatprep.subr.bf16.mxu0 0
  %2874 = vmatpush2.bf16.msra.mxu0 0
  %2875 = vmatprep.subr.bf16.mxu0 0
  %2876 = vmatpush2.bf16.msra.mxu0 0
  %2877 = vmatprep.mubr.bf16.mxu0 0
  %2878 = vmatmul.mubr.bf16.gmra.mxu0 %v2843
  %v2879 = vpop.f32.mrf.mxu0
  %v2880 = vadd.f32 0.0, %v2879
  %v2881 = vpop.f32.mrf.mxu0
  %v2882 = vpop.f32.mrf.mxu0
  %v2883 = vadd.f32 0.0, %v2882
  %v2884 = vpop.f32.mrf.mxu0
  %2885 = vdwg.mxu0
  %v2886 = vadd.f32 %v2772, %v2880
  %v2887 = vadd.f32 %v2773, %v2883
  %v2888 = vmul.f32 %v2886, 0.25
  %v2889 = vmul.f32 %v2887, 0.25
  %v2890 = vmul.f32 %v2888, 0.5
  %v2891 = vmul.f32 %v2889, 0.5
  %v2892 = vmul.f32 %v1550, 0.5
  %v2893 = vmul.f32 %v1551, 0.5
  %v2894 = vadd.f32 %v2890, %v2892
  %v2895 = vadd.f32 %v2891, %v2893
  %s2896 = scalar_lea.vmem %s13, 1
  %v2897 = vld [vmem:[%s2896] sm:$0x1]
  %s2898 = scalar_lea.vmem %s14, 1
  %v2899 = vld [vmem:[%s2898] sm:$0x1]
  %v2900 = vsel %vm122, %v2894, 0.0
  %2901 = vadd.xlane.f32.xlu0 %v2900
  %v2902 = vpop.xlane.xlu0 %2901
  %v2903 = vsel %vm122, %v2895, 0.0
  %2904 = vadd.xlane.f32.xlu0 %v2903
  %v2905 = vpop.xlane.xlu0 %2904
  %v2906 = vmul.f32 %v2902, %v129
  %v2907 = vmul.f32 %v2905, %v129
  %v2908 = vsub.f32 %v2894, %v2906
  %v2909 = vsub.f32 %v2895, %v2907
  %v2910 = vmul.f32 %v2908, %v2908
  %v2911 = vmul.f32 %v2909, %v2909
  %v2912 = vsel %vm122, %v2910, 0.0
  %2913 = vadd.xlane.f32.xlu0 %v2912
  %v2914 = vpop.xlane.xlu0 %2913
  %v2915 = vsel %vm122, %v2911, 0.0
  %2916 = vadd.xlane.f32.xlu0 %v2915
  %v2917 = vpop.xlane.xlu0 %2916
  %v2918 = vmul.f32 %v2914, %v129
  %v2919 = vmul.f32 %v2917, %v129
  %v2920 = vadd.f32 %v2918, 1e-05
  %v2921 = vadd.f32 %v2919, 1e-05
  %v2922 = vrsqrt.pop %v2920
  %v2923 = vrsqrt.pop %v2921
  %v2924 = vmul.f32 %v2908, %v2922
  %v2925 = vmul.f32 %v2909, %v2923
  %v2927 = vlaneseq
  %v2928 = vshrl.u32 %v2927, 7
  %v2929 = vsub.s32 0, %v2928
  %v2930 = vrot.slane %v2897, %v2929
  %v2932 = vmul.f32 %v2924, %v2930
  %v2933 = vmul.f32 %v2925, %v2930
  %v2935 = vlaneseq
  %v2936 = vshrl.u32 %v2935, 7
  %v2937 = vsub.s32 0, %v2936
  %v2938 = vrot.slane %v2899, %v2937
  %v2940 = vadd.f32 %v2932, %v2938
  %v2941 = vadd.f32 %v2933, %v2938
  %v2942 = vpack.c.bf16 %v2941, %v2940
  %v2943 = vld [vmem:[%s15] sm:$0xf]
  %v2944 = vld [vmem:[%s15 + $0x4] sm:$0xf]
  %v2945 = vld [vmem:[%s15 + $0x8] sm:$0xf]
  %v2946 = vld [vmem:[%s15 + $0xc] sm:$0xf]
  %v2947 = vld [vmem:[%s16] sm:$0x1]
  %v2949 = vlaneseq
  %v2950 = vshrl.u32 %v2949, 7
  %v2951 = vsub.s32 0, %v2950
  %v2952 = vrot.slane %v2947, %v2951
  %v2958 = vunpack.c.l.b16 %v2943
  %v2959 = vunpack.c.l.b16 %v2944
  %v2960 = vunpack.c.l.b16 %v2945
  %v2961 = vunpack.c.l.b16 %v2946
  %v2962 = vpack.c.b16 %v2959, %v2958
  %v2963 = vpack.c.b16 %v2961, %v2960
  %v2967 = vsel %vm122, %v2942, 0
  %2969 = vmatprep.subr.bf16.mxu0 0
  %2970 = vmatpush1.bf16.msra.mxu0 0
  %2971 = vmatprep.subr.bf16.mxu0 0
  %2972 = vmatpush1.bf16.msra.mxu0 0
  %2973 = vmatprep.subr.bf16.mxu0 0
  %2974 = vmatpush1.bf16.msra.mxu0 0
  %2975 = vmatprep.subr.bf16.mxu0 0
  %2976 = vmatpush1.bf16.msra.mxu0 0
  %2977 = vmatprep.subr.bf16.mxu0 0
  %2978 = vmatpush1.bf16.msra.mxu0 0
  %2979 = vmatprep.subr.bf16.mxu0 0
  %2980 = vmatpush1.bf16.msra.mxu0 0
  %2981 = vmatprep.subr.bf16.mxu0 0
  %2982 = vmatpush1.bf16.msra.mxu0 %v2963
  %2983 = vmatprep.subr.bf16.mxu0 0
  %2984 = vmatpush1.bf16.msra.mxu0 %v2962
  %2985 = vmatprep.subr.bf16.mxu0 0
  %2986 = vmatpush2.bf16.msra.mxu0 0
  %2987 = vmatprep.subr.bf16.mxu0 0
  %2988 = vmatpush2.bf16.msra.mxu0 0
  %2989 = vmatprep.subr.bf16.mxu0 0
  %2990 = vmatpush2.bf16.msra.mxu0 0
  %2991 = vmatprep.subr.bf16.mxu0 0
  %2992 = vmatpush2.bf16.msra.mxu0 0
  %2993 = vmatprep.subr.bf16.mxu0 0
  %2994 = vmatpush2.bf16.msra.mxu0 0
  %2995 = vmatprep.subr.bf16.mxu0 0
  %2996 = vmatpush2.bf16.msra.mxu0 0
  %2997 = vmatprep.subr.bf16.mxu0 0
  %2998 = vmatpush2.bf16.msra.mxu0 0
  %2999 = vmatprep.subr.bf16.mxu0 0
  %3000 = vmatpush2.bf16.msra.mxu0 0
  %3001 = vmatprep.mubr.bf16.mxu0 0
  %3002 = vmatmul.mubr.bf16.gmra.mxu0 %v2967
  %v3003 = vpop.f32.mrf.mxu0
  %v3004 = vadd.f32 %v2952, %v3003
  %v3005 = vpop.f32.mrf.mxu0
  %v3006 = vpop.f32.mrf.mxu0
  %v3007 = vadd.f32 %v2952, %v3006
  %v3008 = vpop.f32.mrf.mxu0
  %3009 = vdwg.mxu0
  %3010 = vst [vmem:[%s17] sm:$0xff] %v3004
  %3011 = vst [vmem:[%s17 + $0x8] sm:$0xff] %v3007
  // Predicated region
  $region70: #{sgformer_gat_forward.1} parent=0 // pred_check
    _
  $region71: #{sgformer_gat_forward.1} parent=0 // pred_check_branch
    %3013 = sbr.rel (0) target = $region73
  $region72: #{sgformer_gat_forward.1} parent=0 // pred_region
    _
  $region73: #{sgformer_gat_forward.1} parent=0 // pred_fallthru
    _
  // Predicated region
  $region74: #{sgformer_gat_forward.1} parent=0 // pred_check
    _
  $region75: #{sgformer_gat_forward.1} parent=0 // pred_check_branch
    %3015 = sbr.rel (0) target = $region77
  $region76: #{sgformer_gat_forward.1} parent=0 // pred_region
    _
  $region77: #{sgformer_gat_forward.1} parent=0 // pred_fallthru
    _

</llo_original>
